<compile_context>
chip_gen: v5e
topology: v5e:2x2
jax: 0.10.0
libtpu: 0.0.40
codegen_flags: <defaults>
</compile_context>

<pallas_src>
import functools

import jax
import jax.numpy as jnp
from jax import lax
from jax.experimental import pallas as pl
from jax.experimental.pallas import tpu as pltpu


# ----------------------------------------------------------------------------- helpers
def _round_up(a, b):
    return (a + b - 1) // b * b


_VMEM_LIMIT = None


def _vmem_limit_bytes():
    """Generation-aware VMEM budget (~half of physical capacity)."""
    global _VMEM_LIMIT
    if _VMEM_LIMIT is None:
        try:
            cap = int(pltpu.get_tpu_info().vmem_capacity_bytes)
        except Exception:
            cap = 64 << 20
        _VMEM_LIMIT = max(16 << 20, min(cap // 2, 100 << 20))
    return _VMEM_LIMIT


# ----------------------------------------------------------------------------- GEMM kernel
def _gemm_kernel(x_ref, w_ref, b_ref, o_ref, acc_ref, *, activation):
    # x_ref: (TM, TK)  w_ref: (TK, TN)  b_ref: (1, TN)  o_ref: (TM, TN)  acc: f32 (TM, TN)
    @pl.when(pl.program_id(2) == 0)
    def _():
        acc_ref[...] = jnp.zeros_like(acc_ref)

    acc_ref[...] += jnp.dot(x_ref[...], w_ref[...],
                            preferred_element_type=jnp.float32)

    @pl.when(pl.program_id(2) == pl.num_programs(2) - 1)
    def _():
        y = acc_ref[...] + b_ref[...]
        if activation == "relu":
            y = jnp.maximum(y, 0.0)
        elif activation == "tanh":
            y = jnp.tanh(y)
        o_ref[...] = y.astype(o_ref.dtype)


def fused_matmul(x, w, bias, activation="none"):
    """y = act(x @ w + bias).  x:(M,K) f32, w:(K,N) f32 (pre-transposed), bias:(N,)."""
    M, K = x.shape
    K2, N = w.shape
    assert K == K2

    TM_MAX, TK, TN = 256, 128, 128
    if M > TM_MAX:
        tm = TM_MAX
        Mp = _round_up(M, tm)
    else:
        Mp = _round_up(M, 8)
        tm = Mp
    Kp = _round_up(K, TK)
    Np = _round_up(N, TN)
    tk, tn = TK, TN

    xp = jnp.pad(x, ((0, Mp - M), (0, Kp - K)))
    wp = jnp.pad(w, ((0, Kp - K), (0, Np - N)))
    bp = jnp.pad(bias.reshape(1, -1).astype(jnp.float32), ((0, 0), (0, Np - N)))

    grid = (Mp // tm, Np // tn, Kp // tk)
    kernel = functools.partial(_gemm_kernel, activation=activation)

    cost = pl.CostEstimate(
        flops=2 * Mp * Kp * Np,
        transcendentals=Mp * Np if activation == "tanh" else 0,
        bytes_accessed=4 * (Mp * Kp + Kp * Np + Mp * Np + Np),
    )

    out = pl.pallas_call(
        kernel,
        out_shape=jax.ShapeDtypeStruct((Mp, Np), jnp.float32),
        grid_spec=pltpu.PrefetchScalarGridSpec(
            num_scalar_prefetch=0,
            grid=grid,
            in_specs=[
                pl.BlockSpec((tm, tk), lambda i, j, k: (i, k)),
                pl.BlockSpec((tk, tn), lambda i, j, k: (k, j)),
                pl.BlockSpec((1, tn), lambda i, j, k: (0, j)),
            ],
            out_specs=pl.BlockSpec((tm, tn), lambda i, j, k: (i, j)),
            scratch_shapes=[pltpu.VMEM((tm, tn), jnp.float32)],
        ),
        compiler_params=pltpu.CompilerParams(
            dimension_semantics=("parallel", "parallel", "arbitrary"),
            vmem_limit_bytes=_vmem_limit_bytes(),
        ),
        cost_estimate=cost,
    )(xp, wp, bp)

    return out[:M, :N]


# ----------------------------------------------------------------------------- BatchNorm kernels
def _bn_act_kernel(y_ref, g_ref, b_ref, o_ref, *, relu, eps):
    y = y_ref[...]                                          # (M, C)
    mean = jnp.mean(y, axis=0, keepdims=True)               # batch-norm over B*H*W
    var = jnp.mean(jnp.square(y - mean), axis=0, keepdims=True)
    out = (y - mean) * lax.rsqrt(var + eps) * g_ref[...] + b_ref[...]
    if relu:
        out = jnp.maximum(out, 0.0)
    o_ref[...] = out


def _bn_res_kernel(y_ref, g_ref, b_ref, r_ref, o_ref, *, eps):
    y = y_ref[...]
    mean = jnp.mean(y, axis=0, keepdims=True)
    var = jnp.mean(jnp.square(y - mean), axis=0, keepdims=True)
    out = (y - mean) * lax.rsqrt(var + eps) * g_ref[...] + b_ref[...]
    o_ref[...] = out + r_ref[...]                           # ResnetBlock skip connection


def batchnorm_act(y_nhwc, gamma, beta, *, relu=False, residual=None, eps=1e-5):
    """Training-mode BatchNorm2d (+ optional ReLU / residual add) as a Pallas kernel."""
    B, H, W, C = y_nhwc.shape
    M = B * H * W
    y2 = y_nhwc.reshape(M, C).astype(jnp.float32)
    g2 = gamma.reshape(1, C).astype(jnp.float32)
    b2 = beta.reshape(1, C).astype(jnp.float32)
    cp = pltpu.CompilerParams(vmem_limit_bytes=_vmem_limit_bytes())

    if residual is None:
        kernel = functools.partial(_bn_act_kernel, relu=relu, eps=eps)
        out = pl.pallas_call(
            kernel,
            out_shape=jax.ShapeDtypeStruct((M, C), jnp.float32),
            in_specs=[
                pl.BlockSpec((M, C), lambda: (0, 0)),
                pl.BlockSpec((1, C), lambda: (0, 0)),
                pl.BlockSpec((1, C), lambda: (0, 0)),
            ],
            out_specs=pl.BlockSpec((M, C), lambda: (0, 0)),
            compiler_params=cp,
        )(y2, g2, b2)
    else:
        r2 = residual.reshape(M, C).astype(jnp.float32)
        kernel = functools.partial(_bn_res_kernel, eps=eps)
        out = pl.pallas_call(
            kernel,
            out_shape=jax.ShapeDtypeStruct((M, C), jnp.float32),
            in_specs=[
                pl.BlockSpec((M, C), lambda: (0, 0)),
                pl.BlockSpec((1, C), lambda: (0, 0)),
                pl.BlockSpec((1, C), lambda: (0, 0)),
                pl.BlockSpec((M, C), lambda: (0, 0)),
            ],
            out_specs=pl.BlockSpec((M, C), lambda: (0, 0)),
            compiler_params=cp,
        )(y2, g2, b2, r2)
    return out.reshape(B, H, W, C)


# ----------------------------------------------------------------------------- conv wrappers
def _conv_core(x_padded, w_oihw, bias, stride, activation):
    """im2col + Pallas GEMM.  x_padded: (B,Hp,Wp,Cin) already padded; w: (Cout,Cin,K,K)."""
    B, Hp, Wp, Cin = x_padded.shape
    Cout, _, K, _ = w_oihw.shape
    Hout = (Hp - K) // stride + 1
    Wout = (Wp - K) // stride + 1

    cols = [
        x_padded[:, di:di + stride * Hout:stride, dj:dj + stride * Wout:stride, :]
        for di in range(K) for dj in range(K)
    ]
    patches = jnp.concatenate(cols, axis=-1).reshape(B * Hout * Wout, K * K * Cin)
    # weight pre-transposed to (K*K*Cin, Cout) outside the kernel (no in-kernel .T)
    w2d = jnp.transpose(w_oihw, (2, 3, 1, 0)).reshape(K * K * Cin, Cout)

    y = fused_matmul(patches, w2d, bias, activation=activation)
    return y.reshape(B, Hout, Wout, Cout)


def conv2d_pallas(x, w_oihw, bias, *, stride, pad, pad_mode, activation="none"):
    if pad > 0:
        mode = "reflect" if pad_mode == "reflect" else "constant"
        x = jnp.pad(x, ((0, 0), (pad, pad), (pad, pad), (0, 0)), mode=mode)
    return _conv_core(x, w_oihw, bias, stride, activation)


def conv_transpose2d_pallas(x, w_iohw, bias, *, activation="none"):
    """ConvTranspose2d(k=3, stride=2, padding=1, output_padding=1) via dilation + flipped conv."""
    B, H, W, Cin = x.shape
    x_dil = jnp.zeros((B, 2 * H - 1, 2 * W - 1, Cin), x.dtype).at[:, ::2, ::2, :].set(x)
    x_p = jnp.pad(x_dil, ((0, 0), (1, 2), (1, 2), (0, 0)))          # k-1-p / k-1-p+op
    w_eq = jnp.transpose(w_iohw[:, :, ::-1, ::-1], (1, 0, 2, 3))     # (Cout, Cin, K, K)
    return _conv_core(x_p, w_eq, bias, 1, activation)


# ----------------------------------------------------------------------------- generator forward
def generator_forward(x_nchw, p):
    x = jnp.transpose(x_nchw, (0, 2, 3, 1)).astype(jnp.float32)      # NHWC

    def zb(c):
        return jnp.zeros((c,), jnp.float32)

    # initial 7x7 block
    y = conv2d_pallas(x, p["c0_w"], zb(p["c0_w"].shape[0]),
                      stride=1, pad=3, pad_mode="reflect")
    y = batchnorm_act(y, p["bn0_g"], p["bn0_b"], relu=True)

    # downsampling
    for d in p["down"]:
        y = conv2d_pallas(y, d["w"], zb(d["w"].shape[0]),
                          stride=2, pad=1, pad_mode="zero")
        y = batchnorm_act(y, d["g"], d["b"], relu=True)

    # resnet blocks (use_dropout=False)
    for blk in p["blocks"]:
        h = conv2d_pallas(y, blk["w1"], zb(blk["w1"].shape[0]),
                          stride=1, pad=1, pad_mode="reflect")
        h = batchnorm_act(h, blk["g1"], blk["b1"], relu=True)
        h = conv2d_pallas(h, blk["w2"], zb(blk["w2"].shape[0]),
                          stride=1, pad=1, pad_mode="reflect")
        y = batchnorm_act(h, blk["g2"], blk["b2"], relu=False, residual=y)

    # upsampling
    for u in p["up"]:
        y = conv_transpose2d_pallas(y, u["w"], zb(u["w"].shape[1]))
        y = batchnorm_act(y, u["g"], u["b"], relu=True)

    # final 7x7 conv (with bias) + Tanh, tanh fused into the GEMM epilogue
    y = conv2d_pallas(y, p["cf_w"], p["cf_b"],
                      stride=1, pad=3, pad_mode="reflect", activation="tanh")
    return jnp.transpose(y, (0, 3, 1, 2))


# ----------------------------------------------------------------------------- pure-JAX reference
def ref_forward(x_nchw, p, eps=1e-5):
    x = jnp.transpose(x_nchw, (0, 2, 3, 1)).astype(jnp.float32)

    def conv(x, w_oihw, b, stride, pad, mode):
        if pad > 0:
            x = jnp.pad(x, ((0, 0), (pad, pad), (pad, pad), (0, 0)),
                        mode="reflect" if mode == "reflect" else "constant")
        w_hwio = jnp.transpose(w_oihw, (2, 3, 1, 0))
        y = lax.conv_general_dilated(x, w_hwio, (stride, stride), "VALID",
                                     dimension_numbers=("NHWC", "HWIO", "NHWC"))
        if b is not None:
            y = y + b.reshape(1, 1, 1, -1)
        return y

    def convT(x, w_iohw):
        w_hwio = jnp.transpose(w_iohw[:, :, ::-1, ::-1], (2, 3, 0, 1))
        return lax.conv_general_dilated(x, w_hwio, (1, 1), ((1, 2), (1, 2)),
                                        lhs_dilation=(2, 2),
                                        dimension_numbers=("NHWC", "HWIO", "NHWC"))

    def bn(y, g, b, relu=False, res=None):
        mean = jnp.mean(y, axis=(0, 1, 2), keepdims=True)
        var = jnp.mean(jnp.square(y - mean), axis=(0, 1, 2), keepdims=True)
        out = (y - mean) / jnp.sqrt(var + eps) * g.reshape(1, 1, 1, -1) + b.reshape(1, 1, 1, -1)
        if res is not None:
            out = out + res
        if relu:
            out = jnp.maximum(out, 0.0)
        return out

    y = bn(conv(x, p["c0_w"], None, 1, 3, "reflect"), p["bn0_g"], p["bn0_b"], relu=True)
    for d in p["down"]:
        y = bn(conv(y, d["w"], None, 2, 1, "zero"), d["g"], d["b"], relu=True)
    for blk in p["blocks"]:
        h = bn(conv(y, blk["w1"], None, 1, 1, "reflect"), blk["g1"], blk["b1"], relu=True)
        h = conv(h, blk["w2"], None, 1, 1, "reflect")
        y = bn(h, blk["g2"], blk["b2"], relu=False, res=y)
    for u in p["up"]:
        y = bn(convT(y, u["w"]), u["g"], u["b"], relu=True)
    y = jnp.tanh(conv(y, p["cf_w"], p["cf_b"], 1, 3, "reflect"))
    return jnp.transpose(y, (0, 3, 1, 2))


# ----------------------------------------------------------------------------- params
def init_params(key, input_nc=3, output_nc=3, ngf=8, n_blocks=2):
    keys = iter(jax.random.split(key, 128))

    def conv_w(cout, cin, k):
        fan_in = cin * k * k
        return jax.random.normal(next(keys), (cout, cin, k, k), jnp.float32) * (2.0 / fan_in) ** 0.5

    def convT_w(cin, cout, k):
        fan_in = cin * k * k
        return jax.random.normal(next(keys), (cin, cout, k, k), jnp.float32) * (2.0 / fan_in) ** 0.5

    def bn_params(c):
        g = 1.0 + 0.1 * jax.random.normal(next(keys), (c,), jnp.float32)
        b = 0.1 * jax.random.normal(next(keys), (c,), jnp.float32)
        return g, b

    p = {}
    p["c0_w"] = conv_w(ngf, input_nc, 7)
    p["bn0_g"], p["bn0_b"] = bn_params(ngf)

    p["down"] = []
    mult = 1
    for _ in range(2):
        cin, cout = ngf * mult, ngf * mult * 2
        g, b = bn_params(cout)
        p["down"].append({"w": conv_w(cout, cin, 3), "g": g, "b": b})
        mult *= 2

    dim = ngf * mult
    p["blocks"] = []
    for _ in range(n_blocks):
        g1, b1 = bn_params(dim)
        g2, b2 = bn_params(dim)
        p["blocks"].append({"w1": conv_w(dim, dim, 3), "g1": g1, "b1": b1,
                            "w2": conv_w(dim, dim, 3), "g2": g2, "b2": b2})

    p["up"] = []
    for _ in range(2):
        cin, cout = ngf * mult, ngf * mult // 2
        g, b = bn_params(cout)
        p["up"].append({"w": convT_w(cin, cout, 3), "g": g, "b": b})
        mult //= 2

    p["cf_w"] = conv_w(output_nc, ngf, 7)
    p["cf_b"] = 0.1 * jax.random.normal(next(keys), (output_nc,), jnp.float32)
    return p


# ----------------------------------------------------------------------------- main
if __name__ == "__main__":
    B, input_nc, output_nc, H, W = 2, 3, 3, 16, 16
    ngf, n_blocks = 8, 2

    key = jax.random.PRNGKey(0)
    kx, kp = jax.random.split(key)
    x = jax.random.normal(kx, (B, input_nc, H, W), dtype=jnp.float32)
    params = init_params(kp, input_nc=input_nc, output_nc=output_nc, ngf=ngf, n_blocks=n_blocks)

    fwd = jax.jit(generator_forward)
    ref = jax.jit(ref_forward)

    out = jax.block_until_ready(fwd(x, params))
    expected = jax.block_until_ready(ref(x, params))

    assert out.shape == (B, output_nc, H, W), out.shape
    max_err = float(jnp.max(jnp.abs(out - expected)))
    assert jnp.allclose(out, expected, atol=1e-3, rtol=1e-3), max_err

    # TODO(synk): BatchNorm running-statistics tracking (inference-mode buffers) is not modeled;
    # forward() here uses training-mode batch statistics, matching a freshly-constructed module.
    print("KERNEL_OK")
</pallas_src>

<mosaic_0001>
module attributes {stable_mosaic.version = 11 : i64} {
  func.func @_gemm_kernel(%arg0: i32, %arg1: i32, %arg2: i32, %arg3: memref<256x128xf32, #tpu.memory_space<vmem>>, %arg4: memref<128x128xf32, #tpu.memory_space<vmem>>, %arg5: memref<1x128xf32, #tpu.memory_space<vmem>>, %arg6: memref<256x128xf32, #tpu.memory_space<vmem>>, %arg7: memref<256x128xf32, #tpu.memory_space<vmem>>) attributes {dimension_semantics = [#tpu.dimension_semantics<parallel>, #tpu.dimension_semantics<parallel>, #tpu.dimension_semantics<arbitrary>], iteration_bounds = array<i64: 2, 1, 2>, scalar_prefetch = 0 : i64, scratch_operands = 1 : i64, tpu.core_type = #tpu.core_type<tc>, window_params = [{transform_indices = @transform_0, window_bounds = array<i64: 256, 128>}, {transform_indices = @transform_1, window_bounds = array<i64: 128, 128>}, {transform_indices = @transform_2, window_bounds = array<i64: 1, 128>}, {transform_indices = @transform_3, window_bounds = array<i64: 256, 128>}]} {
    %c0_i32 = arith.constant 0 : i32
    %0 = arith.cmpi eq, %arg2, %c0_i32 : i32
    %1 = arith.extui %0 : i1 to i32
    %c0_i32_0 = arith.constant 0 : i32
    %2 = arith.cmpi ne, %1, %c0_i32_0 : i32
    scf.if %2 {
      %cst_9 = arith.constant 0.000000e+00 : f32
      %12 = vector.broadcast %cst_9 : f32 to vector<256x128xf32>
      %c0_10 = arith.constant 0 : index
      %c0_11 = arith.constant 0 : index
      %13 = vector.load %arg7[%c0_10, %c0_11] : memref<256x128xf32, #tpu.memory_space<vmem>>, vector<256x128xf32>
      tpu.vector_store %arg7[%c0_10, %c0_11], %12 {strides = array<i32>} : memref<256x128xf32, #tpu.memory_space<vmem>>, vector<256x128xf32>,
    } else {
    }
    %c0 = arith.constant 0 : index
    %c0_1 = arith.constant 0 : index
    %3 = vector.load %arg7[%c0, %c0_1] : memref<256x128xf32, #tpu.memory_space<vmem>>, vector<256x128xf32>
    %c0_2 = arith.constant 0 : index
    %c0_3 = arith.constant 0 : index
    %4 = vector.load %arg3[%c0_2, %c0_3] : memref<256x128xf32, #tpu.memory_space<vmem>>, vector<256x128xf32>
    %c0_4 = arith.constant 0 : index
    %c0_5 = arith.constant 0 : index
    %5 = vector.load %arg4[%c0_4, %c0_5] : memref<128x128xf32, #tpu.memory_space<vmem>>, vector<128x128xf32>
    %cst = arith.constant dense<0.000000e+00> : vector<256x128xf32>
    %6 = tpu.matmul %4, %5, %cst {dimension_numbers = #tpu.dot_dimension_numbers<[1], [0], [0], [1], [0, 0, 1, 1], [], []>} : vector<256x128xf32>, vector<128x128xf32>, vector<256x128xf32> -> vector<256x128xf32>
    %7 = arith.addf %3, %6 : vector<256x128xf32>
    %c0_6 = arith.constant 0 : index
    %c0_7 = arith.constant 0 : index
    %8 = vector.load %arg7[%c0_6, %c0_7] : memref<256x128xf32, #tpu.memory_space<vmem>>, vector<256x128xf32>
    tpu.vector_store %arg7[%c0_6, %c0_7], %7 {strides = array<i32>} : memref<256x128xf32, #tpu.memory_space<vmem>>, vector<256x128xf32>,
    %c1_i32 = arith.constant 1 : i32
    %9 = arith.cmpi eq, %arg2, %c1_i32 : i32
    %10 = arith.extui %9 : i1 to i32
    %c0_i32_8 = arith.constant 0 : i32
    %11 = arith.cmpi ne, %10, %c0_i32_8 : i32
    scf.if %11 {
      %c0_9 = arith.constant 0 : index
      %c0_10 = arith.constant 0 : index
      %12 = vector.load %arg7[%c0_9, %c0_10] : memref<256x128xf32, #tpu.memory_space<vmem>>, vector<256x128xf32>
      %c0_11 = arith.constant 0 : index
      %c0_12 = arith.constant 0 : index
      %13 = vector.load %arg5[%c0_11, %c0_12] : memref<1x128xf32, #tpu.memory_space<vmem>>, vector<1x128xf32>
      %14 = vector.broadcast %13 : vector<1x128xf32> to vector<256x128xf32>
      %15 = arith.addf %12, %14 : vector<256x128xf32>
      %c0_13 = arith.constant 0 : index
      %c0_14 = arith.constant 0 : index
      %16 = vector.load %arg6[%c0_13, %c0_14] : memref<256x128xf32, #tpu.memory_space<vmem>>, vector<256x128xf32>
      tpu.vector_store %arg6[%c0_13, %c0_14], %15 {strides = array<i32>} : memref<256x128xf32, #tpu.memory_space<vmem>>, vector<256x128xf32>,
    } else {
    }
    return
  }
  func.func @transform_0(%arg0: i32, %arg1: i32, %arg2: i32) -> (i32, i32) {
    %c0_i32 = arith.constant 0 : i32
    return %arg0, %arg2 : i32, i32
  }
  func.func @transform_1(%arg0: i32, %arg1: i32, %arg2: i32) -> (i32, i32) {
    %c0_i32 = arith.constant 0 : i32
    return %arg2, %arg1 : i32, i32
  }
  func.func @transform_2(%arg0: i32, %arg1: i32, %arg2: i32) -> (i32, i32) {
    %c0_i32 = arith.constant 0 : i32
    %c0_i32_0 = arith.constant 0 : i32
    return %c0_i32, %arg1 : i32, i32
  }
  func.func @transform_3(%arg0: i32, %arg1: i32, %arg2: i32) -> (i32, i32) {
    %c0_i32 = arith.constant 0 : i32
    return %arg0, %arg1 : i32, i32
  }
}

module attributes {stable_mosaic.version = 11 : i64} {
  func.func @_bn_act_kernel(%arg0: memref<512x8xf32, #tpu.memory_space<vmem>>, %arg1: memref<1x8xf32, #tpu.memory_space<vmem>>, %arg2: memref<1x8xf32, #tpu.memory_space<vmem>>, %arg3: memref<512x8xf32, #tpu.memory_space<vmem>>) attributes {dimension_semantics = [], scalar_prefetch = 0 : i64, scratch_operands = 0 : i64, tpu.core_type = #tpu.core_type<tc>} {
    %c0 = arith.constant 0 : index
    %c0_0 = arith.constant 0 : index
    %0 = vector.load %arg0[%c0, %c0_0] : memref<512x8xf32, #tpu.memory_space<vmem>>, vector<512x8xf32>
    %cst = arith.constant dense<0.000000e+00> : vector<8xf32>
    %1 = vector.multi_reduction <add>, %0, %cst [0] : vector<512x8xf32> to vector<8xf32>
    %2 = vector.shape_cast %1 : vector<8xf32> to vector<1x8xf32>
    %cst_1 = arith.constant 5.120000e+02 : f32
    %3 = vector.broadcast %cst_1 : f32 to vector<1x8xf32>
    %4 = arith.divf %2, %3 : vector<1x8xf32>
    %5 = vector.broadcast %4 : vector<1x8xf32> to vector<512x8xf32>
    %6 = arith.subf %0, %5 : vector<512x8xf32>
    %7 = arith.mulf %6, %6 : vector<512x8xf32>
    %cst_2 = arith.constant dense<0.000000e+00> : vector<8xf32>
    %8 = vector.multi_reduction <add>, %7, %cst_2 [0] : vector<512x8xf32> to vector<8xf32>
    %9 = vector.shape_cast %8 : vector<8xf32> to vector<1x8xf32>
    %cst_3 = arith.constant 5.120000e+02 : f32
    %10 = vector.broadcast %cst_3 : f32 to vector<1x8xf32>
    %11 = arith.divf %9, %10 : vector<1x8xf32>
    %12 = vector.broadcast %4 : vector<1x8xf32> to vector<512x8xf32>
    %13 = arith.subf %0, %12 : vector<512x8xf32>
    %cst_4 = arith.constant 9.99999974E-6 : f32
    %14 = vector.broadcast %cst_4 : f32 to vector<1x8xf32>
    %15 = arith.addf %11, %14 : vector<1x8xf32>
    %16 = math.rsqrt %15 : vector<1x8xf32>
    %17 = vector.broadcast %16 : vector<1x8xf32> to vector<512x8xf32>
    %18 = arith.mulf %13, %17 : vector<512x8xf32>
    %c0_5 = arith.constant 0 : index
    %c0_6 = arith.constant 0 : index
    %19 = vector.load %arg1[%c0_5, %c0_6] : memref<1x8xf32, #tpu.memory_space<vmem>>, vector<1x8xf32>
    %20 = vector.broadcast %19 : vector<1x8xf32> to vector<512x8xf32>
    %21 = arith.mulf %18, %20 : vector<512x8xf32>
    %c0_7 = arith.constant 0 : index
    %c0_8 = arith.constant 0 : index
    %22 = vector.load %arg2[%c0_7, %c0_8] : memref<1x8xf32, #tpu.memory_space<vmem>>, vector<1x8xf32>
    %23 = vector.broadcast %22 : vector<1x8xf32> to vector<512x8xf32>
    %24 = arith.addf %21, %23 : vector<512x8xf32>
    %cst_9 = arith.constant 0.000000e+00 : f32
    %25 = vector.broadcast %cst_9 : f32 to vector<512x8xf32>
    %26 = arith.maximumf %24, %25 : vector<512x8xf32>
    %c0_10 = arith.constant 0 : index
    %c0_11 = arith.constant 0 : index
    %27 = vector.load %arg3[%c0_10, %c0_11] : memref<512x8xf32, #tpu.memory_space<vmem>>, vector<512x8xf32>
    tpu.vector_store %arg3[%c0_10, %c0_11], %26 {strides = array<i32>} : memref<512x8xf32, #tpu.memory_space<vmem>>, vector<512x8xf32>,
    return
  }
}

module attributes {stable_mosaic.version = 11 : i64} {
  func.func @_gemm_kernel(%arg0: i32, %arg1: i32, %arg2: i32, %arg3: memref<128x128xf32, #tpu.memory_space<vmem>>, %arg4: memref<128x128xf32, #tpu.memory_space<vmem>>, %arg5: memref<1x128xf32, #tpu.memory_space<vmem>>, %arg6: memref<128x128xf32, #tpu.memory_space<vmem>>, %arg7: memref<128x128xf32, #tpu.memory_space<vmem>>) attributes {dimension_semantics = [#tpu.dimension_semantics<parallel>, #tpu.dimension_semantics<parallel>, #tpu.dimension_semantics<arbitrary>], iteration_bounds = array<i64: 1, 1, 1>, scalar_prefetch = 0 : i64, scratch_operands = 1 : i64, tpu.core_type = #tpu.core_type<tc>, window_params = [{transform_indices = @transform_0, window_bounds = array<i64: 128, 128>}, {transform_indices = @transform_1, window_bounds = array<i64: 128, 128>}, {transform_indices = @transform_2, window_bounds = array<i64: 1, 128>}, {transform_indices = @transform_3, window_bounds = array<i64: 128, 128>}]} {
    %c0_i32 = arith.constant 0 : i32
    %0 = arith.cmpi eq, %arg2, %c0_i32 : i32
    %1 = arith.extui %0 : i1 to i32
    %c0_i32_0 = arith.constant 0 : i32
    %2 = arith.cmpi ne, %1, %c0_i32_0 : i32
    scf.if %2 {
      %cst_10 = arith.constant 0.000000e+00 : f32
      %12 = vector.broadcast %cst_10 : f32 to vector<128x128xf32>
      %c0_11 = arith.constant 0 : index
      %c0_12 = arith.constant 0 : index
      %13 = vector.load %arg7[%c0_11, %c0_12] : memref<128x128xf32, #tpu.memory_space<vmem>>, vector<128x128xf32>
      tpu.vector_store %arg7[%c0_11, %c0_12], %12 {strides = array<i32>} : memref<128x128xf32, #tpu.memory_space<vmem>>, vector<128x128xf32>,
    } else {
    }
    %c0 = arith.constant 0 : index
    %c0_1 = arith.constant 0 : index
    %3 = vector.load %arg7[%c0, %c0_1] : memref<128x128xf32, #tpu.memory_space<vmem>>, vector<128x128xf32>
    %c0_2 = arith.constant 0 : index
    %c0_3 = arith.constant 0 : index
    %4 = vector.load %arg3[%c0_2, %c0_3] : memref<128x128xf32, #tpu.memory_space<vmem>>, vector<128x128xf32>
    %c0_4 = arith.constant 0 : index
    %c0_5 = arith.constant 0 : index
    %5 = vector.load %arg4[%c0_4, %c0_5] : memref<128x128xf32, #tpu.memory_space<vmem>>, vector<128x128xf32>
    %cst = arith.constant dense<0.000000e+00> : vector<128x128xf32>
    %6 = tpu.matmul %4, %5, %cst {dimension_numbers = #tpu.dot_dimension_numbers<[1], [0], [0], [1], [0, 0, 1, 1], [], []>} : vector<128x128xf32>, vector<128x128xf32>, vector<128x128xf32> -> vector<128x128xf32>
    %7 = arith.addf %3, %6 : vector<128x128xf32>
    %c0_6 = arith.constant 0 : index
    %c0_7 = arith.constant 0 : index
    %8 = vector.load %arg7[%c0_6, %c0_7] : memref<128x128xf32, #tpu.memory_space<vmem>>, vector<128x128xf32>
    tpu.vector_store %arg7[%c0_6, %c0_7], %7 {strides = array<i32>} : memref<128x128xf32, #tpu.memory_space<vmem>>, vector<128x128xf32>,
    %c0_i32_8 = arith.constant 0 : i32
    %9 = arith.cmpi eq, %arg2, %c0_i32_8 : i32
    %10 = arith.extui %9 : i1 to i32
    %c0_i32_9 = arith.constant 0 : i32
    %11 = arith.cmpi ne, %10, %c0_i32_9 : i32
    scf.if %11 {
      %c0_10 = arith.constant 0 : index
      %c0_11 = arith.constant 0 : index
      %12 = vector.load %arg7[%c0_10, %c0_11] : memref<128x128xf32, #tpu.memory_space<vmem>>, vector<128x128xf32>
      %c0_12 = arith.constant 0 : index
      %c0_13 = arith.constant 0 : index
      %13 = vector.load %arg5[%c0_12, %c0_13] : memref<1x128xf32, #tpu.memory_space<vmem>>, vector<1x128xf32>
      %14 = vector.broadcast %13 : vector<1x128xf32> to vector<128x128xf32>
      %15 = arith.addf %12, %14 : vector<128x128xf32>
      %c0_14 = arith.constant 0 : index
      %c0_15 = arith.constant 0 : index
      %16 = vector.load %arg6[%c0_14, %c0_15] : memref<128x128xf32, #tpu.memory_space<vmem>>, vector<128x128xf32>
      tpu.vector_store %arg6[%c0_14, %c0_15], %15 {strides = array<i32>} : memref<128x128xf32, #tpu.memory_space<vmem>>, vector<128x128xf32>,
    } else {
    }
    return
  }
  func.func @transform_0(%arg0: i32, %arg1: i32, %arg2: i32) -> (i32, i32) {
    %c0_i32 = arith.constant 0 : i32
    return %arg0, %arg2 : i32, i32
  }
  func.func @transform_1(%arg0: i32, %arg1: i32, %arg2: i32) -> (i32, i32) {
    %c0_i32 = arith.constant 0 : i32
    return %arg2, %arg1 : i32, i32
  }
  func.func @transform_2(%arg0: i32, %arg1: i32, %arg2: i32) -> (i32, i32) {
    %c0_i32 = arith.constant 0 : i32
    %c0_i32_0 = arith.constant 0 : i32
    return %c0_i32, %arg1 : i32, i32
  }
  func.func @transform_3(%arg0: i32, %arg1: i32, %arg2: i32) -> (i32, i32) {
    %c0_i32 = arith.constant 0 : i32
    return %arg0, %arg1 : i32, i32
  }
}

module attributes {stable_mosaic.version = 11 : i64} {
  func.func @_bn_act_kernel(%arg0: memref<128x16xf32, #tpu.memory_space<vmem>>, %arg1: memref<1x16xf32, #tpu.memory_space<vmem>>, %arg2: memref<1x16xf32, #tpu.memory_space<vmem>>, %arg3: memref<128x16xf32, #tpu.memory_space<vmem>>) attributes {dimension_semantics = [], scalar_prefetch = 0 : i64, scratch_operands = 0 : i64, tpu.core_type = #tpu.core_type<tc>} {
    %c0 = arith.constant 0 : index
    %c0_0 = arith.constant 0 : index
    %0 = vector.load %arg0[%c0, %c0_0] : memref<128x16xf32, #tpu.memory_space<vmem>>, vector<128x16xf32>
    %cst = arith.constant dense<0.000000e+00> : vector<16xf32>
    %1 = vector.multi_reduction <add>, %0, %cst [0] : vector<128x16xf32> to vector<16xf32>
    %2 = vector.shape_cast %1 : vector<16xf32> to vector<1x16xf32>
    %cst_1 = arith.constant 1.280000e+02 : f32
    %3 = vector.broadcast %cst_1 : f32 to vector<1x16xf32>
    %4 = arith.divf %2, %3 : vector<1x16xf32>
    %5 = vector.broadcast %4 : vector<1x16xf32> to vector<128x16xf32>
    %6 = arith.subf %0, %5 : vector<128x16xf32>
    %7 = arith.mulf %6, %6 : vector<128x16xf32>
    %cst_2 = arith.constant dense<0.000000e+00> : vector<16xf32>
    %8 = vector.multi_reduction <add>, %7, %cst_2 [0] : vector<128x16xf32> to vector<16xf32>
    %9 = vector.shape_cast %8 : vector<16xf32> to vector<1x16xf32>
    %cst_3 = arith.constant 1.280000e+02 : f32
    %10 = vector.broadcast %cst_3 : f32 to vector<1x16xf32>
    %11 = arith.divf %9, %10 : vector<1x16xf32>
    %12 = vector.broadcast %4 : vector<1x16xf32> to vector<128x16xf32>
    %13 = arith.subf %0, %12 : vector<128x16xf32>
    %cst_4 = arith.constant 9.99999974E-6 : f32
    %14 = vector.broadcast %cst_4 : f32 to vector<1x16xf32>
    %15 = arith.addf %11, %14 : vector<1x16xf32>
    %16 = math.rsqrt %15 : vector<1x16xf32>
    %17 = vector.broadcast %16 : vector<1x16xf32> to vector<128x16xf32>
    %18 = arith.mulf %13, %17 : vector<128x16xf32>
    %c0_5 = arith.constant 0 : index
    %c0_6 = arith.constant 0 : index
    %19 = vector.load %arg1[%c0_5, %c0_6] : memref<1x16xf32, #tpu.memory_space<vmem>>, vector<1x16xf32>
    %20 = vector.broadcast %19 : vector<1x16xf32> to vector<128x16xf32>
    %21 = arith.mulf %18, %20 : vector<128x16xf32>
    %c0_7 = arith.constant 0 : index
    %c0_8 = arith.constant 0 : index
    %22 = vector.load %arg2[%c0_7, %c0_8] : memref<1x16xf32, #tpu.memory_space<vmem>>, vector<1x16xf32>
    %23 = vector.broadcast %22 : vector<1x16xf32> to vector<128x16xf32>
    %24 = arith.addf %21, %23 : vector<128x16xf32>
    %cst_9 = arith.constant 0.000000e+00 : f32
    %25 = vector.broadcast %cst_9 : f32 to vector<128x16xf32>
    %26 = arith.maximumf %24, %25 : vector<128x16xf32>
    %c0_10 = arith.constant 0 : index
    %c0_11 = arith.constant 0 : index
    %27 = vector.load %arg3[%c0_10, %c0_11] : memref<128x16xf32, #tpu.memory_space<vmem>>, vector<128x16xf32>
    tpu.vector_store %arg3[%c0_10, %c0_11], %26 {strides = array<i32>} : memref<128x16xf32, #tpu.memory_space<vmem>>, vector<128x16xf32>,
    return
  }
}

module attributes {stable_mosaic.version = 11 : i64} {
  func.func @_gemm_kernel(%arg0: i32, %arg1: i32, %arg2: i32, %arg3: memref<32x128xf32, #tpu.memory_space<vmem>>, %arg4: memref<128x128xf32, #tpu.memory_space<vmem>>, %arg5: memref<1x128xf32, #tpu.memory_space<vmem>>, %arg6: memref<32x128xf32, #tpu.memory_space<vmem>>, %arg7: memref<32x128xf32, #tpu.memory_space<vmem>>) attributes {dimension_semantics = [#tpu.dimension_semantics<parallel>, #tpu.dimension_semantics<parallel>, #tpu.dimension_semantics<arbitrary>], iteration_bounds = array<i64: 1, 1, 2>, scalar_prefetch = 0 : i64, scratch_operands = 1 : i64, tpu.core_type = #tpu.core_type<tc>, window_params = [{transform_indices = @transform_0, window_bounds = array<i64: 32, 128>}, {transform_indices = @transform_1, window_bounds = array<i64: 128, 128>}, {transform_indices = @transform_2, window_bounds = array<i64: 1, 128>}, {transform_indices = @transform_3, window_bounds = array<i64: 32, 128>}]} {
    %c0_i32 = arith.constant 0 : i32
    %0 = arith.cmpi eq, %arg2, %c0_i32 : i32
    %1 = arith.extui %0 : i1 to i32
    %c0_i32_0 = arith.constant 0 : i32
    %2 = arith.cmpi ne, %1, %c0_i32_0 : i32
    scf.if %2 {
      %cst_9 = arith.constant 0.000000e+00 : f32
      %12 = vector.broadcast %cst_9 : f32 to vector<32x128xf32>
      %c0_10 = arith.constant 0 : index
      %c0_11 = arith.constant 0 : index
      %13 = vector.load %arg7[%c0_10, %c0_11] : memref<32x128xf32, #tpu.memory_space<vmem>>, vector<32x128xf32>
      tpu.vector_store %arg7[%c0_10, %c0_11], %12 {strides = array<i32>} : memref<32x128xf32, #tpu.memory_space<vmem>>, vector<32x128xf32>,
    } else {
    }
    %c0 = arith.constant 0 : index
    %c0_1 = arith.constant 0 : index
    %3 = vector.load %arg7[%c0, %c0_1] : memref<32x128xf32, #tpu.memory_space<vmem>>, vector<32x128xf32>
    %c0_2 = arith.constant 0 : index
    %c0_3 = arith.constant 0 : index
    %4 = vector.load %arg3[%c0_2, %c0_3] : memref<32x128xf32, #tpu.memory_space<vmem>>, vector<32x128xf32>
    %c0_4 = arith.constant 0 : index
    %c0_5 = arith.constant 0 : index
    %5 = vector.load %arg4[%c0_4, %c0_5] : memref<128x128xf32, #tpu.memory_space<vmem>>, vector<128x128xf32>
    %cst = arith.constant dense<0.000000e+00> : vector<32x128xf32>
    %6 = tpu.matmul %4, %5, %cst {dimension_numbers = #tpu.dot_dimension_numbers<[1], [0], [0], [1], [0, 0, 1, 1], [], []>} : vector<32x128xf32>, vector<128x128xf32>, vector<32x128xf32> -> vector<32x128xf32>
    %7 = arith.addf %3, %6 : vector<32x128xf32>
    %c0_6 = arith.constant 0 : index
    %c0_7 = arith.constant 0 : index
    %8 = vector.load %arg7[%c0_6, %c0_7] : memref<32x128xf32, #tpu.memory_space<vmem>>, vector<32x128xf32>
    tpu.vector_store %arg7[%c0_6, %c0_7], %7 {strides = array<i32>} : memref<32x128xf32, #tpu.memory_space<vmem>>, vector<32x128xf32>,
    %c1_i32 = arith.constant 1 : i32
    %9 = arith.cmpi eq, %arg2, %c1_i32 : i32
    %10 = arith.extui %9 : i1 to i32
    %c0_i32_8 = arith.constant 0 : i32
    %11 = arith.cmpi ne, %10, %c0_i32_8 : i32
    scf.if %11 {
      %c0_9 = arith.constant 0 : index
      %c0_10 = arith.constant 0 : index
      %12 = vector.load %arg7[%c0_9, %c0_10] : memref<32x128xf32, #tpu.memory_space<vmem>>, vector<32x128xf32>
      %c0_11 = arith.constant 0 : index
      %c0_12 = arith.constant 0 : index
      %13 = vector.load %arg5[%c0_11, %c0_12] : memref<1x128xf32, #tpu.memory_space<vmem>>, vector<1x128xf32>
      %14 = vector.broadcast %13 : vector<1x128xf32> to vector<32x128xf32>
      %15 = arith.addf %12, %14 : vector<32x128xf32>
      %c0_13 = arith.constant 0 : index
      %c0_14 = arith.constant 0 : index
      %16 = vector.load %arg6[%c0_13, %c0_14] : memref<32x128xf32, #tpu.memory_space<vmem>>, vector<32x128xf32>
      tpu.vector_store %arg6[%c0_13, %c0_14], %15 {strides = array<i32>} : memref<32x128xf32, #tpu.memory_space<vmem>>, vector<32x128xf32>,
    } else {
    }
    return
  }
  func.func @transform_0(%arg0: i32, %arg1: i32, %arg2: i32) -> (i32, i32) {
    %c0_i32 = arith.constant 0 : i32
    return %arg0, %arg2 : i32, i32
  }
  func.func @transform_1(%arg0: i32, %arg1: i32, %arg2: i32) -> (i32, i32) {
    %c0_i32 = arith.constant 0 : i32
    return %arg2, %arg1 : i32, i32
  }
  func.func @transform_2(%arg0: i32, %arg1: i32, %arg2: i32) -> (i32, i32) {
    %c0_i32 = arith.constant 0 : i32
    %c0_i32_0 = arith.constant 0 : i32
    return %c0_i32, %arg1 : i32, i32
  }
  func.func @transform_3(%arg0: i32, %arg1: i32, %arg2: i32) -> (i32, i32) {
    %c0_i32 = arith.constant 0 : i32
    return %arg0, %arg1 : i32, i32
  }
}

module attributes {stable_mosaic.version = 11 : i64} {
  func.func @_bn_act_kernel(%arg0: memref<32x32xf32, #tpu.memory_space<vmem>>, %arg1: memref<1x32xf32, #tpu.memory_space<vmem>>, %arg2: memref<1x32xf32, #tpu.memory_space<vmem>>, %arg3: memref<32x32xf32, #tpu.memory_space<vmem>>) attributes {dimension_semantics = [], scalar_prefetch = 0 : i64, scratch_operands = 0 : i64, tpu.core_type = #tpu.core_type<tc>} {
    %c0 = arith.constant 0 : index
    %c0_0 = arith.constant 0 : index
    %0 = vector.load %arg0[%c0, %c0_0] : memref<32x32xf32, #tpu.memory_space<vmem>>, vector<32x32xf32>
    %cst = arith.constant dense<0.000000e+00> : vector<32xf32>
    %1 = vector.multi_reduction <add>, %0, %cst [0] : vector<32x32xf32> to vector<32xf32>
    %2 = vector.shape_cast %1 : vector<32xf32> to vector<1x32xf32>
    %cst_1 = arith.constant 3.200000e+01 : f32
    %3 = vector.broadcast %cst_1 : f32 to vector<1x32xf32>
    %4 = arith.divf %2, %3 : vector<1x32xf32>
    %5 = vector.broadcast %4 : vector<1x32xf32> to vector<32x32xf32>
    %6 = arith.subf %0, %5 : vector<32x32xf32>
    %7 = arith.mulf %6, %6 : vector<32x32xf32>
    %cst_2 = arith.constant dense<0.000000e+00> : vector<32xf32>
    %8 = vector.multi_reduction <add>, %7, %cst_2 [0] : vector<32x32xf32> to vector<32xf32>
    %9 = vector.shape_cast %8 : vector<32xf32> to vector<1x32xf32>
    %cst_3 = arith.constant 3.200000e+01 : f32
    %10 = vector.broadcast %cst_3 : f32 to vector<1x32xf32>
    %11 = arith.divf %9, %10 : vector<1x32xf32>
    %12 = vector.broadcast %4 : vector<1x32xf32> to vector<32x32xf32>
    %13 = arith.subf %0, %12 : vector<32x32xf32>
    %cst_4 = arith.constant 9.99999974E-6 : f32
    %14 = vector.broadcast %cst_4 : f32 to vector<1x32xf32>
    %15 = arith.addf %11, %14 : vector<1x32xf32>
    %16 = math.rsqrt %15 : vector<1x32xf32>
    %17 = vector.broadcast %16 : vector<1x32xf32> to vector<32x32xf32>
    %18 = arith.mulf %13, %17 : vector<32x32xf32>
    %c0_5 = arith.constant 0 : index
    %c0_6 = arith.constant 0 : index
    %19 = vector.load %arg1[%c0_5, %c0_6] : memref<1x32xf32, #tpu.memory_space<vmem>>, vector<1x32xf32>
    %20 = vector.broadcast %19 : vector<1x32xf32> to vector<32x32xf32>
    %21 = arith.mulf %18, %20 : vector<32x32xf32>
    %c0_7 = arith.constant 0 : index
    %c0_8 = arith.constant 0 : index
    %22 = vector.load %arg2[%c0_7, %c0_8] : memref<1x32xf32, #tpu.memory_space<vmem>>, vector<1x32xf32>
    %23 = vector.broadcast %22 : vector<1x32xf32> to vector<32x32xf32>
    %24 = arith.addf %21, %23 : vector<32x32xf32>
    %cst_9 = arith.constant 0.000000e+00 : f32
    %25 = vector.broadcast %cst_9 : f32 to vector<32x32xf32>
    %26 = arith.maximumf %24, %25 : vector<32x32xf32>
    %c0_10 = arith.constant 0 : index
    %c0_11 = arith.constant 0 : index
    %27 = vector.load %arg3[%c0_10, %c0_11] : memref<32x32xf32, #tpu.memory_space<vmem>>, vector<32x32xf32>
    tpu.vector_store %arg3[%c0_10, %c0_11], %26 {strides = array<i32>} : memref<32x32xf32, #tpu.memory_space<vmem>>, vector<32x32xf32>,
    return
  }
}

module attributes {stable_mosaic.version = 11 : i64} {
  func.func @_bn_res_kernel(%arg0: memref<32x32xf32, #tpu.memory_space<vmem>>, %arg1: memref<1x32xf32, #tpu.memory_space<vmem>>, %arg2: memref<1x32xf32, #tpu.memory_space<vmem>>, %arg3: memref<32x32xf32, #tpu.memory_space<vmem>>, %arg4: memref<32x32xf32, #tpu.memory_space<vmem>>) attributes {dimension_semantics = [], scalar_prefetch = 0 : i64, scratch_operands = 0 : i64, tpu.core_type = #tpu.core_type<tc>} {
    %c0 = arith.constant 0 : index
    %c0_0 = arith.constant 0 : index
    %0 = vector.load %arg0[%c0, %c0_0] : memref<32x32xf32, #tpu.memory_space<vmem>>, vector<32x32xf32>
    %cst = arith.constant dense<0.000000e+00> : vector<32xf32>
    %1 = vector.multi_reduction <add>, %0, %cst [0] : vector<32x32xf32> to vector<32xf32>
    %2 = vector.shape_cast %1 : vector<32xf32> to vector<1x32xf32>
    %cst_1 = arith.constant 3.200000e+01 : f32
    %3 = vector.broadcast %cst_1 : f32 to vector<1x32xf32>
    %4 = arith.divf %2, %3 : vector<1x32xf32>
    %5 = vector.broadcast %4 : vector<1x32xf32> to vector<32x32xf32>
    %6 = arith.subf %0, %5 : vector<32x32xf32>
    %7 = arith.mulf %6, %6 : vector<32x32xf32>
    %cst_2 = arith.constant dense<0.000000e+00> : vector<32xf32>
    %8 = vector.multi_reduction <add>, %7, %cst_2 [0] : vector<32x32xf32> to vector<32xf32>
    %9 = vector.shape_cast %8 : vector<32xf32> to vector<1x32xf32>
    %cst_3 = arith.constant 3.200000e+01 : f32
    %10 = vector.broadcast %cst_3 : f32 to vector<1x32xf32>
    %11 = arith.divf %9, %10 : vector<1x32xf32>
    %12 = vector.broadcast %4 : vector<1x32xf32> to vector<32x32xf32>
    %13 = arith.subf %0, %12 : vector<32x32xf32>
    %cst_4 = arith.constant 9.99999974E-6 : f32
    %14 = vector.broadcast %cst_4 : f32 to vector<1x32xf32>
    %15 = arith.addf %11, %14 : vector<1x32xf32>
    %16 = math.rsqrt %15 : vector<1x32xf32>
    %17 = vector.broadcast %16 : vector<1x32xf32> to vector<32x32xf32>
    %18 = arith.mulf %13, %17 : vector<32x32xf32>
    %c0_5 = arith.constant 0 : index
    %c0_6 = arith.constant 0 : index
    %19 = vector.load %arg1[%c0_5, %c0_6] : memref<1x32xf32, #tpu.memory_space<vmem>>, vector<1x32xf32>
    %20 = vector.broadcast %19 : vector<1x32xf32> to vector<32x32xf32>
    %21 = arith.mulf %18, %20 : vector<32x32xf32>
    %c0_7 = arith.constant 0 : index
    %c0_8 = arith.constant 0 : index
    %22 = vector.load %arg2[%c0_7, %c0_8] : memref<1x32xf32, #tpu.memory_space<vmem>>, vector<1x32xf32>
    %23 = vector.broadcast %22 : vector<1x32xf32> to vector<32x32xf32>
    %24 = arith.addf %21, %23 : vector<32x32xf32>
    %c0_9 = arith.constant 0 : index
    %c0_10 = arith.constant 0 : index
    %25 = vector.load %arg3[%c0_9, %c0_10] : memref<32x32xf32, #tpu.memory_space<vmem>>, vector<32x32xf32>
    %26 = arith.addf %24, %25 : vector<32x32xf32>
    %c0_11 = arith.constant 0 : index
    %c0_12 = arith.constant 0 : index
    %27 = vector.load %arg4[%c0_11, %c0_12] : memref<32x32xf32, #tpu.memory_space<vmem>>, vector<32x32xf32>
    tpu.vector_store %arg4[%c0_11, %c0_12], %26 {strides = array<i32>} : memref<32x32xf32, #tpu.memory_space<vmem>>, vector<32x32xf32>,
    return
  }
}

module attributes {stable_mosaic.version = 11 : i64} {
  func.func @_gemm_kernel(%arg0: i32, %arg1: i32, %arg2: i32, %arg3: memref<32x128xf32, #tpu.memory_space<vmem>>, %arg4: memref<128x128xf32, #tpu.memory_space<vmem>>, %arg5: memref<1x128xf32, #tpu.memory_space<vmem>>, %arg6: memref<32x128xf32, #tpu.memory_space<vmem>>, %arg7: memref<32x128xf32, #tpu.memory_space<vmem>>) attributes {dimension_semantics = [#tpu.dimension_semantics<parallel>, #tpu.dimension_semantics<parallel>, #tpu.dimension_semantics<arbitrary>], iteration_bounds = array<i64: 1, 1, 3>, scalar_prefetch = 0 : i64, scratch_operands = 1 : i64, tpu.core_type = #tpu.core_type<tc>, window_params = [{transform_indices = @transform_0, window_bounds = array<i64: 32, 128>}, {transform_indices = @transform_1, window_bounds = array<i64: 128, 128>}, {transform_indices = @transform_2, window_bounds = array<i64: 1, 128>}, {transform_indices = @transform_3, window_bounds = array<i64: 32, 128>}]} {
    %c0_i32 = arith.constant 0 : i32
    %0 = arith.cmpi eq, %arg2, %c0_i32 : i32
    %1 = arith.extui %0 : i1 to i32
    %c0_i32_0 = arith.constant 0 : i32
    %2 = arith.cmpi ne, %1, %c0_i32_0 : i32
    scf.if %2 {
      %cst_9 = arith.constant 0.000000e+00 : f32
      %12 = vector.broadcast %cst_9 : f32 to vector<32x128xf32>
      %c0_10 = arith.constant 0 : index
      %c0_11 = arith.constant 0 : index
      %13 = vector.load %arg7[%c0_10, %c0_11] : memref<32x128xf32, #tpu.memory_space<vmem>>, vector<32x128xf32>
      tpu.vector_store %arg7[%c0_10, %c0_11], %12 {strides = array<i32>} : memref<32x128xf32, #tpu.memory_space<vmem>>, vector<32x128xf32>,
    } else {
    }
    %c0 = arith.constant 0 : index
    %c0_1 = arith.constant 0 : index
    %3 = vector.load %arg7[%c0, %c0_1] : memref<32x128xf32, #tpu.memory_space<vmem>>, vector<32x128xf32>
    %c0_2 = arith.constant 0 : index
    %c0_3 = arith.constant 0 : index
    %4 = vector.load %arg3[%c0_2, %c0_3] : memref<32x128xf32, #tpu.memory_space<vmem>>, vector<32x128xf32>
    %c0_4 = arith.constant 0 : index
    %c0_5 = arith.constant 0 : index
    %5 = vector.load %arg4[%c0_4, %c0_5] : memref<128x128xf32, #tpu.memory_space<vmem>>, vector<128x128xf32>
    %cst = arith.constant dense<0.000000e+00> : vector<32x128xf32>
    %6 = tpu.matmul %4, %5, %cst {dimension_numbers = #tpu.dot_dimension_numbers<[1], [0], [0], [1], [0, 0, 1, 1], [], []>} : vector<32x128xf32>, vector<128x128xf32>, vector<32x128xf32> -> vector<32x128xf32>
    %7 = arith.addf %3, %6 : vector<32x128xf32>
    %c0_6 = arith.constant 0 : index
    %c0_7 = arith.constant 0 : index
    %8 = vector.load %arg7[%c0_6, %c0_7] : memref<32x128xf32, #tpu.memory_space<vmem>>, vector<32x128xf32>
    tpu.vector_store %arg7[%c0_6, %c0_7], %7 {strides = array<i32>} : memref<32x128xf32, #tpu.memory_space<vmem>>, vector<32x128xf32>,
    %c2_i32 = arith.constant 2 : i32
    %9 = arith.cmpi eq, %arg2, %c2_i32 : i32
    %10 = arith.extui %9 : i1 to i32
    %c0_i32_8 = arith.constant 0 : i32
    %11 = arith.cmpi ne, %10, %c0_i32_8 : i32
    scf.if %11 {
      %c0_9 = arith.constant 0 : index
      %c0_10 = arith.constant 0 : index
      %12 = vector.load %arg7[%c0_9, %c0_10] : memref<32x128xf32, #tpu.memory_space<vmem>>, vector<32x128xf32>
      %c0_11 = arith.constant 0 : index
      %c0_12 = arith.constant 0 : index
      %13 = vector.load %arg5[%c0_11, %c0_12] : memref<1x128xf32, #tpu.memory_space<vmem>>, vector<1x128xf32>
      %14 = vector.broadcast %13 : vector<1x128xf32> to vector<32x128xf32>
      %15 = arith.addf %12, %14 : vector<32x128xf32>
      %c0_13 = arith.constant 0 : index
      %c0_14 = arith.constant 0 : index
      %16 = vector.load %arg6[%c0_13, %c0_14] : memref<32x128xf32, #tpu.memory_space<vmem>>, vector<32x128xf32>
      tpu.vector_store %arg6[%c0_13, %c0_14], %15 {strides = array<i32>} : memref<32x128xf32, #tpu.memory_space<vmem>>, vector<32x128xf32>,
    } else {
    }
    return
  }
  func.func @transform_0(%arg0: i32, %arg1: i32, %arg2: i32) -> (i32, i32) {
    %c0_i32 = arith.constant 0 : i32
    return %arg0, %arg2 : i32, i32
  }
  func.func @transform_1(%arg0: i32, %arg1: i32, %arg2: i32) -> (i32, i32) {
    %c0_i32 = arith.constant 0 : i32
    return %arg2, %arg1 : i32, i32
  }
  func.func @transform_2(%arg0: i32, %arg1: i32, %arg2: i32) -> (i32, i32) {
    %c0_i32 = arith.constant 0 : i32
    %c0_i32_0 = arith.constant 0 : i32
    return %c0_i32, %arg1 : i32, i32
  }
  func.func @transform_3(%arg0: i32, %arg1: i32, %arg2: i32) -> (i32, i32) {
    %c0_i32 = arith.constant 0 : i32
    return %arg0, %arg1 : i32, i32
  }
}

module attributes {stable_mosaic.version = 11 : i64} {
  func.func @_gemm_kernel(%arg0: i32, %arg1: i32, %arg2: i32, %arg3: memref<128x128xf32, #tpu.memory_space<vmem>>, %arg4: memref<128x128xf32, #tpu.memory_space<vmem>>, %arg5: memref<1x128xf32, #tpu.memory_space<vmem>>, %arg6: memref<128x128xf32, #tpu.memory_space<vmem>>, %arg7: memref<128x128xf32, #tpu.memory_space<vmem>>) attributes {dimension_semantics = [#tpu.dimension_semantics<parallel>, #tpu.dimension_semantics<parallel>, #tpu.dimension_semantics<arbitrary>], iteration_bounds = array<i64: 1, 1, 3>, scalar_prefetch = 0 : i64, scratch_operands = 1 : i64, tpu.core_type = #tpu.core_type<tc>, window_params = [{transform_indices = @transform_0, window_bounds = array<i64: 128, 128>}, {transform_indices = @transform_1, window_bounds = array<i64: 128, 128>}, {transform_indices = @transform_2, window_bounds = array<i64: 1, 128>}, {transform_indices = @transform_3, window_bounds = array<i64: 128, 128>}]} {
    %c0_i32 = arith.constant 0 : i32
    %0 = arith.cmpi eq, %arg2, %c0_i32 : i32
    %1 = arith.extui %0 : i1 to i32
    %c0_i32_0 = arith.constant 0 : i32
    %2 = arith.cmpi ne, %1, %c0_i32_0 : i32
    scf.if %2 {
      %cst_9 = arith.constant 0.000000e+00 : f32
      %12 = vector.broadcast %cst_9 : f32 to vector<128x128xf32>
      %c0_10 = arith.constant 0 : index
      %c0_11 = arith.constant 0 : index
      %13 = vector.load %arg7[%c0_10, %c0_11] : memref<128x128xf32, #tpu.memory_space<vmem>>, vector<128x128xf32>
      tpu.vector_store %arg7[%c0_10, %c0_11], %12 {strides = array<i32>} : memref<128x128xf32, #tpu.memory_space<vmem>>, vector<128x128xf32>,
    } else {
    }
    %c0 = arith.constant 0 : index
    %c0_1 = arith.constant 0 : index
    %3 = vector.load %arg7[%c0, %c0_1] : memref<128x128xf32, #tpu.memory_space<vmem>>, vector<128x128xf32>
    %c0_2 = arith.constant 0 : index
    %c0_3 = arith.constant 0 : index
    %4 = vector.load %arg3[%c0_2, %c0_3] : memref<128x128xf32, #tpu.memory_space<vmem>>, vector<128x128xf32>
    %c0_4 = arith.constant 0 : index
    %c0_5 = arith.constant 0 : index
    %5 = vector.load %arg4[%c0_4, %c0_5] : memref<128x128xf32, #tpu.memory_space<vmem>>, vector<128x128xf32>
    %cst = arith.constant dense<0.000000e+00> : vector<128x128xf32>
    %6 = tpu.matmul %4, %5, %cst {dimension_numbers = #tpu.dot_dimension_numbers<[1], [0], [0], [1], [0, 0, 1, 1], [], []>} : vector<128x128xf32>, vector<128x128xf32>, vector<128x128xf32> -> vector<128x128xf32>
    %7 = arith.addf %3, %6 : vector<128x128xf32>
    %c0_6 = arith.constant 0 : index
    %c0_7 = arith.constant 0 : index
    %8 = vector.load %arg7[%c0_6, %c0_7] : memref<128x128xf32, #tpu.memory_space<vmem>>, vector<128x128xf32>
    tpu.vector_store %arg7[%c0_6, %c0_7], %7 {strides = array<i32>} : memref<128x128xf32, #tpu.memory_space<vmem>>, vector<128x128xf32>,
    %c2_i32 = arith.constant 2 : i32
    %9 = arith.cmpi eq, %arg2, %c2_i32 : i32
    %10 = arith.extui %9 : i1 to i32
    %c0_i32_8 = arith.constant 0 : i32
    %11 = arith.cmpi ne, %10, %c0_i32_8 : i32
    scf.if %11 {
      %c0_9 = arith.constant 0 : index
      %c0_10 = arith.constant 0 : index
      %12 = vector.load %arg7[%c0_9, %c0_10] : memref<128x128xf32, #tpu.memory_space<vmem>>, vector<128x128xf32>
      %c0_11 = arith.constant 0 : index
      %c0_12 = arith.constant 0 : index
      %13 = vector.load %arg5[%c0_11, %c0_12] : memref<1x128xf32, #tpu.memory_space<vmem>>, vector<1x128xf32>
      %14 = vector.broadcast %13 : vector<1x128xf32> to vector<128x128xf32>
      %15 = arith.addf %12, %14 : vector<128x128xf32>
      %c0_13 = arith.constant 0 : index
      %c0_14 = arith.constant 0 : index
      %16 = vector.load %arg6[%c0_13, %c0_14] : memref<128x128xf32, #tpu.memory_space<vmem>>, vector<128x128xf32>
      tpu.vector_store %arg6[%c0_13, %c0_14], %15 {strides = array<i32>} : memref<128x128xf32, #tpu.memory_space<vmem>>, vector<128x128xf32>,
    } else {
    }
    return
  }
  func.func @transform_0(%arg0: i32, %arg1: i32, %arg2: i32) -> (i32, i32) {
    %c0_i32 = arith.constant 0 : i32
    return %arg0, %arg2 : i32, i32
  }
  func.func @transform_1(%arg0: i32, %arg1: i32, %arg2: i32) -> (i32, i32) {
    %c0_i32 = arith.constant 0 : i32
    return %arg2, %arg1 : i32, i32
  }
  func.func @transform_2(%arg0: i32, %arg1: i32, %arg2: i32) -> (i32, i32) {
    %c0_i32 = arith.constant 0 : i32
    %c0_i32_0 = arith.constant 0 : i32
    return %c0_i32, %arg1 : i32, i32
  }
  func.func @transform_3(%arg0: i32, %arg1: i32, %arg2: i32) -> (i32, i32) {
    %c0_i32 = arith.constant 0 : i32
    return %arg0, %arg1 : i32, i32
  }
}

module attributes {stable_mosaic.version = 11 : i64} {
  func.func @_gemm_kernel(%arg0: i32, %arg1: i32, %arg2: i32, %arg3: memref<256x128xf32, #tpu.memory_space<vmem>>, %arg4: memref<128x128xf32, #tpu.memory_space<vmem>>, %arg5: memref<1x128xf32, #tpu.memory_space<vmem>>, %arg6: memref<256x128xf32, #tpu.memory_space<vmem>>, %arg7: memref<256x128xf32, #tpu.memory_space<vmem>>) attributes {dimension_semantics = [#tpu.dimension_semantics<parallel>, #tpu.dimension_semantics<parallel>, #tpu.dimension_semantics<arbitrary>], iteration_bounds = array<i64: 2, 1, 4>, scalar_prefetch = 0 : i64, scratch_operands = 1 : i64, tpu.core_type = #tpu.core_type<tc>, window_params = [{transform_indices = @transform_0, window_bounds = array<i64: 256, 128>}, {transform_indices = @transform_1, window_bounds = array<i64: 128, 128>}, {transform_indices = @transform_2, window_bounds = array<i64: 1, 128>}, {transform_indices = @transform_3, window_bounds = array<i64: 256, 128>}]} {
    %c0_i32 = arith.constant 0 : i32
    %0 = arith.cmpi eq, %arg2, %c0_i32 : i32
    %1 = arith.extui %0 : i1 to i32
    %c0_i32_0 = arith.constant 0 : i32
    %2 = arith.cmpi ne, %1, %c0_i32_0 : i32
    scf.if %2 {
      %cst_9 = arith.constant 0.000000e+00 : f32
      %12 = vector.broadcast %cst_9 : f32 to vector<256x128xf32>
      %c0_10 = arith.constant 0 : index
      %c0_11 = arith.constant 0 : index
      %13 = vector.load %arg7[%c0_10, %c0_11] : memref<256x128xf32, #tpu.memory_space<vmem>>, vector<256x128xf32>
      tpu.vector_store %arg7[%c0_10, %c0_11], %12 {strides = array<i32>} : memref<256x128xf32, #tpu.memory_space<vmem>>, vector<256x128xf32>,
    } else {
    }
    %c0 = arith.constant 0 : index
    %c0_1 = arith.constant 0 : index
    %3 = vector.load %arg7[%c0, %c0_1] : memref<256x128xf32, #tpu.memory_space<vmem>>, vector<256x128xf32>
    %c0_2 = arith.constant 0 : index
    %c0_3 = arith.constant 0 : index
    %4 = vector.load %arg3[%c0_2, %c0_3] : memref<256x128xf32, #tpu.memory_space<vmem>>, vector<256x128xf32>
    %c0_4 = arith.constant 0 : index
    %c0_5 = arith.constant 0 : index
    %5 = vector.load %arg4[%c0_4, %c0_5] : memref<128x128xf32, #tpu.memory_space<vmem>>, vector<128x128xf32>
    %cst = arith.constant dense<0.000000e+00> : vector<256x128xf32>
    %6 = tpu.matmul %4, %5, %cst {dimension_numbers = #tpu.dot_dimension_numbers<[1], [0], [0], [1], [0, 0, 1, 1], [], []>} : vector<256x128xf32>, vector<128x128xf32>, vector<256x128xf32> -> vector<256x128xf32>
    %7 = arith.addf %3, %6 : vector<256x128xf32>
    %c0_6 = arith.constant 0 : index
    %c0_7 = arith.constant 0 : index
    %8 = vector.load %arg7[%c0_6, %c0_7] : memref<256x128xf32, #tpu.memory_space<vmem>>, vector<256x128xf32>
    tpu.vector_store %arg7[%c0_6, %c0_7], %7 {strides = array<i32>} : memref<256x128xf32, #tpu.memory_space<vmem>>, vector<256x128xf32>,
    %c3_i32 = arith.constant 3 : i32
    %9 = arith.cmpi eq, %arg2, %c3_i32 : i32
    %10 = arith.extui %9 : i1 to i32
    %c0_i32_8 = arith.constant 0 : i32
    %11 = arith.cmpi ne, %10, %c0_i32_8 : i32
    scf.if %11 {
      %c0_9 = arith.constant 0 : index
      %c0_10 = arith.constant 0 : index
      %12 = vector.load %arg7[%c0_9, %c0_10] : memref<256x128xf32, #tpu.memory_space<vmem>>, vector<256x128xf32>
      %c0_11 = arith.constant 0 : index
      %c0_12 = arith.constant 0 : index
      %13 = vector.load %arg5[%c0_11, %c0_12] : memref<1x128xf32, #tpu.memory_space<vmem>>, vector<1x128xf32>
      %14 = vector.broadcast %13 : vector<1x128xf32> to vector<256x128xf32>
      %15 = arith.addf %12, %14 : vector<256x128xf32>
      %16 = math.tanh %15 : vector<256x128xf32>
      %c0_13 = arith.constant 0 : index
      %c0_14 = arith.constant 0 : index
      %17 = vector.load %arg6[%c0_13, %c0_14] : memref<256x128xf32, #tpu.memory_space<vmem>>, vector<256x128xf32>
      tpu.vector_store %arg6[%c0_13, %c0_14], %16 {strides = array<i32>} : memref<256x128xf32, #tpu.memory_space<vmem>>, vector<256x128xf32>,
    } else {
    }
    return
  }
  func.func @transform_0(%arg0: i32, %arg1: i32, %arg2: i32) -> (i32, i32) {
    %c0_i32 = arith.constant 0 : i32
    return %arg0, %arg2 : i32, i32
  }
  func.func @transform_1(%arg0: i32, %arg1: i32, %arg2: i32) -> (i32, i32) {
    %c0_i32 = arith.constant 0 : i32
    return %arg2, %arg1 : i32, i32
  }
  func.func @transform_2(%arg0: i32, %arg1: i32, %arg2: i32) -> (i32, i32) {
    %c0_i32 = arith.constant 0 : i32
    %c0_i32_0 = arith.constant 0 : i32
    return %c0_i32, %arg1 : i32, i32
  }
  func.func @transform_3(%arg0: i32, %arg1: i32, %arg2: i32) -> (i32, i32) {
    %c0_i32 = arith.constant 0 : i32
    return %arg0, %arg1 : i32, i32
  }
}

</mosaic_0001>

<llo_original>
// kernel: generator_forward.20
$region0: #{generator_forward.20}
  #allocation0 [shape = 'u32[]', space=smem, size = 0x4, offset = 0x4, fixed_abs, tag = 'smem constant byte address 0x4 - core index']
  #allocation1 [shape = 'u32[72,128]{1,0:T(1,128)}', space=vmem, size = 0x9000, scoped, tag = 'internal scratch']
  %s0 = inlined_call_operand.vmem [shape: f32[512,8], index: 0, kind: input, shape index: {}]
  %s1 = inlined_call_operand.vmem [shape: f32[1,8], index: 1, kind: input, shape index: {}]
  %s2 = inlined_call_operand.vmem [shape: f32[1,8], index: 2, kind: input, shape index: {}]
  %s3 = inlined_call_operand.vmem [shape: f32[512,8], index: 3, kind: output, shape index: {}]
  %s4 = sld [smem:[#allocation0]]
  $region22: #{generator_forward.20} parent=0
    _
  %s6 = ssub.s32 1, %s4
  %s7 = scalar_select 0, %s6, %s4
  // Predicated region
  $region2: #{generator_forward.20} parent=0 // pred_check
    _
  $region3: #{generator_forward.20} parent=0 // pred_check_branch
    %9 = sbr.rel (0) target = $region5
  $region4: #{generator_forward.20} parent=0 // pred_region
    _
  $region5: #{generator_forward.20} parent=0 // pred_fallthru
    _
  // Predicated region
  $region6: #{generator_forward.20} parent=0 // pred_check
    _
  $region7: #{generator_forward.20} parent=0 // pred_check_branch
    %11 = sbr.rel (0) target = $region9
  $region8: #{generator_forward.20} parent=0 // pred_region
    _
  $region9: #{generator_forward.20} parent=0 // pred_fallthru
    _
  // Predicated region
  $region10: #{generator_forward.20} parent=0 // pred_check
    _
  $region11: #{generator_forward.20} parent=0 // pred_check_branch
    %13 = sbr.rel (0) target = $region13
  $region12: #{generator_forward.20} parent=0 // pred_region
    _
  $region13: #{generator_forward.20} parent=0 // pred_fallthru
    _
  %v14 = vld [vmem:[%s0] sm:$0xff]
  %v15 = vld [vmem:[%s0 + $0x8] sm:$0xff]
  %v16 = vld [vmem:[%s0 + $0x10] sm:$0xff]
  %v17 = vld [vmem:[%s0 + $0x18] sm:$0xff]
  %v18 = vld [vmem:[%s0 + $0x20] sm:$0xff]
  %v19 = vld [vmem:[%s0 + $0x28] sm:$0xff]
  %v20 = vld [vmem:[%s0 + $0x30] sm:$0xff]
  %v21 = vld [vmem:[%s0 + $0x38] sm:$0xff]
  %v22 = vld [vmem:[%s0 + $0x40] sm:$0xff]
  %v23 = vld [vmem:[%s0 + $0x48] sm:$0xff]
  %v24 = vld [vmem:[%s0 + $0x50] sm:$0xff]
  %v25 = vld [vmem:[%s0 + $0x58] sm:$0xff]
  %v26 = vld [vmem:[%s0 + $0x60] sm:$0xff]
  %v27 = vld [vmem:[%s0 + $0x68] sm:$0xff]
  %v28 = vld [vmem:[%s0 + $0x70] sm:$0xff]
  %v29 = vld [vmem:[%s0 + $0x78] sm:$0xff]
  %v30 = vld [vmem:[%s0 + $0x80] sm:$0xff]
  %v31 = vld [vmem:[%s0 + $0x88] sm:$0xff]
  %v32 = vld [vmem:[%s0 + $0x90] sm:$0xff]
  %v33 = vld [vmem:[%s0 + $0x98] sm:$0xff]
  %v34 = vld [vmem:[%s0 + $0xa0] sm:$0xff]
  %v35 = vld [vmem:[%s0 + $0xa8] sm:$0xff]
  %v36 = vld [vmem:[%s0 + $0xb0] sm:$0xff]
  %v37 = vld [vmem:[%s0 + $0xb8] sm:$0xff]
  %v38 = vld [vmem:[%s0 + $0xc0] sm:$0xff]
  %v39 = vld [vmem:[%s0 + $0xc8] sm:$0xff]
  %v40 = vld [vmem:[%s0 + $0xd0] sm:$0xff]
  %v41 = vld [vmem:[%s0 + $0xd8] sm:$0xff]
  %v42 = vld [vmem:[%s0 + $0xe0] sm:$0xff]
  %v43 = vld [vmem:[%s0 + $0xe8] sm:$0xff]
  %v44 = vld [vmem:[%s0 + $0xf0] sm:$0xff]
  %v45 = vld [vmem:[%s0 + $0xf8] sm:$0xff]
  %v46 = vld [vmem:[%s0 + $0x100] sm:$0xff]
  %v47 = vld [vmem:[%s0 + $0x108] sm:$0xff]
  %v48 = vld [vmem:[%s0 + $0x110] sm:$0xff]
  %v49 = vld [vmem:[%s0 + $0x118] sm:$0xff]
  %v50 = vld [vmem:[%s0 + $0x120] sm:$0xff]
  %v51 = vld [vmem:[%s0 + $0x128] sm:$0xff]
  %v52 = vld [vmem:[%s0 + $0x130] sm:$0xff]
  %v53 = vld [vmem:[%s0 + $0x138] sm:$0xff]
  %v54 = vld [vmem:[%s0 + $0x140] sm:$0xff]
  %v55 = vld [vmem:[%s0 + $0x148] sm:$0xff]
  %v56 = vld [vmem:[%s0 + $0x150] sm:$0xff]
  %v57 = vld [vmem:[%s0 + $0x158] sm:$0xff]
  %v58 = vld [vmem:[%s0 + $0x160] sm:$0xff]
  %v59 = vld [vmem:[%s0 + $0x168] sm:$0xff]
  %v60 = vld [vmem:[%s0 + $0x170] sm:$0xff]
  %v61 = vld [vmem:[%s0 + $0x178] sm:$0xff]
  %v62 = vld [vmem:[%s0 + $0x180] sm:$0xff]
  %v63 = vld [vmem:[%s0 + $0x188] sm:$0xff]
  %v64 = vld [vmem:[%s0 + $0x190] sm:$0xff]
  %v65 = vld [vmem:[%s0 + $0x198] sm:$0xff]
  %v66 = vld [vmem:[%s0 + $0x1a0] sm:$0xff]
  %v67 = vld [vmem:[%s0 + $0x1a8] sm:$0xff]
  %v68 = vld [vmem:[%s0 + $0x1b0] sm:$0xff]
  %v69 = vld [vmem:[%s0 + $0x1b8] sm:$0xff]
  %v70 = vld [vmem:[%s0 + $0x1c0] sm:$0xff]
  %v71 = vld [vmem:[%s0 + $0x1c8] sm:$0xff]
  %v72 = vld [vmem:[%s0 + $0x1d0] sm:$0xff]
  %v73 = vld [vmem:[%s0 + $0x1d8] sm:$0xff]
  %v74 = vld [vmem:[%s0 + $0x1e0] sm:$0xff]
  %v75 = vld [vmem:[%s0 + $0x1e8] sm:$0xff]
  %v76 = vld [vmem:[%s0 + $0x1f0] sm:$0xff]
  %v77 = vld [vmem:[%s0 + $0x1f8] sm:$0xff]
  %vm78 = vcmask 64512
  %v79 = vsel %vm78, %v14, 0.0
  %v80 = vsel %vm78, %v15, 0.0
  %v81 = vadd.f32 %v79, %v80
  %v82 = vsel %vm78, %v16, 0.0
  %v83 = vadd.f32 %v81, %v82
  %v84 = vsel %vm78, %v17, 0.0
  %v85 = vadd.f32 %v83, %v84
  %v86 = vsel %vm78, %v18, 0.0
  %v87 = vadd.f32 %v85, %v86
  %v88 = vsel %vm78, %v19, 0.0
  %v89 = vadd.f32 %v87, %v88
  %v90 = vsel %vm78, %v20, 0.0
  %v91 = vadd.f32 %v89, %v90
  %v92 = vsel %vm78, %v21, 0.0
  %v93 = vadd.f32 %v91, %v92
  %v94 = vsel %vm78, %v22, 0.0
  %v95 = vadd.f32 %v93, %v94
  %v96 = vsel %vm78, %v23, 0.0
  %v97 = vadd.f32 %v95, %v96
  %v98 = vsel %vm78, %v24, 0.0
  %v99 = vadd.f32 %v97, %v98
  %v100 = vsel %vm78, %v25, 0.0
  %v101 = vadd.f32 %v99, %v100
  %v102 = vsel %vm78, %v26, 0.0
  %v103 = vadd.f32 %v101, %v102
  %v104 = vsel %vm78, %v27, 0.0
  %v105 = vadd.f32 %v103, %v104
  %v106 = vsel %vm78, %v28, 0.0
  %v107 = vadd.f32 %v105, %v106
  %v108 = vsel %vm78, %v29, 0.0
  %v109 = vadd.f32 %v107, %v108
  %v110 = vsel %vm78, %v30, 0.0
  %v111 = vadd.f32 %v109, %v110
  %v112 = vsel %vm78, %v31, 0.0
  %v113 = vadd.f32 %v111, %v112
  %v114 = vsel %vm78, %v32, 0.0
  %v115 = vadd.f32 %v113, %v114
  %v116 = vsel %vm78, %v33, 0.0
  %v117 = vadd.f32 %v115, %v116
  %v118 = vsel %vm78, %v34, 0.0
  %v119 = vadd.f32 %v117, %v118
  %v120 = vsel %vm78, %v35, 0.0
  %v121 = vadd.f32 %v119, %v120
  %v122 = vsel %vm78, %v36, 0.0
  %v123 = vadd.f32 %v121, %v122
  %v124 = vsel %vm78, %v37, 0.0
  %v125 = vadd.f32 %v123, %v124
  %v126 = vsel %vm78, %v38, 0.0
  %v127 = vadd.f32 %v125, %v126
  %v128 = vsel %vm78, %v39, 0.0
  %v129 = vadd.f32 %v127, %v128
  %v130 = vsel %vm78, %v40, 0.0
  %v131 = vadd.f32 %v129, %v130
  %v132 = vsel %vm78, %v41, 0.0
  %v133 = vadd.f32 %v131, %v132
  %v134 = vsel %vm78, %v42, 0.0
  %v135 = vadd.f32 %v133, %v134
  %v136 = vsel %vm78, %v43, 0.0
  %v137 = vadd.f32 %v135, %v136
  %v138 = vsel %vm78, %v44, 0.0
  %v139 = vadd.f32 %v137, %v138
  %v140 = vsel %vm78, %v45, 0.0
  %v141 = vadd.f32 %v139, %v140
  %v142 = vsel %vm78, %v46, 0.0
  %v143 = vadd.f32 %v141, %v142
  %v144 = vsel %vm78, %v47, 0.0
  %v145 = vadd.f32 %v143, %v144
  %v146 = vsel %vm78, %v48, 0.0
  %v147 = vadd.f32 %v145, %v146
  %v148 = vsel %vm78, %v49, 0.0
  %v149 = vadd.f32 %v147, %v148
  %v150 = vsel %vm78, %v50, 0.0
  %v151 = vadd.f32 %v149, %v150
  %v152 = vsel %vm78, %v51, 0.0
  %v153 = vadd.f32 %v151, %v152
  %v154 = vsel %vm78, %v52, 0.0
  %v155 = vadd.f32 %v153, %v154
  %v156 = vsel %vm78, %v53, 0.0
  %v157 = vadd.f32 %v155, %v156
  %v158 = vsel %vm78, %v54, 0.0
  %v159 = vadd.f32 %v157, %v158
  %v160 = vsel %vm78, %v55, 0.0
  %v161 = vadd.f32 %v159, %v160
  %v162 = vsel %vm78, %v56, 0.0
  %v163 = vadd.f32 %v161, %v162
  %v164 = vsel %vm78, %v57, 0.0
  %v165 = vadd.f32 %v163, %v164
  %v166 = vsel %vm78, %v58, 0.0
  %v167 = vadd.f32 %v165, %v166
  %v168 = vsel %vm78, %v59, 0.0
  %v169 = vadd.f32 %v167, %v168
  %v170 = vsel %vm78, %v60, 0.0
  %v171 = vadd.f32 %v169, %v170
  %v172 = vsel %vm78, %v61, 0.0
  %v173 = vadd.f32 %v171, %v172
  %v174 = vsel %vm78, %v62, 0.0
  %v175 = vadd.f32 %v173, %v174
  %v176 = vsel %vm78, %v63, 0.0
  %v177 = vadd.f32 %v175, %v176
  %v178 = vsel %vm78, %v64, 0.0
  %v179 = vadd.f32 %v177, %v178
  %v180 = vsel %vm78, %v65, 0.0
  %v181 = vadd.f32 %v179, %v180
  %v182 = vsel %vm78, %v66, 0.0
  %v183 = vadd.f32 %v181, %v182
  %v184 = vsel %vm78, %v67, 0.0
  %v185 = vadd.f32 %v183, %v184
  %v186 = vsel %vm78, %v68, 0.0
  %v187 = vadd.f32 %v185, %v186
  %v188 = vsel %vm78, %v69, 0.0
  %v189 = vadd.f32 %v187, %v188
  %v190 = vsel %vm78, %v70, 0.0
  %v191 = vadd.f32 %v189, %v190
  %v192 = vsel %vm78, %v71, 0.0
  %v193 = vadd.f32 %v191, %v192
  %v194 = vsel %vm78, %v72, 0.0
  %v195 = vadd.f32 %v193, %v194
  %v196 = vsel %vm78, %v73, 0.0
  %v197 = vadd.f32 %v195, %v196
  %v198 = vsel %vm78, %v74, 0.0
  %v199 = vadd.f32 %v197, %v198
  %v200 = vsel %vm78, %v75, 0.0
  %v201 = vadd.f32 %v199, %v200
  %v202 = vsel %vm78, %v76, 0.0
  %v203 = vadd.f32 %v201, %v202
  %v204 = vsel %vm78, %v77, 0.0
  %v205 = vadd.f32 %v203, %v204
  %v206 = vrot.slane %v205, 4
  %v207 = vadd.f32 %v205, %v206
  %v208 = vrot.slane %v207, 2
  %v209 = vadd.f32 %v207, %v208
  %v210 = vrot.slane %v209, 1
  %v211 = vadd.f32 %v209, %v210
  %v212 = vrcp.pop 512.0
  %v213 = vmul.f32 512.0, %v212
  %v214 = vsub.f32 1.0, %v213
  %v215 = vmul.f32 %v212, %v214
  %v216 = vadd.f32 %v212, %v215
  %vm217 = vweird.f32 %v212
  %v218 = vsel %vm217, %v212, %v216
  %v219 = vmul.f32 %v211, %v218
  %v220 = vsub.f32 %v14, %v219
  %v221 = vsub.f32 %v15, %v219
  %v222 = vsub.f32 %v16, %v219
  %v223 = vsub.f32 %v17, %v219
  %v224 = vsub.f32 %v18, %v219
  %v225 = vsub.f32 %v19, %v219
  %v226 = vsub.f32 %v20, %v219
  %v227 = vsub.f32 %v21, %v219
  %v228 = vsub.f32 %v22, %v219
  %v229 = vsub.f32 %v23, %v219
  %v230 = vsub.f32 %v24, %v219
  %v231 = vsub.f32 %v25, %v219
  %v232 = vsub.f32 %v26, %v219
  %v233 = vsub.f32 %v27, %v219
  %v234 = vsub.f32 %v28, %v219
  %v235 = vsub.f32 %v29, %v219
  %v236 = vsub.f32 %v30, %v219
  %v237 = vsub.f32 %v31, %v219
  %v238 = vsub.f32 %v32, %v219
  %v239 = vsub.f32 %v33, %v219
  %v240 = vsub.f32 %v34, %v219
  %v241 = vsub.f32 %v35, %v219
  %v242 = vsub.f32 %v36, %v219
  %v243 = vsub.f32 %v37, %v219
  %v244 = vsub.f32 %v38, %v219
  %v245 = vsub.f32 %v39, %v219
  %v246 = vsub.f32 %v40, %v219
  %v247 = vsub.f32 %v41, %v219
  %v248 = vsub.f32 %v42, %v219
  %v249 = vsub.f32 %v43, %v219
  %v250 = vsub.f32 %v44, %v219
  %v251 = vsub.f32 %v45, %v219
  %v252 = vsub.f32 %v46, %v219
  %v253 = vsub.f32 %v47, %v219
  %v254 = vsub.f32 %v48, %v219
  %v255 = vsub.f32 %v49, %v219
  %v256 = vsub.f32 %v50, %v219
  %v257 = vsub.f32 %v51, %v219
  %v258 = vsub.f32 %v52, %v219
  %v259 = vsub.f32 %v53, %v219
  %v260 = vsub.f32 %v54, %v219
  %v261 = vsub.f32 %v55, %v219
  %v262 = vsub.f32 %v56, %v219
  %v263 = vsub.f32 %v57, %v219
  %v264 = vsub.f32 %v58, %v219
  %v265 = vsub.f32 %v59, %v219
  %v266 = vsub.f32 %v60, %v219
  %v267 = vsub.f32 %v61, %v219
  %v268 = vsub.f32 %v62, %v219
  %v269 = vsub.f32 %v63, %v219
  %v270 = vsub.f32 %v64, %v219
  %v271 = vsub.f32 %v65, %v219
  %v272 = vsub.f32 %v66, %v219
  %v273 = vsub.f32 %v67, %v219
  %v274 = vsub.f32 %v68, %v219
  %v275 = vsub.f32 %v69, %v219
  %v276 = vsub.f32 %v70, %v219
  %v277 = vsub.f32 %v71, %v219
  %v278 = vsub.f32 %v72, %v219
  %v279 = vsub.f32 %v73, %v219
  %v280 = vsub.f32 %v74, %v219
  %v281 = vsub.f32 %v75, %v219
  %v282 = vsub.f32 %v76, %v219
  %v283 = vsub.f32 %v77, %v219
  %v284 = vmul.f32 %v220, %v220
  %v285 = vmul.f32 %v221, %v221
  %v286 = vmul.f32 %v222, %v222
  %v287 = vmul.f32 %v223, %v223
  %v288 = vmul.f32 %v224, %v224
  %v289 = vmul.f32 %v225, %v225
  %v290 = vmul.f32 %v226, %v226
  %v291 = vmul.f32 %v227, %v227
  %v292 = vmul.f32 %v228, %v228
  %v293 = vmul.f32 %v229, %v229
  %v294 = vmul.f32 %v230, %v230
  %v295 = vmul.f32 %v231, %v231
  %v296 = vmul.f32 %v232, %v232
  %v297 = vmul.f32 %v233, %v233
  %v298 = vmul.f32 %v234, %v234
  %v299 = vmul.f32 %v235, %v235
  %v300 = vmul.f32 %v236, %v236
  %v301 = vmul.f32 %v237, %v237
  %v302 = vmul.f32 %v238, %v238
  %v303 = vmul.f32 %v239, %v239
  %v304 = vmul.f32 %v240, %v240
  %v305 = vmul.f32 %v241, %v241
  %v306 = vmul.f32 %v242, %v242
  %v307 = vmul.f32 %v243, %v243
  %v308 = vmul.f32 %v244, %v244
  %v309 = vmul.f32 %v245, %v245
  %v310 = vmul.f32 %v246, %v246
  %v311 = vmul.f32 %v247, %v247
  %v312 = vmul.f32 %v248, %v248
  %v313 = vmul.f32 %v249, %v249
  %v314 = vmul.f32 %v250, %v250
  %v315 = vmul.f32 %v251, %v251
  %v316 = vmul.f32 %v252, %v252
  %v317 = vmul.f32 %v253, %v253
  %v318 = vmul.f32 %v254, %v254
  %v319 = vmul.f32 %v255, %v255
  %v320 = vmul.f32 %v256, %v256
  %v321 = vmul.f32 %v257, %v257
  %v322 = vmul.f32 %v258, %v258
  %v323 = vmul.f32 %v259, %v259
  %v324 = vmul.f32 %v260, %v260
  %v325 = vmul.f32 %v261, %v261
  %v326 = vmul.f32 %v262, %v262
  %v327 = vmul.f32 %v263, %v263
  %v328 = vmul.f32 %v264, %v264
  %v329 = vmul.f32 %v265, %v265
  %v330 = vmul.f32 %v266, %v266
  %v331 = vmul.f32 %v267, %v267
  %v332 = vmul.f32 %v268, %v268
  %v333 = vmul.f32 %v269, %v269
  %v334 = vmul.f32 %v270, %v270
  %v335 = vmul.f32 %v271, %v271
  %v336 = vmul.f32 %v272, %v272
  %v337 = vmul.f32 %v273, %v273
  %v338 = vmul.f32 %v274, %v274
  %v339 = vmul.f32 %v275, %v275
  %v340 = vmul.f32 %v276, %v276
  %v341 = vmul.f32 %v277, %v277
  %v342 = vmul.f32 %v278, %v278
  %v343 = vmul.f32 %v279, %v279
  %v344 = vmul.f32 %v280, %v280
  %v345 = vmul.f32 %v281, %v281
  %v346 = vmul.f32 %v282, %v282
  %v347 = vmul.f32 %v283, %v283
  %v348 = vsel %vm78, %v284, 0.0
  %v349 = vsel %vm78, %v285, 0.0
  %v350 = vadd.f32 %v348, %v349
  %v351 = vsel %vm78, %v286, 0.0
  %v352 = vadd.f32 %v350, %v351
  %v353 = vsel %vm78, %v287, 0.0
  %v354 = vadd.f32 %v352, %v353
  %v355 = vsel %vm78, %v288, 0.0
  %v356 = vadd.f32 %v354, %v355
  %v357 = vsel %vm78, %v289, 0.0
  %v358 = vadd.f32 %v356, %v357
  %v359 = vsel %vm78, %v290, 0.0
  %v360 = vadd.f32 %v358, %v359
  %v361 = vsel %vm78, %v291, 0.0
  %v362 = vadd.f32 %v360, %v361
  %v363 = vsel %vm78, %v292, 0.0
  %v364 = vadd.f32 %v362, %v363
  %v365 = vsel %vm78, %v293, 0.0
  %v366 = vadd.f32 %v364, %v365
  %v367 = vsel %vm78, %v294, 0.0
  %v368 = vadd.f32 %v366, %v367
  %v369 = vsel %vm78, %v295, 0.0
  %v370 = vadd.f32 %v368, %v369
  %v371 = vsel %vm78, %v296, 0.0
  %v372 = vadd.f32 %v370, %v371
  %v373 = vsel %vm78, %v297, 0.0
  %v374 = vadd.f32 %v372, %v373
  %v375 = vsel %vm78, %v298, 0.0
  %v376 = vadd.f32 %v374, %v375
  %v377 = vsel %vm78, %v299, 0.0
  %v378 = vadd.f32 %v376, %v377
  %v379 = vsel %vm78, %v300, 0.0
  %v380 = vadd.f32 %v378, %v379
  %v381 = vsel %vm78, %v301, 0.0
  %v382 = vadd.f32 %v380, %v381
  %v383 = vsel %vm78, %v302, 0.0
  %v384 = vadd.f32 %v382, %v383
  %v385 = vsel %vm78, %v303, 0.0
  %v386 = vadd.f32 %v384, %v385
  %v387 = vsel %vm78, %v304, 0.0
  %v388 = vadd.f32 %v386, %v387
  %v389 = vsel %vm78, %v305, 0.0
  %v390 = vadd.f32 %v388, %v389
  %v391 = vsel %vm78, %v306, 0.0
  %v392 = vadd.f32 %v390, %v391
  %v393 = vsel %vm78, %v307, 0.0
  %v394 = vadd.f32 %v392, %v393
  %v395 = vsel %vm78, %v308, 0.0
  %v396 = vadd.f32 %v394, %v395
  %v397 = vsel %vm78, %v309, 0.0
  %v398 = vadd.f32 %v396, %v397
  %v399 = vsel %vm78, %v310, 0.0
  %v400 = vadd.f32 %v398, %v399
  %v401 = vsel %vm78, %v311, 0.0
  %v402 = vadd.f32 %v400, %v401
  %v403 = vsel %vm78, %v312, 0.0
  %v404 = vadd.f32 %v402, %v403
  %v405 = vsel %vm78, %v313, 0.0
  %v406 = vadd.f32 %v404, %v405
  %v407 = vsel %vm78, %v314, 0.0
  %v408 = vadd.f32 %v406, %v407
  %v409 = vsel %vm78, %v315, 0.0
  %v410 = vadd.f32 %v408, %v409
  %v411 = vsel %vm78, %v316, 0.0
  %v412 = vadd.f32 %v410, %v411
  %v413 = vsel %vm78, %v317, 0.0
  %v414 = vadd.f32 %v412, %v413
  %v415 = vsel %vm78, %v318, 0.0
  %v416 = vadd.f32 %v414, %v415
  %v417 = vsel %vm78, %v319, 0.0
  %v418 = vadd.f32 %v416, %v417
  %v419 = vsel %vm78, %v320, 0.0
  %v420 = vadd.f32 %v418, %v419
  %v421 = vsel %vm78, %v321, 0.0
  %v422 = vadd.f32 %v420, %v421
  %v423 = vsel %vm78, %v322, 0.0
  %v424 = vadd.f32 %v422, %v423
  %v425 = vsel %vm78, %v323, 0.0
  %v426 = vadd.f32 %v424, %v425
  %v427 = vsel %vm78, %v324, 0.0
  %v428 = vadd.f32 %v426, %v427
  %v429 = vsel %vm78, %v325, 0.0
  %v430 = vadd.f32 %v428, %v429
  %v431 = vsel %vm78, %v326, 0.0
  %v432 = vadd.f32 %v430, %v431
  %v433 = vsel %vm78, %v327, 0.0
  %v434 = vadd.f32 %v432, %v433
  %v435 = vsel %vm78, %v328, 0.0
  %v436 = vadd.f32 %v434, %v435
  %v437 = vsel %vm78, %v329, 0.0
  %v438 = vadd.f32 %v436, %v437
  %v439 = vsel %vm78, %v330, 0.0
  %v440 = vadd.f32 %v438, %v439
  %v441 = vsel %vm78, %v331, 0.0
  %v442 = vadd.f32 %v440, %v441
  %v443 = vsel %vm78, %v332, 0.0
  %v444 = vadd.f32 %v442, %v443
  %v445 = vsel %vm78, %v333, 0.0
  %v446 = vadd.f32 %v444, %v445
  %v447 = vsel %vm78, %v334, 0.0
  %v448 = vadd.f32 %v446, %v447
  %v449 = vsel %vm78, %v335, 0.0
  %v450 = vadd.f32 %v448, %v449
  %v451 = vsel %vm78, %v336, 0.0
  %v452 = vadd.f32 %v450, %v451
  %v453 = vsel %vm78, %v337, 0.0
  %v454 = vadd.f32 %v452, %v453
  %v455 = vsel %vm78, %v338, 0.0
  %v456 = vadd.f32 %v454, %v455
  %v457 = vsel %vm78, %v339, 0.0
  %v458 = vadd.f32 %v456, %v457
  %v459 = vsel %vm78, %v340, 0.0
  %v460 = vadd.f32 %v458, %v459
  %v461 = vsel %vm78, %v341, 0.0
  %v462 = vadd.f32 %v460, %v461
  %v463 = vsel %vm78, %v342, 0.0
  %v464 = vadd.f32 %v462, %v463
  %v465 = vsel %vm78, %v343, 0.0
  %v466 = vadd.f32 %v464, %v465
  %v467 = vsel %vm78, %v344, 0.0
  %v468 = vadd.f32 %v466, %v467
  %v469 = vsel %vm78, %v345, 0.0
  %v470 = vadd.f32 %v468, %v469
  %v471 = vsel %vm78, %v346, 0.0
  %v472 = vadd.f32 %v470, %v471
  %v473 = vsel %vm78, %v347, 0.0
  %v474 = vadd.f32 %v472, %v473
  %v475 = vrot.slane %v474, 4
  %v476 = vadd.f32 %v474, %v475
  %v477 = vrot.slane %v476, 2
  %v478 = vadd.f32 %v476, %v477
  %v479 = vrot.slane %v478, 1
  %v480 = vadd.f32 %v478, %v479
  %v481 = vmul.f32 %v480, %v218
  %v482 = vadd.f32 %v481, 1e-05
  %v483 = vrsqrt.pop %v482
  %v484 = vmul.f32 %v483, %v482
  %v485 = vmul.f32 %v484, %v483
  %v486 = vmul.f32 0.5, %v485
  %v487 = vsub.f32 1.5, %v486
  %v488 = vmul.f32 %v483, %v487
  %vm489 = vweird.f32 %v482
  %vm490 = vweird.f32 %v483
  %vm491 = vmor %vm489, %vm490
  %v492 = vsel %vm491, %v483, %v488
  %v493 = vmul.f32 %v220, %v492
  %v494 = vmul.f32 %v221, %v492
  %v495 = vmul.f32 %v222, %v492
  %v496 = vmul.f32 %v223, %v492
  %v497 = vmul.f32 %v224, %v492
  %v498 = vmul.f32 %v225, %v492
  %v499 = vmul.f32 %v226, %v492
  %v500 = vmul.f32 %v227, %v492
  %v501 = vmul.f32 %v228, %v492
  %v502 = vmul.f32 %v229, %v492
  %v503 = vmul.f32 %v230, %v492
  %v504 = vmul.f32 %v231, %v492
  %v505 = vmul.f32 %v232, %v492
  %v506 = vmul.f32 %v233, %v492
  %v507 = vmul.f32 %v234, %v492
  %v508 = vmul.f32 %v235, %v492
  %v509 = vmul.f32 %v236, %v492
  %v510 = vmul.f32 %v237, %v492
  %v511 = vmul.f32 %v238, %v492
  %v512 = vmul.f32 %v239, %v492
  %v513 = vmul.f32 %v240, %v492
  %v514 = vmul.f32 %v241, %v492
  %v515 = vmul.f32 %v242, %v492
  %v516 = vmul.f32 %v243, %v492
  %v517 = vmul.f32 %v244, %v492
  %v518 = vmul.f32 %v245, %v492
  %v519 = vmul.f32 %v246, %v492
  %v520 = vmul.f32 %v247, %v492
  %v521 = vmul.f32 %v248, %v492
  %v522 = vmul.f32 %v249, %v492
  %v523 = vmul.f32 %v250, %v492
  %v524 = vmul.f32 %v251, %v492
  %v525 = vmul.f32 %v252, %v492
  %v526 = vmul.f32 %v253, %v492
  %v527 = vmul.f32 %v254, %v492
  %v528 = vmul.f32 %v255, %v492
  %v529 = vmul.f32 %v256, %v492
  %v530 = vmul.f32 %v257, %v492
  %v531 = vmul.f32 %v258, %v492
  %v532 = vmul.f32 %v259, %v492
  %v533 = vmul.f32 %v260, %v492
  %v534 = vmul.f32 %v261, %v492
  %v535 = vmul.f32 %v262, %v492
  %v536 = vmul.f32 %v263, %v492
  %v537 = vmul.f32 %v264, %v492
  %v538 = vmul.f32 %v265, %v492
  %v539 = vmul.f32 %v266, %v492
  %v540 = vmul.f32 %v267, %v492
  %v541 = vmul.f32 %v268, %v492
  %v542 = vmul.f32 %v269, %v492
  %v543 = vmul.f32 %v270, %v492
  %v544 = vmul.f32 %v271, %v492
  %v545 = vmul.f32 %v272, %v492
  %v546 = vmul.f32 %v273, %v492
  %v547 = vmul.f32 %v274, %v492
  %v548 = vmul.f32 %v275, %v492
  %v549 = vmul.f32 %v276, %v492
  %v550 = vmul.f32 %v277, %v492
  %v551 = vmul.f32 %v278, %v492
  %v552 = vmul.f32 %v279, %v492
  %v553 = vmul.f32 %v280, %v492
  %v554 = vmul.f32 %v281, %v492
  %v555 = vmul.f32 %v282, %v492
  %v556 = vmul.f32 %v283, %v492
  %v557 = vld [vmem:[%s1] sm:$0x1]
  %v559 = vperm.slane %v557, 0
  %v561 = vmul.f32 %v493, %v559
  %v562 = vmul.f32 %v494, %v559
  %v563 = vmul.f32 %v495, %v559
  %v564 = vmul.f32 %v496, %v559
  %v565 = vmul.f32 %v497, %v559
  %v566 = vmul.f32 %v498, %v559
  %v567 = vmul.f32 %v499, %v559
  %v568 = vmul.f32 %v500, %v559
  %v569 = vmul.f32 %v501, %v559
  %v570 = vmul.f32 %v502, %v559
  %v571 = vmul.f32 %v503, %v559
  %v572 = vmul.f32 %v504, %v559
  %v573 = vmul.f32 %v505, %v559
  %v574 = vmul.f32 %v506, %v559
  %v575 = vmul.f32 %v507, %v559
  %v576 = vmul.f32 %v508, %v559
  %v577 = vmul.f32 %v509, %v559
  %v578 = vmul.f32 %v510, %v559
  %v579 = vmul.f32 %v511, %v559
  %v580 = vmul.f32 %v512, %v559
  %v581 = vmul.f32 %v513, %v559
  %v582 = vmul.f32 %v514, %v559
  %v583 = vmul.f32 %v515, %v559
  %v584 = vmul.f32 %v516, %v559
  %v585 = vmul.f32 %v517, %v559
  %v586 = vmul.f32 %v518, %v559
  %v587 = vmul.f32 %v519, %v559
  %v588 = vmul.f32 %v520, %v559
  %v589 = vmul.f32 %v521, %v559
  %v590 = vmul.f32 %v522, %v559
  %v591 = vmul.f32 %v523, %v559
  %v592 = vmul.f32 %v524, %v559
  %v593 = vmul.f32 %v525, %v559
  %v594 = vmul.f32 %v526, %v559
  %v595 = vmul.f32 %v527, %v559
  %v596 = vmul.f32 %v528, %v559
  %v597 = vmul.f32 %v529, %v559
  %v598 = vmul.f32 %v530, %v559
  %v599 = vmul.f32 %v531, %v559
  %v600 = vmul.f32 %v532, %v559
  %v601 = vmul.f32 %v533, %v559
  %v602 = vmul.f32 %v534, %v559
  %v603 = vmul.f32 %v535, %v559
  %v604 = vmul.f32 %v536, %v559
  %v605 = vmul.f32 %v537, %v559
  %v606 = vmul.f32 %v538, %v559
  %v607 = vmul.f32 %v539, %v559
  %v608 = vmul.f32 %v540, %v559
  %v609 = vmul.f32 %v541, %v559
  %v610 = vmul.f32 %v542, %v559
  %v611 = vmul.f32 %v543, %v559
  %v612 = vmul.f32 %v544, %v559
  %v613 = vmul.f32 %v545, %v559
  %v614 = vmul.f32 %v546, %v559
  %v615 = vmul.f32 %v547, %v559
  %v616 = vmul.f32 %v548, %v559
  %v617 = vmul.f32 %v549, %v559
  %v618 = vmul.f32 %v550, %v559
  %v619 = vmul.f32 %v551, %v559
  %v620 = vmul.f32 %v552, %v559
  %v621 = vmul.f32 %v553, %v559
  %v622 = vmul.f32 %v554, %v559
  %v623 = vmul.f32 %v555, %v559
  %v624 = vmul.f32 %v556, %v559
  %v625 = vld [vmem:[%s2] sm:$0x1]
  %v627 = vperm.slane %v625, 0
  %v629 = vadd.f32 %v561, %v627
  %v630 = vadd.f32 %v562, %v627
  %v631 = vadd.f32 %v563, %v627
  %v632 = vadd.f32 %v564, %v627
  %v633 = vadd.f32 %v565, %v627
  %v634 = vadd.f32 %v566, %v627
  %v635 = vadd.f32 %v567, %v627
  %v636 = vadd.f32 %v568, %v627
  %v637 = vadd.f32 %v569, %v627
  %v638 = vadd.f32 %v570, %v627
  %v639 = vadd.f32 %v571, %v627
  %v640 = vadd.f32 %v572, %v627
  %v641 = vadd.f32 %v573, %v627
  %v642 = vadd.f32 %v574, %v627
  %v643 = vadd.f32 %v575, %v627
  %v644 = vadd.f32 %v576, %v627
  %v645 = vadd.f32 %v577, %v627
  %v646 = vadd.f32 %v578, %v627
  %v647 = vadd.f32 %v579, %v627
  %v648 = vadd.f32 %v580, %v627
  %v649 = vadd.f32 %v581, %v627
  %v650 = vadd.f32 %v582, %v627
  %v651 = vadd.f32 %v583, %v627
  %v652 = vadd.f32 %v584, %v627
  %v653 = vadd.f32 %v585, %v627
  %v654 = vadd.f32 %v586, %v627
  %v655 = vadd.f32 %v587, %v627
  %v656 = vadd.f32 %v588, %v627
  %v657 = vadd.f32 %v589, %v627
  %v658 = vadd.f32 %v590, %v627
  %v659 = vadd.f32 %v591, %v627
  %v660 = vadd.f32 %v592, %v627
  %v661 = vadd.f32 %v593, %v627
  %v662 = vadd.f32 %v594, %v627
  %v663 = vadd.f32 %v595, %v627
  %v664 = vadd.f32 %v596, %v627
  %v665 = vadd.f32 %v597, %v627
  %v666 = vadd.f32 %v598, %v627
  %v667 = vadd.f32 %v599, %v627
  %v668 = vadd.f32 %v600, %v627
  %v669 = vadd.f32 %v601, %v627
  %v670 = vadd.f32 %v602, %v627
  %v671 = vadd.f32 %v603, %v627
  %v672 = vadd.f32 %v604, %v627
  %v673 = vadd.f32 %v605, %v627
  %v674 = vadd.f32 %v606, %v627
  %v675 = vadd.f32 %v607, %v627
  %v676 = vadd.f32 %v608, %v627
  %v677 = vadd.f32 %v609, %v627
  %v678 = vadd.f32 %v610, %v627
  %v679 = vadd.f32 %v611, %v627
  %v680 = vadd.f32 %v612, %v627
  %v681 = vadd.f32 %v613, %v627
  %v682 = vadd.f32 %v614, %v627
  %v683 = vadd.f32 %v615, %v627
  %v684 = vadd.f32 %v616, %v627
  %v685 = vadd.f32 %v617, %v627
  %v686 = vadd.f32 %v618, %v627
  %v687 = vadd.f32 %v619, %v627
  %v688 = vadd.f32 %v620, %v627
  %v689 = vadd.f32 %v621, %v627
  %v690 = vadd.f32 %v622, %v627
  %v691 = vadd.f32 %v623, %v627
  %v692 = vadd.f32 %v624, %v627
  %v693 = vmax.f32 %v629, 0.0
  %v694 = vmax.f32 %v630, 0.0
  %v695 = vmax.f32 %v631, 0.0
  %v696 = vmax.f32 %v632, 0.0
  %v697 = vmax.f32 %v633, 0.0
  %v698 = vmax.f32 %v634, 0.0
  %v699 = vmax.f32 %v635, 0.0
  %v700 = vmax.f32 %v636, 0.0
  %v701 = vmax.f32 %v637, 0.0
  %v702 = vmax.f32 %v638, 0.0
  %v703 = vmax.f32 %v639, 0.0
  %v704 = vmax.f32 %v640, 0.0
  %v705 = vmax.f32 %v641, 0.0
  %v706 = vmax.f32 %v642, 0.0
  %v707 = vmax.f32 %v643, 0.0
  %v708 = vmax.f32 %v644, 0.0
  %v709 = vmax.f32 %v645, 0.0
  %v710 = vmax.f32 %v646, 0.0
  %v711 = vmax.f32 %v647, 0.0
  %v712 = vmax.f32 %v648, 0.0
  %v713 = vmax.f32 %v649, 0.0
  %v714 = vmax.f32 %v650, 0.0
  %v715 = vmax.f32 %v651, 0.0
  %v716 = vmax.f32 %v652, 0.0
  %v717 = vmax.f32 %v653, 0.0
  %v718 = vmax.f32 %v654, 0.0
  %v719 = vmax.f32 %v655, 0.0
  %v720 = vmax.f32 %v656, 0.0
  %v721 = vmax.f32 %v657, 0.0
  %v722 = vmax.f32 %v658, 0.0
  %v723 = vmax.f32 %v659, 0.0
  %v724 = vmax.f32 %v660, 0.0
  %v725 = vmax.f32 %v661, 0.0
  %v726 = vmax.f32 %v662, 0.0
  %v727 = vmax.f32 %v663, 0.0
  %v728 = vmax.f32 %v664, 0.0
  %v729 = vmax.f32 %v665, 0.0
  %v730 = vmax.f32 %v666, 0.0
  %v731 = vmax.f32 %v667, 0.0
  %v732 = vmax.f32 %v668, 0.0
  %v733 = vmax.f32 %v669, 0.0
  %v734 = vmax.f32 %v670, 0.0
  %v735 = vmax.f32 %v671, 0.0
  %v736 = vmax.f32 %v672, 0.0
  %v737 = vmax.f32 %v673, 0.0
  %v738 = vmax.f32 %v674, 0.0
  %v739 = vmax.f32 %v675, 0.0
  %v740 = vmax.f32 %v676, 0.0
  %v741 = vmax.f32 %v677, 0.0
  %v742 = vmax.f32 %v678, 0.0
  %v743 = vmax.f32 %v679, 0.0
  %v744 = vmax.f32 %v680, 0.0
  %v745 = vmax.f32 %v681, 0.0
  %v746 = vmax.f32 %v682, 0.0
  %v747 = vmax.f32 %v683, 0.0
  %v748 = vmax.f32 %v684, 0.0
  %v749 = vmax.f32 %v685, 0.0
  %v750 = vmax.f32 %v686, 0.0
  %v751 = vmax.f32 %v687, 0.0
  %v752 = vmax.f32 %v688, 0.0
  %v753 = vmax.f32 %v689, 0.0
  %v754 = vmax.f32 %v690, 0.0
  %v755 = vmax.f32 %v691, 0.0
  %v756 = vmax.f32 %v692, 0.0
  %757 = vst.msk [vmem:[%s3] sm:$0xff] %vm78, %v693
  %758 = vst.msk [vmem:[%s3 + $0x8] sm:$0xff] %vm78, %v694
  %759 = vst.msk [vmem:[%s3 + $0x10] sm:$0xff] %vm78, %v695
  %760 = vst.msk [vmem:[%s3 + $0x18] sm:$0xff] %vm78, %v696
  %761 = vst.msk [vmem:[%s3 + $0x20] sm:$0xff] %vm78, %v697
  %762 = vst.msk [vmem:[%s3 + $0x28] sm:$0xff] %vm78, %v698
  %763 = vst.msk [vmem:[%s3 + $0x30] sm:$0xff] %vm78, %v699
  %764 = vst.msk [vmem:[%s3 + $0x38] sm:$0xff] %vm78, %v700
  %765 = vst.msk [vmem:[%s3 + $0x40] sm:$0xff] %vm78, %v701
  %766 = vst.msk [vmem:[%s3 + $0x48] sm:$0xff] %vm78, %v702
  %767 = vst.msk [vmem:[%s3 + $0x50] sm:$0xff] %vm78, %v703
  %768 = vst.msk [vmem:[%s3 + $0x58] sm:$0xff] %vm78, %v704
  %769 = vst.msk [vmem:[%s3 + $0x60] sm:$0xff] %vm78, %v705
  %770 = vst.msk [vmem:[%s3 + $0x68] sm:$0xff] %vm78, %v706
  %771 = vst.msk [vmem:[%s3 + $0x70] sm:$0xff] %vm78, %v707
  %772 = vst.msk [vmem:[%s3 + $0x78] sm:$0xff] %vm78, %v708
  %773 = vst.msk [vmem:[%s3 + $0x80] sm:$0xff] %vm78, %v709
  %774 = vst.msk [vmem:[%s3 + $0x88] sm:$0xff] %vm78, %v710
  %775 = vst.msk [vmem:[%s3 + $0x90] sm:$0xff] %vm78, %v711
  %776 = vst.msk [vmem:[%s3 + $0x98] sm:$0xff] %vm78, %v712
  %777 = vst.msk [vmem:[%s3 + $0xa0] sm:$0xff] %vm78, %v713
  %778 = vst.msk [vmem:[%s3 + $0xa8] sm:$0xff] %vm78, %v714
  %779 = vst.msk [vmem:[%s3 + $0xb0] sm:$0xff] %vm78, %v715
  %780 = vst.msk [vmem:[%s3 + $0xb8] sm:$0xff] %vm78, %v716
  %781 = vst.msk [vmem:[%s3 + $0xc0] sm:$0xff] %vm78, %v717
  %782 = vst.msk [vmem:[%s3 + $0xc8] sm:$0xff] %vm78, %v718
  %783 = vst.msk [vmem:[%s3 + $0xd0] sm:$0xff] %vm78, %v719
  %784 = vst.msk [vmem:[%s3 + $0xd8] sm:$0xff] %vm78, %v720
  %785 = vst.msk [vmem:[%s3 + $0xe0] sm:$0xff] %vm78, %v721
  %786 = vst.msk [vmem:[%s3 + $0xe8] sm:$0xff] %vm78, %v722
  %787 = vst.msk [vmem:[%s3 + $0xf0] sm:$0xff] %vm78, %v723
  %788 = vst.msk [vmem:[%s3 + $0xf8] sm:$0xff] %vm78, %v724
  %789 = vst.msk [vmem:[%s3 + $0x100] sm:$0xff] %vm78, %v725
  %790 = vst.msk [vmem:[%s3 + $0x108] sm:$0xff] %vm78, %v726
  %791 = vst.msk [vmem:[%s3 + $0x110] sm:$0xff] %vm78, %v727
  %792 = vst.msk [vmem:[%s3 + $0x118] sm:$0xff] %vm78, %v728
  %793 = vst.msk [vmem:[%s3 + $0x120] sm:$0xff] %vm78, %v729
  %794 = vst.msk [vmem:[%s3 + $0x128] sm:$0xff] %vm78, %v730
  %795 = vst.msk [vmem:[%s3 + $0x130] sm:$0xff] %vm78, %v731
  %796 = vst.msk [vmem:[%s3 + $0x138] sm:$0xff] %vm78, %v732
  %797 = vst.msk [vmem:[%s3 + $0x140] sm:$0xff] %vm78, %v733
  %798 = vst.msk [vmem:[%s3 + $0x148] sm:$0xff] %vm78, %v734
  %799 = vst.msk [vmem:[%s3 + $0x150] sm:$0xff] %vm78, %v735
  %800 = vst.msk [vmem:[%s3 + $0x158] sm:$0xff] %vm78, %v736
  %801 = vst.msk [vmem:[%s3 + $0x160] sm:$0xff] %vm78, %v737
  %802 = vst.msk [vmem:[%s3 + $0x168] sm:$0xff] %vm78, %v738
  %803 = vst.msk [vmem:[%s3 + $0x170] sm:$0xff] %vm78, %v739
  %804 = vst.msk [vmem:[%s3 + $0x178] sm:$0xff] %vm78, %v740
  %805 = vst.msk [vmem:[%s3 + $0x180] sm:$0xff] %vm78, %v741
  %806 = vst.msk [vmem:[%s3 + $0x188] sm:$0xff] %vm78, %v742
  %807 = vst.msk [vmem:[%s3 + $0x190] sm:$0xff] %vm78, %v743
  %808 = vst.msk [vmem:[%s3 + $0x198] sm:$0xff] %vm78, %v744
  %809 = vst.msk [vmem:[%s3 + $0x1a0] sm:$0xff] %vm78, %v745
  %810 = vst.msk [vmem:[%s3 + $0x1a8] sm:$0xff] %vm78, %v746
  %811 = vst.msk [vmem:[%s3 + $0x1b0] sm:$0xff] %vm78, %v747
  %812 = vst.msk [vmem:[%s3 + $0x1b8] sm:$0xff] %vm78, %v748
  %813 = vst.msk [vmem:[%s3 + $0x1c0] sm:$0xff] %vm78, %v749
  %814 = vst.msk [vmem:[%s3 + $0x1c8] sm:$0xff] %vm78, %v750
  %815 = vst.msk [vmem:[%s3 + $0x1d0] sm:$0xff] %vm78, %v751
  %816 = vst.msk [vmem:[%s3 + $0x1d8] sm:$0xff] %vm78, %v752
  %817 = vst.msk [vmem:[%s3 + $0x1e0] sm:$0xff] %vm78, %v753
  %818 = vst.msk [vmem:[%s3 + $0x1e8] sm:$0xff] %vm78, %v754
  %819 = vst.msk [vmem:[%s3 + $0x1f0] sm:$0xff] %vm78, %v755
  %820 = vst.msk [vmem:[%s3 + $0x1f8] sm:$0xff] %vm78, %v756
  // Predicated region
  $region14: #{generator_forward.20} parent=0 // pred_check
    _
  $region15: #{generator_forward.20} parent=0 // pred_check_branch
    %822 = sbr.rel (0) target = $region17
  $region16: #{generator_forward.20} parent=0 // pred_region
    _
  $region17: #{generator_forward.20} parent=0 // pred_fallthru
    _
  // Predicated region
  $region18: #{generator_forward.20} parent=0 // pred_check
    _
  $region19: #{generator_forward.20} parent=0 // pred_check_branch
    %824 = sbr.rel (0) target = $region21
  $region20: #{generator_forward.20} parent=0 // pred_region
    _
  $region21: #{generator_forward.20} parent=0 // pred_fallthru
    _

// kernel: generator_forward.19
$region0: #{generator_forward.19}
  #allocation0 [shape = 'u32[]', space=smem, size = 0x4, offset = 0x4, fixed_abs, tag = 'smem constant byte address 0x4 - core index']
  #allocation1 [shape = 'u32[72,128]{1,0:T(1,128)}', space=vmem, size = 0x9000, scoped, tag = 'internal scratch']
  #allocation2 [shape = 'f32[256,128]{1,0:T(8,128)}', space=vmem, size = 0x20000, scoped, tag = 'scratch operand']
  %s0 = inlined_call_operand.vmem [shape: f32[512,256], index: 0, kind: input, shape index: {}]
  %s1 = inlined_call_operand.vmem [shape: f32[256,128], index: 1, kind: input, shape index: {}]
  %s2 = inlined_call_operand.vmem [shape: f32[1,128], index: 2, kind: input, shape index: {}]
  %s3 = inlined_call_operand.vmem [shape: f32[512,128], index: 3, kind: output, shape index: {}]
  %s4 = sld [smem:[#allocation0]]
  $region91: #{generator_forward.19} parent=0
    _
  %s6 = ssub.s32 1, %s4
  %s7 = scalar_select 0, %s6, %s4
  $region1: #{generator_forward.19} parent=0
    #allocation3 [shape = 'u8[262144]{0}', space=vmem, size = 0x40000, scoped, tag = 'input window, operand 0']
    loop: start=0, step=1, limit=6
    $region2: #{generator_forward.19} parent=1 // loop_pre_header
      _
    $region3: #{generator_forward.19} parent=1 // loop_header
      %s9 = sphi 0, %s13
      %p10 = scmp.ge.s32.totalorder %s9, 6
      %s16 = sphi 0, %s35
      %s17 = sphi 0, %s31
      %s18 = sphi 0, %s27
      %s19 = sphi 0, %s16
      %s20 = sphi 0, %s17
      %s21 = sphi 0, %s18
      %s22 = sphi 0, %s19
      %s23 = sphi 0, %s20
      %s24 = sphi 0, %s21
      %s40 = sphi 0, %s42
      %s43 = sphi 0, %s40
      %s44 = sphi 0, %s43
      %s60 = sphi 0, %s44
      %s68 = sphi 0, %s70
      %s71 = sphi 0, %s68
      %s72 = sphi 0, %s71
      %s88 = sphi 0, %s72
      %s94 = sphi 0, %s96
      %s97 = sphi 0, %s94
      %s98 = sphi 0, %s97
      %s114 = sphi 0, %s98
      %s122 = sphi 0, %s124
      %s125 = sphi 0, %s122
      %s126 = sphi 0, %s125
      %s142 = sphi 0, %s126
    $region4: #{generator_forward.19} parent=1 // loop_header_branch
      %12 = sbr.rel (%p10) target = $region8
    $region5: #{generator_forward.19} parent=1 // loop_body
      %s14 = ssub.s32 %s9, 1
      %s15 = ssub.s32 %s9, 2
      %s25 = sadd.s32 1, %s18
      %p26 = scmp.ge.s32.totalorder %s25, 2
      %s27 = scalar_select %p26, 0, %s25
      %s28 = sadd.s32 1, %s17
      %s29 = scalar_select %p26, %s28, %s17
      %p30 = scmp.ge.s32.totalorder %s29, 1
      %s31 = scalar_select %p30, 0, %s29
      %s32 = sadd.s32 1, %s16
      %s33 = scalar_select %p30, %s32, %s16
      %p34 = scmp.ge.s32.totalorder %s33, 2
      %s35 = scalar_select %p34, 0, %s33
      %s36 = ssub.s32 %s16, %s35
      %s37 = ssub.s32 %s18, %s27
      %s38 = sor.u32 %s36, %s37
      %p39 = scmp.eq.s32.totalorder %s38, 0
      %s41 = sadd.s32 %s40, 1
      %s42 = scalar_select %p39, %s40, %s41
      %p45 = pneg %p39
      %p46 = scmp.eq.s32.totalorder %s9, 3
      %p47 = por %p45, %p46
      %p48 = scmp.ne.s32.totalorder %s40, %s43
      %p49 = scmp.eq.s32.totalorder %s9, 0
      %p50 = por %p48, %p49
      %p51 = scmp.ne.s32.totalorder %s40, %s43
      %p52 = scmp.eq.s32.totalorder %s14, 3
      %p53 = por %p51, %p52
      %p54 = scmp.ne.s32.totalorder %s43, %s44
      %p55 = scmp.eq.s32.totalorder %s14, 0
      %p56 = por %p54, %p55
      %p57 = scmp.ne.s32.totalorder %s43, %s44
      %p58 = scmp.eq.s32.totalorder %s15, 3
      %p59 = por %p57, %p58
      %p61 = scmp.ne.s32.totalorder %s44, %s60
      %p62 = scmp.eq.s32.totalorder %s15, 0
      %p63 = por %p61, %p62
      %s64 = ssub.s32 %s18, %s27
      %s65 = ssub.s32 %s17, %s31
      %s66 = sor.u32 %s64, %s65
      %p67 = scmp.eq.s32.totalorder %s66, 0
      %s69 = sadd.s32 %s68, 1
      %s70 = scalar_select %p67, %s68, %s69
      %p73 = pneg %p67
      %p74 = scmp.eq.s32.totalorder %s9, 3
      %p75 = por %p73, %p74
      %p76 = scmp.ne.s32.totalorder %s68, %s71
      %p77 = scmp.eq.s32.totalorder %s9, 0
      %p78 = por %p76, %p77
      %p79 = scmp.ne.s32.totalorder %s68, %s71
      %p80 = scmp.eq.s32.totalorder %s14, 3
      %p81 = por %p79, %p80
      %p82 = scmp.ne.s32.totalorder %s71, %s72
      %p83 = scmp.eq.s32.totalorder %s14, 0
      %p84 = por %p82, %p83
      %p85 = scmp.ne.s32.totalorder %s71, %s72
      %p86 = scmp.eq.s32.totalorder %s15, 3
      %p87 = por %p85, %p86
      %p89 = scmp.ne.s32.totalorder %s72, %s88
      %p90 = scmp.eq.s32.totalorder %s15, 0
      %p91 = por %p89, %p90
      %s92 = ssub.s32 %s17, %s31
      %p93 = scmp.eq.s32.totalorder %s92, 0
      %s95 = sadd.s32 %s94, 1
      %s96 = scalar_select %p93, %s94, %s95
      %p99 = pneg %p93
      %p100 = scmp.eq.s32.totalorder %s9, 3
      %p101 = por %p99, %p100
      %p102 = scmp.ne.s32.totalorder %s94, %s97
      %p103 = scmp.eq.s32.totalorder %s9, 0
      %p104 = por %p102, %p103
      %p105 = scmp.ne.s32.totalorder %s94, %s97
      %p106 = scmp.eq.s32.totalorder %s14, 3
      %p107 = por %p105, %p106
      %p108 = scmp.ne.s32.totalorder %s97, %s98
      %p109 = scmp.eq.s32.totalorder %s14, 0
      %p110 = por %p108, %p109
      %p111 = scmp.ne.s32.totalorder %s97, %s98
      %p112 = scmp.eq.s32.totalorder %s15, 3
      %p113 = por %p111, %p112
      %p115 = scmp.ne.s32.totalorder %s98, %s114
      %p116 = scmp.eq.s32.totalorder %s15, 0
      %p117 = por %p115, %p116
      %s118 = ssub.s32 %s16, %s35
      %s119 = ssub.s32 %s17, %s31
      %s120 = sor.u32 %s118, %s119
      %p121 = scmp.eq.s32.totalorder %s120, 0
      %s123 = sadd.s32 %s122, 1
      %s124 = scalar_select %p121, %s122, %s123
      %p127 = pneg %p121
      %p128 = scmp.eq.s32.totalorder %s9, 3
      %p129 = por %p127, %p128
      %p130 = scmp.ne.s32.totalorder %s122, %s125
      %p131 = scmp.eq.s32.totalorder %s9, 0
      %p132 = por %p130, %p131
      %p133 = scmp.ne.s32.totalorder %s122, %s125
      %p134 = scmp.eq.s32.totalorder %s14, 3
      %p135 = por %p133, %p134
      %p136 = scmp.ne.s32.totalorder %s125, %s126
      %p137 = scmp.eq.s32.totalorder %s14, 0
      %p138 = por %p136, %p137
      %p139 = scmp.ne.s32.totalorder %s125, %s126
      %p140 = scmp.eq.s32.totalorder %s15, 3
      %p141 = por %p139, %p140
      %p143 = scmp.ne.s32.totalorder %s126, %s142
      %p144 = scmp.eq.s32.totalorder %s15, 0
      %p145 = por %p143, %p144
      %p146 = scmp.le.s32.totalorder 1, %s9
      %p147 = scmp.lt.s32.totalorder %s9, 5
      %p148 = pnand %p146, %p147
      %p149 = pneg %p148
      // Predicated region
      $region9: #{generator_forward.19} parent=5 // pred_check
        _
      $region10: #{generator_forward.19} parent=5 // pred_check_branch
        %151 = sbr.rel (%p148) target = $region12
      $region11: #{generator_forward.19} parent=5 // pred_region
        %s152 = ssub.s32 %s9, 1
        // Predicated region
        $region13: #{generator_forward.19} parent=11 // pred_check
          %p153 = pneg %p110
        $region14: #{generator_forward.19} parent=11 // pred_check_branch
          %155 = sbr.rel (%p153) target = $region16
        $region15: #{generator_forward.19} parent=11 // pred_region
          %p156 = scmp.lt.s32.totalorder %s20, 0
          %s157 = scalar_select %p156, %s20, 0
          %s158 = scalar_lea.vmem %s2, %s157
        $region16: #{generator_forward.19} parent=11 // pred_fallthru
          _
      $region12: #{generator_forward.19} parent=5 // pred_fallthru
        _
      %p159 = scmp.lt.s32.totalorder %s9, 4
      // Predicated region
      $region17: #{generator_forward.19} parent=5 // pred_check
        %p160 = pneg %p159
      $region18: #{generator_forward.19} parent=5 // pred_check_branch
        %162 = sbr.rel (%p160) target = $region20
      $region19: #{generator_forward.19} parent=5 // pred_region
        // Predicated region
        $region21: #{generator_forward.19} parent=19 // pred_check
          %p163 = pneg %p50
        $region22: #{generator_forward.19} parent=19 // pred_check_branch
          %165 = sbr.rel (%p163) target = $region24
        $region23: #{generator_forward.19} parent=19 // pred_region
          %s166 = sand.u32 %s40, 1
          %s167 = sand.u32 %s40, 1
          %s168 = smul.addr %s167, 256
          %s169 = scalar_lea.vmem [#allocation3], %s168
          %s170 = smul.u32 32, %s16
          %s171 = smul.addr %s170, 2
          %s172 = sadd.s32 %s18, %s171
          %s173 = smul.addr %s172, 8
          %s174 = scalar_lea.vmem %s0, %s173
          // Predicated region
          $region25: #{generator_forward.19} parent=23 // pred_check
            _
          $region26: #{generator_forward.19} parent=23 // pred_check_branch
            %176 = sbr.rel (0) target = $region28
          $region27: #{generator_forward.19} parent=23 // pred_region
            // Predicated region
            $region29: #{generator_forward.19} parent=27 // pred_check
              _
            $region30: #{generator_forward.19} parent=27 // pred_check_branch
              %178 = sbr.rel (0) target = $region32
            $region31: #{generator_forward.19} parent=27 // pred_region
              // Predicated region
              $region44: #{generator_forward.19} parent=31 // pred_check
                _
              $region45: #{generator_forward.19} parent=31 // pred_check_branch
                %256 = sbr.rel (0) target = $region47
              $region46: #{generator_forward.19} parent=31 // pred_region
                loop: start=0, step=1, limit=1
                $region48: #{generator_forward.19} parent=46 // loop_pre_header
                  _
                $region49: #{generator_forward.19} parent=46 // loop_header
                  %s258 = sphi 0, %s262
                  %p259 = scmp.ge.s32.totalorder %s258, 1
                  %s263 = sphi %s174, %s174
                  %s264 = sphi %s169, %s169
                $region50: #{generator_forward.19} parent=46 // loop_header_branch
                  %261 = sbr.rel (%p259) target = $region54
                $region51: #{generator_forward.19} parent=46 // loop_body
                  %v265 = vld [vmem:[%s263] sm:$0xff]
                  %266 = vst [vmem:[%s264] sm:$0xff] %v265
                  %v267 = vld [vmem:[%s263 + $0x10] sm:$0xff]
                  %268 = vst [vmem:[%s264 + $0x8] sm:$0xff] %v267
                  %v269 = vld [vmem:[%s263 + $0x20] sm:$0xff]
                  %270 = vst [vmem:[%s264 + $0x10] sm:$0xff] %v269
                  %v271 = vld [vmem:[%s263 + $0x30] sm:$0xff]
                  %272 = vst [vmem:[%s264 + $0x18] sm:$0xff] %v271
                  %v273 = vld [vmem:[%s263 + $0x40] sm:$0xff]
                  %274 = vst [vmem:[%s264 + $0x20] sm:$0xff] %v273
                  %v275 = vld [vmem:[%s263 + $0x50] sm:$0xff]
                  %276 = vst [vmem:[%s264 + $0x28] sm:$0xff] %v275
                  %v277 = vld [vmem:[%s263 + $0x60] sm:$0xff]
                  %278 = vst [vmem:[%s264 + $0x30] sm:$0xff] %v277
                  %v279 = vld [vmem:[%s263 + $0x70] sm:$0xff]
                  %280 = vst [vmem:[%s264 + $0x38] sm:$0xff] %v279
                  %v281 = vld [vmem:[%s263 + $0x80] sm:$0xff]
                  %282 = vst [vmem:[%s264 + $0x40] sm:$0xff] %v281
                  %v283 = vld [vmem:[%s263 + $0x90] sm:$0xff]
                  %284 = vst [vmem:[%s264 + $0x48] sm:$0xff] %v283
                  %v285 = vld [vmem:[%s263 + $0xa0] sm:$0xff]
                  %286 = vst [vmem:[%s264 + $0x50] sm:$0xff] %v285
                  %v287 = vld [vmem:[%s263 + $0xb0] sm:$0xff]
                  %288 = vst [vmem:[%s264 + $0x58] sm:$0xff] %v287
                  %v289 = vld [vmem:[%s263 + $0xc0] sm:$0xff]
                  %290 = vst [vmem:[%s264 + $0x60] sm:$0xff] %v289
                  %v291 = vld [vmem:[%s263 + $0xd0] sm:$0xff]
                  %292 = vst [vmem:[%s264 + $0x68] sm:$0xff] %v291
                  %v293 = vld [vmem:[%s263 + $0xe0] sm:$0xff]
                  %294 = vst [vmem:[%s264 + $0x70] sm:$0xff] %v293
                  %v295 = vld [vmem:[%s263 + $0xf0] sm:$0xff]
                  %296 = vst [vmem:[%s264 + $0x78] sm:$0xff] %v295
                  %v297 = vld [vmem:[%s263 + $0x100] sm:$0xff]
                  %298 = vst [vmem:[%s264 + $0x80] sm:$0xff] %v297
                  %v299 = vld [vmem:[%s263 + $0x110] sm:$0xff]
                  %300 = vst [vmem:[%s264 + $0x88] sm:$0xff] %v299
                  %v301 = vld [vmem:[%s263 + $0x120] sm:$0xff]
                  %302 = vst [vmem:[%s264 + $0x90] sm:$0xff] %v301
                  %v303 = vld [vmem:[%s263 + $0x130] sm:$0xff]
                  %304 = vst [vmem:[%s264 + $0x98] sm:$0xff] %v303
                  %v305 = vld [vmem:[%s263 + $0x140] sm:$0xff]
                  %306 = vst [vmem:[%s264 + $0xa0] sm:$0xff] %v305
                  %v307 = vld [vmem:[%s263 + $0x150] sm:$0xff]
                  %308 = vst [vmem:[%s264 + $0xa8] sm:$0xff] %v307
                  %v309 = vld [vmem:[%s263 + $0x160] sm:$0xff]
                  %310 = vst [vmem:[%s264 + $0xb0] sm:$0xff] %v309
                  %v311 = vld [vmem:[%s263 + $0x170] sm:$0xff]
                  %312 = vst [vmem:[%s264 + $0xb8] sm:$0xff] %v311
                  %v313 = vld [vmem:[%s263 + $0x180] sm:$0xff]
                  %314 = vst [vmem:[%s264 + $0xc0] sm:$0xff] %v313
                  %v315 = vld [vmem:[%s263 + $0x190] sm:$0xff]
                  %316 = vst [vmem:[%s264 + $0xc8] sm:$0xff] %v315
                  %v317 = vld [vmem:[%s263 + $0x1a0] sm:$0xff]
                  %318 = vst [vmem:[%s264 + $0xd0] sm:$0xff] %v317
                  %v319 = vld [vmem:[%s263 + $0x1b0] sm:$0xff]
                  %320 = vst [vmem:[%s264 + $0xd8] sm:$0xff] %v319
                  %v321 = vld [vmem:[%s263 + $0x1c0] sm:$0xff]
                  %322 = vst [vmem:[%s264 + $0xe0] sm:$0xff] %v321
                  %v323 = vld [vmem:[%s263 + $0x1d0] sm:$0xff]
                  %324 = vst [vmem:[%s264 + $0xe8] sm:$0xff] %v323
                  %v325 = vld [vmem:[%s263 + $0x1e0] sm:$0xff]
                  %326 = vst [vmem:[%s264 + $0xf0] sm:$0xff] %v325
                  %v327 = vld [vmem:[%s263 + $0x1f0] sm:$0xff]
                  %328 = vst [vmem:[%s264 + $0xf8] sm:$0xff] %v327
                $region52: #{generator_forward.19} parent=46 // loop_footer
                  %s262 = sadd.s32 1, %s258
                $region53: #{generator_forward.19} parent=46 // loop_footer_branch
                  %257 = sbr.rel target = $region49
                $region54: #{generator_forward.19} parent=46 // loop_exit
                  _
              $region47: #{generator_forward.19} parent=31 // pred_fallthru
                _
              // Predicated region
              $region55: #{generator_forward.19} parent=31 // pred_check
                _
              $region56: #{generator_forward.19} parent=31 // pred_check_branch
                %330 = sbr.rel target = $region58
              $region57: #{generator_forward.19} parent=31 // pred_region
                _
              $region58: #{generator_forward.19} parent=31 // pred_fallthru
                _
            $region32: #{generator_forward.19} parent=27 // pred_fallthru
              _
            // Predicated region
            $region33: #{generator_forward.19} parent=27 // pred_check
              _
            $region34: #{generator_forward.19} parent=27 // pred_check_branch
              %180 = sbr.rel target = $region36
            $region35: #{generator_forward.19} parent=27 // pred_region
              %s182 = ssub.s32 256, 1
              loop: start=0, step=1, limit=1
              $region37: #{generator_forward.19} parent=35 // loop_pre_header
                _
              $region38: #{generator_forward.19} parent=35 // loop_header
                %s184 = sphi 0, %s188
                %p185 = scmp.ge.s32.totalorder %s184, 1
                %s189 = sphi %s174, %s174
                %s190 = sphi %s169, %s169
              $region39: #{generator_forward.19} parent=35 // loop_header_branch
                %187 = sbr.rel (%p185) target = $region43
              $region40: #{generator_forward.19} parent=35 // loop_body
                %v191 = vld [vmem:[%s189] sm:%s182]
                %192 = vst [vmem:[%s190] sm:%s182] %v191
                %v193 = vld [vmem:[%s189 + $0x10] sm:%s182]
                %194 = vst [vmem:[%s190 + $0x8] sm:%s182] %v193
                %v195 = vld [vmem:[%s189 + $0x20] sm:%s182]
                %196 = vst [vmem:[%s190 + $0x10] sm:%s182] %v195
                %v197 = vld [vmem:[%s189 + $0x30] sm:%s182]
                %198 = vst [vmem:[%s190 + $0x18] sm:%s182] %v197
                %v199 = vld [vmem:[%s189 + $0x40] sm:%s182]
                %200 = vst [vmem:[%s190 + $0x20] sm:%s182] %v199
                %v201 = vld [vmem:[%s189 + $0x50] sm:%s182]
                %202 = vst [vmem:[%s190 + $0x28] sm:%s182] %v201
                %v203 = vld [vmem:[%s189 + $0x60] sm:%s182]
                %204 = vst [vmem:[%s190 + $0x30] sm:%s182] %v203
                %v205 = vld [vmem:[%s189 + $0x70] sm:%s182]
                %206 = vst [vmem:[%s190 + $0x38] sm:%s182] %v205
                %v207 = vld [vmem:[%s189 + $0x80] sm:%s182]
                %208 = vst [vmem:[%s190 + $0x40] sm:%s182] %v207
                %v209 = vld [vmem:[%s189 + $0x90] sm:%s182]
                %210 = vst [vmem:[%s190 + $0x48] sm:%s182] %v209
                %v211 = vld [vmem:[%s189 + $0xa0] sm:%s182]
                %212 = vst [vmem:[%s190 + $0x50] sm:%s182] %v211
                %v213 = vld [vmem:[%s189 + $0xb0] sm:%s182]
                %214 = vst [vmem:[%s190 + $0x58] sm:%s182] %v213
                %v215 = vld [vmem:[%s189 + $0xc0] sm:%s182]
                %216 = vst [vmem:[%s190 + $0x60] sm:%s182] %v215
                %v217 = vld [vmem:[%s189 + $0xd0] sm:%s182]
                %218 = vst [vmem:[%s190 + $0x68] sm:%s182] %v217
                %v219 = vld [vmem:[%s189 + $0xe0] sm:%s182]
                %220 = vst [vmem:[%s190 + $0x70] sm:%s182] %v219
                %v221 = vld [vmem:[%s189 + $0xf0] sm:%s182]
                %222 = vst [vmem:[%s190 + $0x78] sm:%s182] %v221
                %v223 = vld [vmem:[%s189 + $0x100] sm:%s182]
                %224 = vst [vmem:[%s190 + $0x80] sm:%s182] %v223
                %v225 = vld [vmem:[%s189 + $0x110] sm:%s182]
                %226 = vst [vmem:[%s190 + $0x88] sm:%s182] %v225
                %v227 = vld [vmem:[%s189 + $0x120] sm:%s182]
                %228 = vst [vmem:[%s190 + $0x90] sm:%s182] %v227
                %v229 = vld [vmem:[%s189 + $0x130] sm:%s182]
                %230 = vst [vmem:[%s190 + $0x98] sm:%s182] %v229
                %v231 = vld [vmem:[%s189 + $0x140] sm:%s182]
                %232 = vst [vmem:[%s190 + $0xa0] sm:%s182] %v231
                %v233 = vld [vmem:[%s189 + $0x150] sm:%s182]
                %234 = vst [vmem:[%s190 + $0xa8] sm:%s182] %v233
                %v235 = vld [vmem:[%s189 + $0x160] sm:%s182]
                %236 = vst [vmem:[%s190 + $0xb0] sm:%s182] %v235
                %v237 = vld [vmem:[%s189 + $0x170] sm:%s182]
                %238 = vst [vmem:[%s190 + $0xb8] sm:%s182] %v237
                %v239 = vld [vmem:[%s189 + $0x180] sm:%s182]
                %240 = vst [vmem:[%s190 + $0xc0] sm:%s182] %v239
                %v241 = vld [vmem:[%s189 + $0x190] sm:%s182]
                %242 = vst [vmem:[%s190 + $0xc8] sm:%s182] %v241
                %v243 = vld [vmem:[%s189 + $0x1a0] sm:%s182]
                %244 = vst [vmem:[%s190 + $0xd0] sm:%s182] %v243
                %v245 = vld [vmem:[%s189 + $0x1b0] sm:%s182]
                %246 = vst [vmem:[%s190 + $0xd8] sm:%s182] %v245
                %v247 = vld [vmem:[%s189 + $0x1c0] sm:%s182]
                %248 = vst [vmem:[%s190 + $0xe0] sm:%s182] %v247
                %v249 = vld [vmem:[%s189 + $0x1d0] sm:%s182]
                %250 = vst [vmem:[%s190 + $0xe8] sm:%s182] %v249
                %v251 = vld [vmem:[%s189 + $0x1e0] sm:%s182]
                %252 = vst [vmem:[%s190 + $0xf0] sm:%s182] %v251
                %v253 = vld [vmem:[%s189 + $0x1f0] sm:%s182]
                %254 = vst [vmem:[%s190 + $0xf8] sm:%s182] %v253
              $region41: #{generator_forward.19} parent=35 // loop_footer
                %s188 = sadd.s32 1, %s184
              $region42: #{generator_forward.19} parent=35 // loop_footer_branch
                %183 = sbr.rel target = $region38
              $region43: #{generator_forward.19} parent=35 // loop_exit
                _
            $region36: #{generator_forward.19} parent=27 // pred_fallthru
              _
          $region28: #{generator_forward.19} parent=23 // pred_fallthru
            _
          %331 = vnop
        $region24: #{generator_forward.19} parent=19 // pred_fallthru
          _
        // Predicated region
        $region59: #{generator_forward.19} parent=19 // pred_check
          %p332 = pneg %p78
        $region60: #{generator_forward.19} parent=19 // pred_check_branch
          %334 = sbr.rel (%p332) target = $region62
        $region61: #{generator_forward.19} parent=19 // pred_region
          %s335 = smul.u32 16, %s18
          %p336 = scmp.lt.s32.totalorder %s335, 31
          %s337 = scalar_select %p336, %s335, 31
          %p338 = scmp.lt.s32.totalorder %s17, 0
          %s339 = scalar_select %p338, %s17, 0
          %s340 = sadd.s32 %s339, %s337
          %s341 = smul.addr %s340, 8
          %s342 = scalar_lea.vmem %s1, %s341
          %s343 = smul.u32 16, %s18
        $region62: #{generator_forward.19} parent=19 // pred_fallthru
          _
      $region20: #{generator_forward.19} parent=5 // pred_fallthru
        _
      %p344 = scmp.le.s32.totalorder 1, %s9
      %p345 = scmp.lt.s32.totalorder %s9, 5
      %p346 = pnand %p344, %p345
      %p347 = pneg %p346
      // Predicated region
      $region63: #{generator_forward.19} parent=5 // pred_check
        _
      $region64: #{generator_forward.19} parent=5 // pred_check_branch
        %349 = sbr.rel (%p346) target = $region66
      $region65: #{generator_forward.19} parent=5 // pred_region
        %s350 = ssub.s32 %s9, 1
        %s351 = sand.u32 %s43, 1
        %s352 = sand.u32 %s43, 1
        %s353 = smul.addr %s352, 256
        %s354 = scalar_lea.vmem [#allocation3], %s353
        // Predicated region
        $region67: #{generator_forward.19} parent=65 // pred_check
          %p355 = pneg %p56
        $region68: #{generator_forward.19} parent=65 // pred_check_branch
          %357 = sbr.rel (%p355) target = $region70
        $region69: #{generator_forward.19} parent=65 // pred_region
          _
        $region70: #{generator_forward.19} parent=65 // pred_fallthru
          _
        %s358 = sand.u32 %s43, 1
        %s359 = sand.u32 %s43, 1
        %s360 = smul.addr %s359, 256
        %s361 = scalar_lea.vmem [#allocation3], %s360
        %p362 = pneg %p56
        %p363 = pneg %p53
        %s364 = smul.u32 16, %s21
        %p365 = scmp.lt.s32.totalorder %s364, 31
        %s366 = scalar_select %p365, %s364, 31
        %p367 = scmp.lt.s32.totalorder %s20, 0
        %s368 = scalar_select %p367, %s20, 0
        %s369 = sadd.s32 %s368, %s366
        %s370 = smul.addr %s369, 8
        %s371 = scalar_lea.vmem %s1, %s370
        %p372 = pneg %p84
        %p373 = pneg %p81
        %p374 = scmp.lt.s32.totalorder %s20, 0
        %s375 = scalar_select %p374, %s20, 0
        %s376 = scalar_lea.vmem %s2, %s375
        %p377 = pneg %p110
        %p378 = pneg %p107
        %p379 = pneg %p138
        %p380 = pneg %p135
        %s381 = smul.u32 32, %s19
        %p382 = scmp.lt.s32.totalorder %s381, 63
        %s383 = scalar_select %p382, %s381, 63
        %p384 = scmp.lt.s32.totalorder %s20, 0
        %s385 = scalar_select %p384, %s20, 0
        %s386 = sadd.s32 %s385, %s383
        %s387 = smul.addr %s386, 8
        %s388 = scalar_lea.vmem %s3, %s387
        %s389 = smul.u32 32, %s19
        %s390 = smul.u32 16, %s21
        %p391 = scmp.lt.s32.totalorder %s390, 31
        %s392 = scalar_select %p391, %s390, 31
        %p393 = scmp.lt.s32.totalorder %s20, 0
        %s394 = scalar_select %p393, %s20, 0
        %s395 = sadd.s32 %s394, %s392
        %s396 = smul.addr %s395, 8
        %s397 = scalar_lea.vmem %s1, %s396
        %s398 = smul.u32 16, %s21
        %p399 = scmp.lt.s32.totalorder %s20, 0
        %s400 = scalar_select %p399, %s20, 0
        %s401 = scalar_lea.vmem %s2, %s400
        %s402 = smul.u32 32, %s19
        %p403 = scmp.lt.s32.totalorder %s402, 63
        %s404 = scalar_select %p403, %s402, 63
        %p405 = scmp.lt.s32.totalorder %s20, 0
        %s406 = scalar_select %p405, %s20, 0
        %s407 = sadd.s32 %s406, %s404
        %s408 = smul.addr %s407, 8
        %s409 = scalar_lea.vmem %s3, %s408
        %s410 = smul.u32 32, %s19
        %p411 = scmp.eq.s32.totalorder %s21, 0
        // Predicated region
        $region71: #{generator_forward.19} parent=65 // pred_check
          %p412 = pneg %p411
        $region72: #{generator_forward.19} parent=65 // pred_check_branch
          %414 = sbr.rel (%p412) target = $region74
        $region73: #{generator_forward.19} parent=65 // pred_region
          %415 = vst [vmem:[#allocation2] sm:$0xff] 0.0
          %416 = vst [vmem:[#allocation2 + $0x8] sm:$0xff] 0.0
          %417 = vst [vmem:[#allocation2 + $0x10] sm:$0xff] 0.0
          %418 = vst [vmem:[#allocation2 + $0x18] sm:$0xff] 0.0
          %419 = vst [vmem:[#allocation2 + $0x20] sm:$0xff] 0.0
          %420 = vst [vmem:[#allocation2 + $0x28] sm:$0xff] 0.0
          %421 = vst [vmem:[#allocation2 + $0x30] sm:$0xff] 0.0
          %422 = vst [vmem:[#allocation2 + $0x38] sm:$0xff] 0.0
          %423 = vst [vmem:[#allocation2 + $0x40] sm:$0xff] 0.0
          %424 = vst [vmem:[#allocation2 + $0x48] sm:$0xff] 0.0
          %425 = vst [vmem:[#allocation2 + $0x50] sm:$0xff] 0.0
          %426 = vst [vmem:[#allocation2 + $0x58] sm:$0xff] 0.0
          %427 = vst [vmem:[#allocation2 + $0x60] sm:$0xff] 0.0
          %428 = vst [vmem:[#allocation2 + $0x68] sm:$0xff] 0.0
          %429 = vst [vmem:[#allocation2 + $0x70] sm:$0xff] 0.0
          %430 = vst [vmem:[#allocation2 + $0x78] sm:$0xff] 0.0
          %431 = vst [vmem:[#allocation2 + $0x80] sm:$0xff] 0.0
          %432 = vst [vmem:[#allocation2 + $0x88] sm:$0xff] 0.0
          %433 = vst [vmem:[#allocation2 + $0x90] sm:$0xff] 0.0
          %434 = vst [vmem:[#allocation2 + $0x98] sm:$0xff] 0.0
          %435 = vst [vmem:[#allocation2 + $0xa0] sm:$0xff] 0.0
          %436 = vst [vmem:[#allocation2 + $0xa8] sm:$0xff] 0.0
          %437 = vst [vmem:[#allocation2 + $0xb0] sm:$0xff] 0.0
          %438 = vst [vmem:[#allocation2 + $0xb8] sm:$0xff] 0.0
          %439 = vst [vmem:[#allocation2 + $0xc0] sm:$0xff] 0.0
          %440 = vst [vmem:[#allocation2 + $0xc8] sm:$0xff] 0.0
          %441 = vst [vmem:[#allocation2 + $0xd0] sm:$0xff] 0.0
          %442 = vst [vmem:[#allocation2 + $0xd8] sm:$0xff] 0.0
          %443 = vst [vmem:[#allocation2 + $0xe0] sm:$0xff] 0.0
          %444 = vst [vmem:[#allocation2 + $0xe8] sm:$0xff] 0.0
          %445 = vst [vmem:[#allocation2 + $0xf0] sm:$0xff] 0.0
          %446 = vst [vmem:[#allocation2 + $0xf8] sm:$0xff] 0.0
        $region74: #{generator_forward.19} parent=65 // pred_fallthru
          _
        %v447 = vld [vmem:[#allocation2] sm:$0xff]
        %v448 = vld [vmem:[#allocation2 + $0x8] sm:$0xff]
        %v449 = vld [vmem:[#allocation2 + $0x10] sm:$0xff]
        %v450 = vld [vmem:[#allocation2 + $0x18] sm:$0xff]
        %v451 = vld [vmem:[#allocation2 + $0x20] sm:$0xff]
        %v452 = vld [vmem:[#allocation2 + $0x28] sm:$0xff]
        %v453 = vld [vmem:[#allocation2 + $0x30] sm:$0xff]
        %v454 = vld [vmem:[#allocation2 + $0x38] sm:$0xff]
        %v455 = vld [vmem:[#allocation2 + $0x40] sm:$0xff]
        %v456 = vld [vmem:[#allocation2 + $0x48] sm:$0xff]
        %v457 = vld [vmem:[#allocation2 + $0x50] sm:$0xff]
        %v458 = vld [vmem:[#allocation2 + $0x58] sm:$0xff]
        %v459 = vld [vmem:[#allocation2 + $0x60] sm:$0xff]
        %v460 = vld [vmem:[#allocation2 + $0x68] sm:$0xff]
        %v461 = vld [vmem:[#allocation2 + $0x70] sm:$0xff]
        %v462 = vld [vmem:[#allocation2 + $0x78] sm:$0xff]
        %v463 = vld [vmem:[#allocation2 + $0x80] sm:$0xff]
        %v464 = vld [vmem:[#allocation2 + $0x88] sm:$0xff]
        %v465 = vld [vmem:[#allocation2 + $0x90] sm:$0xff]
        %v466 = vld [vmem:[#allocation2 + $0x98] sm:$0xff]
        %v467 = vld [vmem:[#allocation2 + $0xa0] sm:$0xff]
        %v468 = vld [vmem:[#allocation2 + $0xa8] sm:$0xff]
        %v469 = vld [vmem:[#allocation2 + $0xb0] sm:$0xff]
        %v470 = vld [vmem:[#allocation2 + $0xb8] sm:$0xff]
        %v471 = vld [vmem:[#allocation2 + $0xc0] sm:$0xff]
        %v472 = vld [vmem:[#allocation2 + $0xc8] sm:$0xff]
        %v473 = vld [vmem:[#allocation2 + $0xd0] sm:$0xff]
        %v474 = vld [vmem:[#allocation2 + $0xd8] sm:$0xff]
        %v475 = vld [vmem:[#allocation2 + $0xe0] sm:$0xff]
        %v476 = vld [vmem:[#allocation2 + $0xe8] sm:$0xff]
        %v477 = vld [vmem:[#allocation2 + $0xf0] sm:$0xff]
        %v478 = vld [vmem:[#allocation2 + $0xf8] sm:$0xff]
        %v479 = vld [vmem:[%s354] sm:$0xff]
        %v480 = vld [vmem:[%s354 + $0x8] sm:$0xff]
        %v481 = vld [vmem:[%s354 + $0x10] sm:$0xff]
        %v482 = vld [vmem:[%s354 + $0x18] sm:$0xff]
        %v483 = vld [vmem:[%s354 + $0x20] sm:$0xff]
        %v484 = vld [vmem:[%s354 + $0x28] sm:$0xff]
        %v485 = vld [vmem:[%s354 + $0x30] sm:$0xff]
        %v486 = vld [vmem:[%s354 + $0x38] sm:$0xff]
        %v487 = vld [vmem:[%s354 + $0x40] sm:$0xff]
        %v488 = vld [vmem:[%s354 + $0x48] sm:$0xff]
        %v489 = vld [vmem:[%s354 + $0x50] sm:$0xff]
        %v490 = vld [vmem:[%s354 + $0x58] sm:$0xff]
        %v491 = vld [vmem:[%s354 + $0x60] sm:$0xff]
        %v492 = vld [vmem:[%s354 + $0x68] sm:$0xff]
        %v493 = vld [vmem:[%s354 + $0x70] sm:$0xff]
        %v494 = vld [vmem:[%s354 + $0x78] sm:$0xff]
        %v495 = vld [vmem:[%s354 + $0x80] sm:$0xff]
        %v496 = vld [vmem:[%s354 + $0x88] sm:$0xff]
        %v497 = vld [vmem:[%s354 + $0x90] sm:$0xff]
        %v498 = vld [vmem:[%s354 + $0x98] sm:$0xff]
        %v499 = vld [vmem:[%s354 + $0xa0] sm:$0xff]
        %v500 = vld [vmem:[%s354 + $0xa8] sm:$0xff]
        %v501 = vld [vmem:[%s354 + $0xb0] sm:$0xff]
        %v502 = vld [vmem:[%s354 + $0xb8] sm:$0xff]
        %v503 = vld [vmem:[%s354 + $0xc0] sm:$0xff]
        %v504 = vld [vmem:[%s354 + $0xc8] sm:$0xff]
        %v505 = vld [vmem:[%s354 + $0xd0] sm:$0xff]
        %v506 = vld [vmem:[%s354 + $0xd8] sm:$0xff]
        %v507 = vld [vmem:[%s354 + $0xe0] sm:$0xff]
        %v508 = vld [vmem:[%s354 + $0xe8] sm:$0xff]
        %v509 = vld [vmem:[%s354 + $0xf0] sm:$0xff]
        %v510 = vld [vmem:[%s354 + $0xf8] sm:$0xff]
        %v511 = vld [vmem:[%s397] sm:$0xff]
        %v512 = vld [vmem:[%s397 + $0x8] sm:$0xff]
        %v513 = vld [vmem:[%s397 + $0x10] sm:$0xff]
        %v514 = vld [vmem:[%s397 + $0x18] sm:$0xff]
        %v515 = vld [vmem:[%s397 + $0x20] sm:$0xff]
        %v516 = vld [vmem:[%s397 + $0x28] sm:$0xff]
        %v517 = vld [vmem:[%s397 + $0x30] sm:$0xff]
        %v518 = vld [vmem:[%s397 + $0x38] sm:$0xff]
        %v519 = vld [vmem:[%s397 + $0x40] sm:$0xff]
        %v520 = vld [vmem:[%s397 + $0x48] sm:$0xff]
        %v521 = vld [vmem:[%s397 + $0x50] sm:$0xff]
        %v522 = vld [vmem:[%s397 + $0x58] sm:$0xff]
        %v523 = vld [vmem:[%s397 + $0x60] sm:$0xff]
        %v524 = vld [vmem:[%s397 + $0x68] sm:$0xff]
        %v525 = vld [vmem:[%s397 + $0x70] sm:$0xff]
        %v526 = vld [vmem:[%s397 + $0x78] sm:$0xff]
        %527 = vmatpush.msra.mxu0 %v526
        %528 = vmatpush.msra.mxu0 %v525
        %529 = vmatpush.msra.mxu0 %v524
        %530 = vmatpush.msra.mxu0 %v523
        %531 = vmatpush.msra.mxu0 %v522
        %532 = vmatpush.msra.mxu0 %v521
        %533 = vmatpush.msra.mxu0 %v520
        %534 = vmatpush.msra.mxu0 %v519
        %535 = vmatpush.msra.mxu0 %v518
        %536 = vmatpush.msra.mxu0 %v517
        %537 = vmatpush.msra.mxu0 %v516
        %538 = vmatpush.msra.mxu0 %v515
        %539 = vmatpush.msra.mxu0 %v514
        %540 = vmatpush.msra.mxu0 %v513
        %541 = vmatpush.msra.mxu0 %v512
        %542 = vmatpush.msra.mxu0 %v511
        %543 = vmatmul.f32.gmra.mxu0 %v479
        %v544 = vpop.f32.mrf.mxu0
        %v545 = vadd.f32 0.0, %v544
        %546 = vmatmul.f32.gmra.mxu0 %v480
        %v547 = vpop.f32.mrf.mxu0
        %v548 = vadd.f32 0.0, %v547
        %549 = vmatmul.f32.gmra.mxu0 %v481
        %v550 = vpop.f32.mrf.mxu0
        %v551 = vadd.f32 0.0, %v550
        %552 = vmatmul.f32.gmra.mxu0 %v482
        %v553 = vpop.f32.mrf.mxu0
        %v554 = vadd.f32 0.0, %v553
        %555 = vmatmul.f32.gmra.mxu0 %v483
        %v556 = vpop.f32.mrf.mxu0
        %v557 = vadd.f32 0.0, %v556
        %558 = vmatmul.f32.gmra.mxu0 %v484
        %v559 = vpop.f32.mrf.mxu0
        %v560 = vadd.f32 0.0, %v559
        %561 = vmatmul.f32.gmra.mxu0 %v485
        %v562 = vpop.f32.mrf.mxu0
        %v563 = vadd.f32 0.0, %v562
        %564 = vmatmul.f32.gmra.mxu0 %v486
        %v565 = vpop.f32.mrf.mxu0
        %v566 = vadd.f32 0.0, %v565
        %567 = vmatmul.f32.gmra.mxu0 %v487
        %v568 = vpop.f32.mrf.mxu0
        %v569 = vadd.f32 0.0, %v568
        %570 = vmatmul.f32.gmra.mxu0 %v488
        %v571 = vpop.f32.mrf.mxu0
        %v572 = vadd.f32 0.0, %v571
        %573 = vmatmul.f32.gmra.mxu0 %v489
        %v574 = vpop.f32.mrf.mxu0
        %v575 = vadd.f32 0.0, %v574
        %576 = vmatmul.f32.gmra.mxu0 %v490
        %v577 = vpop.f32.mrf.mxu0
        %v578 = vadd.f32 0.0, %v577
        %579 = vmatmul.f32.gmra.mxu0 %v491
        %v580 = vpop.f32.mrf.mxu0
        %v581 = vadd.f32 0.0, %v580
        %582 = vmatmul.f32.gmra.mxu0 %v492
        %v583 = vpop.f32.mrf.mxu0
        %v584 = vadd.f32 0.0, %v583
        %585 = vmatmul.f32.gmra.mxu0 %v493
        %v586 = vpop.f32.mrf.mxu0
        %v587 = vadd.f32 0.0, %v586
        %588 = vmatmul.f32.gmra.mxu0 %v494
        %v589 = vpop.f32.mrf.mxu0
        %v590 = vadd.f32 0.0, %v589
        %591 = vmatmul.f32.gmra.mxu0 %v495
        %v592 = vpop.f32.mrf.mxu0
        %v593 = vadd.f32 0.0, %v592
        %594 = vmatmul.f32.gmra.mxu0 %v496
        %v595 = vpop.f32.mrf.mxu0
        %v596 = vadd.f32 0.0, %v595
        %597 = vmatmul.f32.gmra.mxu0 %v497
        %v598 = vpop.f32.mrf.mxu0
        %v599 = vadd.f32 0.0, %v598
        %600 = vmatmul.f32.gmra.mxu0 %v498
        %v601 = vpop.f32.mrf.mxu0
        %v602 = vadd.f32 0.0, %v601
        %603 = vmatmul.f32.gmra.mxu0 %v499
        %v604 = vpop.f32.mrf.mxu0
        %v605 = vadd.f32 0.0, %v604
        %606 = vmatmul.f32.gmra.mxu0 %v500
        %v607 = vpop.f32.mrf.mxu0
        %v608 = vadd.f32 0.0, %v607
        %609 = vmatmul.f32.gmra.mxu0 %v501
        %v610 = vpop.f32.mrf.mxu0
        %v611 = vadd.f32 0.0, %v610
        %612 = vmatmul.f32.gmra.mxu0 %v502
        %v613 = vpop.f32.mrf.mxu0
        %v614 = vadd.f32 0.0, %v613
        %615 = vmatmul.f32.gmra.mxu0 %v503
        %v616 = vpop.f32.mrf.mxu0
        %v617 = vadd.f32 0.0, %v616
        %618 = vmatmul.f32.gmra.mxu0 %v504
        %v619 = vpop.f32.mrf.mxu0
        %v620 = vadd.f32 0.0, %v619
        %621 = vmatmul.f32.gmra.mxu0 %v505
        %v622 = vpop.f32.mrf.mxu0
        %v623 = vadd.f32 0.0, %v622
        %624 = vmatmul.f32.gmra.mxu0 %v506
        %v625 = vpop.f32.mrf.mxu0
        %v626 = vadd.f32 0.0, %v625
        %627 = vmatmul.f32.gmra.mxu0 %v507
        %v628 = vpop.f32.mrf.mxu0
        %v629 = vadd.f32 0.0, %v628
        %630 = vmatmul.f32.gmra.mxu0 %v508
        %v631 = vpop.f32.mrf.mxu0
        %v632 = vadd.f32 0.0, %v631
        %633 = vmatmul.f32.gmra.mxu0 %v509
        %v634 = vpop.f32.mrf.mxu0
        %v635 = vadd.f32 0.0, %v634
        %636 = vmatmul.f32.gmra.mxu0 %v510
        %v637 = vpop.f32.mrf.mxu0
        %v638 = vadd.f32 0.0, %v637
        %639 = vdwg.mxu0
        %v640 = vadd.f32 %v447, %v545
        %v641 = vadd.f32 %v448, %v548
        %v642 = vadd.f32 %v449, %v551
        %v643 = vadd.f32 %v450, %v554
        %v644 = vadd.f32 %v451, %v557
        %v645 = vadd.f32 %v452, %v560
        %v646 = vadd.f32 %v453, %v563
        %v647 = vadd.f32 %v454, %v566
        %v648 = vadd.f32 %v455, %v569
        %v649 = vadd.f32 %v456, %v572
        %v650 = vadd.f32 %v457, %v575
        %v651 = vadd.f32 %v458, %v578
        %v652 = vadd.f32 %v459, %v581
        %v653 = vadd.f32 %v460, %v584
        %v654 = vadd.f32 %v461, %v587
        %v655 = vadd.f32 %v462, %v590
        %v656 = vadd.f32 %v463, %v593
        %v657 = vadd.f32 %v464, %v596
        %v658 = vadd.f32 %v465, %v599
        %v659 = vadd.f32 %v466, %v602
        %v660 = vadd.f32 %v467, %v605
        %v661 = vadd.f32 %v468, %v608
        %v662 = vadd.f32 %v469, %v611
        %v663 = vadd.f32 %v470, %v614
        %v664 = vadd.f32 %v471, %v617
        %v665 = vadd.f32 %v472, %v620
        %v666 = vadd.f32 %v473, %v623
        %v667 = vadd.f32 %v474, %v626
        %v668 = vadd.f32 %v475, %v629
        %v669 = vadd.f32 %v476, %v632
        %v670 = vadd.f32 %v477, %v635
        %v671 = vadd.f32 %v478, %v638
        %672 = vst [vmem:[#allocation2] sm:$0xff] %v640
        %673 = vst [vmem:[#allocation2 + $0x8] sm:$0xff] %v641
        %674 = vst [vmem:[#allocation2 + $0x10] sm:$0xff] %v642
        %675 = vst [vmem:[#allocation2 + $0x18] sm:$0xff] %v643
        %676 = vst [vmem:[#allocation2 + $0x20] sm:$0xff] %v644
        %677 = vst [vmem:[#allocation2 + $0x28] sm:$0xff] %v645
        %678 = vst [vmem:[#allocation2 + $0x30] sm:$0xff] %v646
        %679 = vst [vmem:[#allocation2 + $0x38] sm:$0xff] %v647
        %680 = vst [vmem:[#allocation2 + $0x40] sm:$0xff] %v648
        %681 = vst [vmem:[#allocation2 + $0x48] sm:$0xff] %v649
        %682 = vst [vmem:[#allocation2 + $0x50] sm:$0xff] %v650
        %683 = vst [vmem:[#allocation2 + $0x58] sm:$0xff] %v651
        %684 = vst [vmem:[#allocation2 + $0x60] sm:$0xff] %v652
        %685 = vst [vmem:[#allocation2 + $0x68] sm:$0xff] %v653
        %686 = vst [vmem:[#allocation2 + $0x70] sm:$0xff] %v654
        %687 = vst [vmem:[#allocation2 + $0x78] sm:$0xff] %v655
        %688 = vst [vmem:[#allocation2 + $0x80] sm:$0xff] %v656
        %689 = vst [vmem:[#allocation2 + $0x88] sm:$0xff] %v657
        %690 = vst [vmem:[#allocation2 + $0x90] sm:$0xff] %v658
        %691 = vst [vmem:[#allocation2 + $0x98] sm:$0xff] %v659
        %692 = vst [vmem:[#allocation2 + $0xa0] sm:$0xff] %v660
        %693 = vst [vmem:[#allocation2 + $0xa8] sm:$0xff] %v661
        %694 = vst [vmem:[#allocation2 + $0xb0] sm:$0xff] %v662
        %695 = vst [vmem:[#allocation2 + $0xb8] sm:$0xff] %v663
        %696 = vst [vmem:[#allocation2 + $0xc0] sm:$0xff] %v664
        %697 = vst [vmem:[#allocation2 + $0xc8] sm:$0xff] %v665
        %698 = vst [vmem:[#allocation2 + $0xd0] sm:$0xff] %v666
        %699 = vst [vmem:[#allocation2 + $0xd8] sm:$0xff] %v667
        %700 = vst [vmem:[#allocation2 + $0xe0] sm:$0xff] %v668
        %701 = vst [vmem:[#allocation2 + $0xe8] sm:$0xff] %v669
        %702 = vst [vmem:[#allocation2 + $0xf0] sm:$0xff] %v670
        %703 = vst [vmem:[#allocation2 + $0xf8] sm:$0xff] %v671
        %p704 = scmp.eq.s32.totalorder %s21, 1
        // Predicated region
        $region75: #{generator_forward.19} parent=65 // pred_check
          %p705 = pneg %p704
        $region76: #{generator_forward.19} parent=65 // pred_check_branch
          %707 = sbr.rel (%p705) target = $region78
        $region77: #{generator_forward.19} parent=65 // pred_region
          %v708 = vld [vmem:[#allocation2] sm:$0xff]
          %v709 = vld [vmem:[#allocation2 + $0x8] sm:$0xff]
          %v710 = vld [vmem:[#allocation2 + $0x10] sm:$0xff]
          %v711 = vld [vmem:[#allocation2 + $0x18] sm:$0xff]
          %v712 = vld [vmem:[#allocation2 + $0x20] sm:$0xff]
          %v713 = vld [vmem:[#allocation2 + $0x28] sm:$0xff]
          %v714 = vld [vmem:[#allocation2 + $0x30] sm:$0xff]
          %v715 = vld [vmem:[#allocation2 + $0x38] sm:$0xff]
          %v716 = vld [vmem:[#allocation2 + $0x40] sm:$0xff]
          %v717 = vld [vmem:[#allocation2 + $0x48] sm:$0xff]
          %v718 = vld [vmem:[#allocation2 + $0x50] sm:$0xff]
          %v719 = vld [vmem:[#allocation2 + $0x58] sm:$0xff]
          %v720 = vld [vmem:[#allocation2 + $0x60] sm:$0xff]
          %v721 = vld [vmem:[#allocation2 + $0x68] sm:$0xff]
          %v722 = vld [vmem:[#allocation2 + $0x70] sm:$0xff]
          %v723 = vld [vmem:[#allocation2 + $0x78] sm:$0xff]
          %v724 = vld [vmem:[#allocation2 + $0x80] sm:$0xff]
          %v725 = vld [vmem:[#allocation2 + $0x88] sm:$0xff]
          %v726 = vld [vmem:[#allocation2 + $0x90] sm:$0xff]
          %v727 = vld [vmem:[#allocation2 + $0x98] sm:$0xff]
          %v728 = vld [vmem:[#allocation2 + $0xa0] sm:$0xff]
          %v729 = vld [vmem:[#allocation2 + $0xa8] sm:$0xff]
          %v730 = vld [vmem:[#allocation2 + $0xb0] sm:$0xff]
          %v731 = vld [vmem:[#allocation2 + $0xb8] sm:$0xff]
          %v732 = vld [vmem:[#allocation2 + $0xc0] sm:$0xff]
          %v733 = vld [vmem:[#allocation2 + $0xc8] sm:$0xff]
          %v734 = vld [vmem:[#allocation2 + $0xd0] sm:$0xff]
          %v735 = vld [vmem:[#allocation2 + $0xd8] sm:$0xff]
          %v736 = vld [vmem:[#allocation2 + $0xe0] sm:$0xff]
          %v737 = vld [vmem:[#allocation2 + $0xe8] sm:$0xff]
          %v738 = vld [vmem:[#allocation2 + $0xf0] sm:$0xff]
          %v739 = vld [vmem:[#allocation2 + $0xf8] sm:$0xff]
          %v740 = vld [vmem:[%s401] sm:$0x1]
          %v742 = vperm.slane %v740, 0
          %v744 = vadd.f32 %v708, %v742
          %v745 = vadd.f32 %v709, %v742
          %v746 = vadd.f32 %v710, %v742
          %v747 = vadd.f32 %v711, %v742
          %v748 = vadd.f32 %v712, %v742
          %v749 = vadd.f32 %v713, %v742
          %v750 = vadd.f32 %v714, %v742
          %v751 = vadd.f32 %v715, %v742
          %v752 = vadd.f32 %v716, %v742
          %v753 = vadd.f32 %v717, %v742
          %v754 = vadd.f32 %v718, %v742
          %v755 = vadd.f32 %v719, %v742
          %v756 = vadd.f32 %v720, %v742
          %v757 = vadd.f32 %v721, %v742
          %v758 = vadd.f32 %v722, %v742
          %v759 = vadd.f32 %v723, %v742
          %v760 = vadd.f32 %v724, %v742
          %v761 = vadd.f32 %v725, %v742
          %v762 = vadd.f32 %v726, %v742
          %v763 = vadd.f32 %v727, %v742
          %v764 = vadd.f32 %v728, %v742
          %v765 = vadd.f32 %v729, %v742
          %v766 = vadd.f32 %v730, %v742
          %v767 = vadd.f32 %v731, %v742
          %v768 = vadd.f32 %v732, %v742
          %v769 = vadd.f32 %v733, %v742
          %v770 = vadd.f32 %v734, %v742
          %v771 = vadd.f32 %v735, %v742
          %v772 = vadd.f32 %v736, %v742
          %v773 = vadd.f32 %v737, %v742
          %v774 = vadd.f32 %v738, %v742
          %v775 = vadd.f32 %v739, %v742
          %776 = vst [vmem:[%s409] sm:$0xff] %v744
          %777 = vst [vmem:[%s409 + $0x8] sm:$0xff] %v745
          %778 = vst [vmem:[%s409 + $0x10] sm:$0xff] %v746
          %779 = vst [vmem:[%s409 + $0x18] sm:$0xff] %v747
          %780 = vst [vmem:[%s409 + $0x20] sm:$0xff] %v748
          %781 = vst [vmem:[%s409 + $0x28] sm:$0xff] %v749
          %782 = vst [vmem:[%s409 + $0x30] sm:$0xff] %v750
          %783 = vst [vmem:[%s409 + $0x38] sm:$0xff] %v751
          %784 = vst [vmem:[%s409 + $0x40] sm:$0xff] %v752
          %785 = vst [vmem:[%s409 + $0x48] sm:$0xff] %v753
          %786 = vst [vmem:[%s409 + $0x50] sm:$0xff] %v754
          %787 = vst [vmem:[%s409 + $0x58] sm:$0xff] %v755
          %788 = vst [vmem:[%s409 + $0x60] sm:$0xff] %v756
          %789 = vst [vmem:[%s409 + $0x68] sm:$0xff] %v757
          %790 = vst [vmem:[%s409 + $0x70] sm:$0xff] %v758
          %791 = vst [vmem:[%s409 + $0x78] sm:$0xff] %v759
          %792 = vst [vmem:[%s409 + $0x80] sm:$0xff] %v760
          %793 = vst [vmem:[%s409 + $0x88] sm:$0xff] %v761
          %794 = vst [vmem:[%s409 + $0x90] sm:$0xff] %v762
          %795 = vst [vmem:[%s409 + $0x98] sm:$0xff] %v763
          %796 = vst [vmem:[%s409 + $0xa0] sm:$0xff] %v764
          %797 = vst [vmem:[%s409 + $0xa8] sm:$0xff] %v765
          %798 = vst [vmem:[%s409 + $0xb0] sm:$0xff] %v766
          %799 = vst [vmem:[%s409 + $0xb8] sm:$0xff] %v767
          %800 = vst [vmem:[%s409 + $0xc0] sm:$0xff] %v768
          %801 = vst [vmem:[%s409 + $0xc8] sm:$0xff] %v769
          %802 = vst [vmem:[%s409 + $0xd0] sm:$0xff] %v770
          %803 = vst [vmem:[%s409 + $0xd8] sm:$0xff] %v771
          %804 = vst [vmem:[%s409 + $0xe0] sm:$0xff] %v772
          %805 = vst [vmem:[%s409 + $0xe8] sm:$0xff] %v773
          %806 = vst [vmem:[%s409 + $0xf0] sm:$0xff] %v774
          %807 = vst [vmem:[%s409 + $0xf8] sm:$0xff] %v775
        $region78: #{generator_forward.19} parent=65 // pred_fallthru
          _
        %s808 = smul.u32 32, %s19
        %p809 = scmp.lt.s32.totalorder %s808, 63
        %s810 = scalar_select %p809, %s808, 63
        %p811 = scmp.lt.s32.totalorder %s20, 0
        %s812 = scalar_select %p811, %s20, 0
        %s813 = sadd.s32 %s812, %s810
        %s814 = smul.addr %s813, 8
        %s815 = scalar_lea.vmem %s3, %s814
        // Predicated region
        $region79: #{generator_forward.19} parent=65 // pred_check
          %p816 = pneg %p135
        $region80: #{generator_forward.19} parent=65 // pred_check_branch
          %818 = sbr.rel (%p816) target = $region82
        $region81: #{generator_forward.19} parent=65 // pred_region
          %s819 = smul.u32 32, %s19
        $region82: #{generator_forward.19} parent=65 // pred_fallthru
          _
      $region66: #{generator_forward.19} parent=5 // pred_fallthru
        _
      %p820 = scmp.le.s32.totalorder 2, %s9
      // Predicated region
      $region83: #{generator_forward.19} parent=5 // pred_check
        %p821 = pneg %p820
      $region84: #{generator_forward.19} parent=5 // pred_check_branch
        %823 = sbr.rel (%p821) target = $region86
      $region85: #{generator_forward.19} parent=5 // pred_region
        %s824 = ssub.s32 %s9, 2
        // Predicated region
        $region87: #{generator_forward.19} parent=85 // pred_check
          %p825 = pneg %p141
        $region88: #{generator_forward.19} parent=85 // pred_check_branch
          %827 = sbr.rel (%p825) target = $region90
        $region89: #{generator_forward.19} parent=85 // pred_region
          %s828 = smul.u32 32, %s22
          %p829 = scmp.lt.s32.totalorder %s828, 63
          %s830 = scalar_select %p829, %s828, 63
          %p831 = scmp.lt.s32.totalorder %s23, 0
          %s832 = scalar_select %p831, %s23, 0
          %s833 = sadd.s32 %s832, %s830
          %s834 = smul.addr %s833, 8
          %s835 = scalar_lea.vmem %s3, %s834
        $region90: #{generator_forward.19} parent=85 // pred_fallthru
          _
      $region86: #{generator_forward.19} parent=5 // pred_fallthru
        _
    $region6: #{generator_forward.19} parent=1 // loop_footer
      %s13 = sadd.s32 1, %s9
    $region7: #{generator_forward.19} parent=1 // loop_footer_branch
      %8 = sbr.rel target = $region3
    $region8: #{generator_forward.19} parent=1 // loop_exit
      _

// kernel: generator_forward.22
$region0: #{generator_forward.22}
  #allocation0 [shape = 'u32[]', space=smem, size = 0x4, offset = 0x4, fixed_abs, tag = 'smem constant byte address 0x4 - core index']
  #allocation1 [shape = 'u32[72,128]{1,0:T(1,128)}', space=vmem, size = 0x9000, scoped, tag = 'internal scratch']
  %s0 = inlined_call_operand.vmem [shape: f32[128,16], index: 0, kind: input, shape index: {}]
  %s1 = inlined_call_operand.vmem [shape: f32[1,16], index: 1, kind: input, shape index: {}]
  %s2 = inlined_call_operand.vmem [shape: f32[1,16], index: 2, kind: input, shape index: {}]
  %s3 = inlined_call_operand.vmem [shape: f32[128,16], index: 3, kind: output, shape index: {}]
  %s4 = sld [smem:[#allocation0]]
  $region22: #{generator_forward.22} parent=0
    _
  %s6 = ssub.s32 1, %s4
  %s7 = scalar_select 0, %s6, %s4
  // Predicated region
  $region2: #{generator_forward.22} parent=0 // pred_check
    _
  $region3: #{generator_forward.22} parent=0 // pred_check_branch
    %9 = sbr.rel (0) target = $region5
  $region4: #{generator_forward.22} parent=0 // pred_region
    _
  $region5: #{generator_forward.22} parent=0 // pred_fallthru
    _
  // Predicated region
  $region6: #{generator_forward.22} parent=0 // pred_check
    _
  $region7: #{generator_forward.22} parent=0 // pred_check_branch
    %11 = sbr.rel (0) target = $region9
  $region8: #{generator_forward.22} parent=0 // pred_region
    _
  $region9: #{generator_forward.22} parent=0 // pred_fallthru
    _
  // Predicated region
  $region10: #{generator_forward.22} parent=0 // pred_check
    _
  $region11: #{generator_forward.22} parent=0 // pred_check_branch
    %13 = sbr.rel (0) target = $region13
  $region12: #{generator_forward.22} parent=0 // pred_region
    _
  $region13: #{generator_forward.22} parent=0 // pred_fallthru
    _
  %v14 = vld [vmem:[%s0] sm:$0xff]
  %v15 = vld [vmem:[%s0 + $0x8] sm:$0xff]
  %v16 = vld [vmem:[%s0 + $0x10] sm:$0xff]
  %v17 = vld [vmem:[%s0 + $0x18] sm:$0xff]
  %v18 = vld [vmem:[%s0 + $0x20] sm:$0xff]
  %v19 = vld [vmem:[%s0 + $0x28] sm:$0xff]
  %v20 = vld [vmem:[%s0 + $0x30] sm:$0xff]
  %v21 = vld [vmem:[%s0 + $0x38] sm:$0xff]
  %v22 = vld [vmem:[%s0 + $0x40] sm:$0xff]
  %v23 = vld [vmem:[%s0 + $0x48] sm:$0xff]
  %v24 = vld [vmem:[%s0 + $0x50] sm:$0xff]
  %v25 = vld [vmem:[%s0 + $0x58] sm:$0xff]
  %v26 = vld [vmem:[%s0 + $0x60] sm:$0xff]
  %v27 = vld [vmem:[%s0 + $0x68] sm:$0xff]
  %v28 = vld [vmem:[%s0 + $0x70] sm:$0xff]
  %v29 = vld [vmem:[%s0 + $0x78] sm:$0xff]
  %vm30 = vcmask 130048
  %v31 = vsel %vm30, %v14, 0.0
  %v32 = vsel %vm30, %v15, 0.0
  %v33 = vadd.f32 %v31, %v32
  %v34 = vsel %vm30, %v16, 0.0
  %v35 = vadd.f32 %v33, %v34
  %v36 = vsel %vm30, %v17, 0.0
  %v37 = vadd.f32 %v35, %v36
  %v38 = vsel %vm30, %v18, 0.0
  %v39 = vadd.f32 %v37, %v38
  %v40 = vsel %vm30, %v19, 0.0
  %v41 = vadd.f32 %v39, %v40
  %v42 = vsel %vm30, %v20, 0.0
  %v43 = vadd.f32 %v41, %v42
  %v44 = vsel %vm30, %v21, 0.0
  %v45 = vadd.f32 %v43, %v44
  %v46 = vsel %vm30, %v22, 0.0
  %v47 = vadd.f32 %v45, %v46
  %v48 = vsel %vm30, %v23, 0.0
  %v49 = vadd.f32 %v47, %v48
  %v50 = vsel %vm30, %v24, 0.0
  %v51 = vadd.f32 %v49, %v50
  %v52 = vsel %vm30, %v25, 0.0
  %v53 = vadd.f32 %v51, %v52
  %v54 = vsel %vm30, %v26, 0.0
  %v55 = vadd.f32 %v53, %v54
  %v56 = vsel %vm30, %v27, 0.0
  %v57 = vadd.f32 %v55, %v56
  %v58 = vsel %vm30, %v28, 0.0
  %v59 = vadd.f32 %v57, %v58
  %v60 = vsel %vm30, %v29, 0.0
  %v61 = vadd.f32 %v59, %v60
  %v62 = vrot.slane %v61, 4
  %v63 = vadd.f32 %v61, %v62
  %v64 = vrot.slane %v63, 2
  %v65 = vadd.f32 %v63, %v64
  %v66 = vrot.slane %v65, 1
  %v67 = vadd.f32 %v65, %v66
  %v68 = vrcp.pop 128.0
  %v69 = vmul.f32 128.0, %v68
  %v70 = vsub.f32 1.0, %v69
  %v71 = vmul.f32 %v68, %v70
  %v72 = vadd.f32 %v68, %v71
  %vm73 = vweird.f32 %v68
  %v74 = vsel %vm73, %v68, %v72
  %v75 = vmul.f32 %v67, %v74
  %v76 = vsub.f32 %v14, %v75
  %v77 = vsub.f32 %v15, %v75
  %v78 = vsub.f32 %v16, %v75
  %v79 = vsub.f32 %v17, %v75
  %v80 = vsub.f32 %v18, %v75
  %v81 = vsub.f32 %v19, %v75
  %v82 = vsub.f32 %v20, %v75
  %v83 = vsub.f32 %v21, %v75
  %v84 = vsub.f32 %v22, %v75
  %v85 = vsub.f32 %v23, %v75
  %v86 = vsub.f32 %v24, %v75
  %v87 = vsub.f32 %v25, %v75
  %v88 = vsub.f32 %v26, %v75
  %v89 = vsub.f32 %v27, %v75
  %v90 = vsub.f32 %v28, %v75
  %v91 = vsub.f32 %v29, %v75
  %v92 = vmul.f32 %v76, %v76
  %v93 = vmul.f32 %v77, %v77
  %v94 = vmul.f32 %v78, %v78
  %v95 = vmul.f32 %v79, %v79
  %v96 = vmul.f32 %v80, %v80
  %v97 = vmul.f32 %v81, %v81
  %v98 = vmul.f32 %v82, %v82
  %v99 = vmul.f32 %v83, %v83
  %v100 = vmul.f32 %v84, %v84
  %v101 = vmul.f32 %v85, %v85
  %v102 = vmul.f32 %v86, %v86
  %v103 = vmul.f32 %v87, %v87
  %v104 = vmul.f32 %v88, %v88
  %v105 = vmul.f32 %v89, %v89
  %v106 = vmul.f32 %v90, %v90
  %v107 = vmul.f32 %v91, %v91
  %v108 = vsel %vm30, %v92, 0.0
  %v109 = vsel %vm30, %v93, 0.0
  %v110 = vadd.f32 %v108, %v109
  %v111 = vsel %vm30, %v94, 0.0
  %v112 = vadd.f32 %v110, %v111
  %v113 = vsel %vm30, %v95, 0.0
  %v114 = vadd.f32 %v112, %v113
  %v115 = vsel %vm30, %v96, 0.0
  %v116 = vadd.f32 %v114, %v115
  %v117 = vsel %vm30, %v97, 0.0
  %v118 = vadd.f32 %v116, %v117
  %v119 = vsel %vm30, %v98, 0.0
  %v120 = vadd.f32 %v118, %v119
  %v121 = vsel %vm30, %v99, 0.0
  %v122 = vadd.f32 %v120, %v121
  %v123 = vsel %vm30, %v100, 0.0
  %v124 = vadd.f32 %v122, %v123
  %v125 = vsel %vm30, %v101, 0.0
  %v126 = vadd.f32 %v124, %v125
  %v127 = vsel %vm30, %v102, 0.0
  %v128 = vadd.f32 %v126, %v127
  %v129 = vsel %vm30, %v103, 0.0
  %v130 = vadd.f32 %v128, %v129
  %v131 = vsel %vm30, %v104, 0.0
  %v132 = vadd.f32 %v130, %v131
  %v133 = vsel %vm30, %v105, 0.0
  %v134 = vadd.f32 %v132, %v133
  %v135 = vsel %vm30, %v106, 0.0
  %v136 = vadd.f32 %v134, %v135
  %v137 = vsel %vm30, %v107, 0.0
  %v138 = vadd.f32 %v136, %v137
  %v139 = vrot.slane %v138, 4
  %v140 = vadd.f32 %v138, %v139
  %v141 = vrot.slane %v140, 2
  %v142 = vadd.f32 %v140, %v141
  %v143 = vrot.slane %v142, 1
  %v144 = vadd.f32 %v142, %v143
  %v145 = vmul.f32 %v144, %v74
  %v146 = vadd.f32 %v145, 1e-05
  %v147 = vrsqrt.pop %v146
  %v148 = vmul.f32 %v147, %v146
  %v149 = vmul.f32 %v148, %v147
  %v150 = vmul.f32 0.5, %v149
  %v151 = vsub.f32 1.5, %v150
  %v152 = vmul.f32 %v147, %v151
  %vm153 = vweird.f32 %v146
  %vm154 = vweird.f32 %v147
  %vm155 = vmor %vm153, %vm154
  %v156 = vsel %vm155, %v147, %v152
  %v157 = vmul.f32 %v76, %v156
  %v158 = vmul.f32 %v77, %v156
  %v159 = vmul.f32 %v78, %v156
  %v160 = vmul.f32 %v79, %v156
  %v161 = vmul.f32 %v80, %v156
  %v162 = vmul.f32 %v81, %v156
  %v163 = vmul.f32 %v82, %v156
  %v164 = vmul.f32 %v83, %v156
  %v165 = vmul.f32 %v84, %v156
  %v166 = vmul.f32 %v85, %v156
  %v167 = vmul.f32 %v86, %v156
  %v168 = vmul.f32 %v87, %v156
  %v169 = vmul.f32 %v88, %v156
  %v170 = vmul.f32 %v89, %v156
  %v171 = vmul.f32 %v90, %v156
  %v172 = vmul.f32 %v91, %v156
  %v173 = vld [vmem:[%s1] sm:$0x1]
  %v175 = vperm.slane %v173, 0
  %v177 = vmul.f32 %v157, %v175
  %v178 = vmul.f32 %v158, %v175
  %v179 = vmul.f32 %v159, %v175
  %v180 = vmul.f32 %v160, %v175
  %v181 = vmul.f32 %v161, %v175
  %v182 = vmul.f32 %v162, %v175
  %v183 = vmul.f32 %v163, %v175
  %v184 = vmul.f32 %v164, %v175
  %v185 = vmul.f32 %v165, %v175
  %v186 = vmul.f32 %v166, %v175
  %v187 = vmul.f32 %v167, %v175
  %v188 = vmul.f32 %v168, %v175
  %v189 = vmul.f32 %v169, %v175
  %v190 = vmul.f32 %v170, %v175
  %v191 = vmul.f32 %v171, %v175
  %v192 = vmul.f32 %v172, %v175
  %v193 = vld [vmem:[%s2] sm:$0x1]
  %v195 = vperm.slane %v193, 0
  %v197 = vadd.f32 %v177, %v195
  %v198 = vadd.f32 %v178, %v195
  %v199 = vadd.f32 %v179, %v195
  %v200 = vadd.f32 %v180, %v195
  %v201 = vadd.f32 %v181, %v195
  %v202 = vadd.f32 %v182, %v195
  %v203 = vadd.f32 %v183, %v195
  %v204 = vadd.f32 %v184, %v195
  %v205 = vadd.f32 %v185, %v195
  %v206 = vadd.f32 %v186, %v195
  %v207 = vadd.f32 %v187, %v195
  %v208 = vadd.f32 %v188, %v195
  %v209 = vadd.f32 %v189, %v195
  %v210 = vadd.f32 %v190, %v195
  %v211 = vadd.f32 %v191, %v195
  %v212 = vadd.f32 %v192, %v195
  %v213 = vmax.f32 %v197, 0.0
  %v214 = vmax.f32 %v198, 0.0
  %v215 = vmax.f32 %v199, 0.0
  %v216 = vmax.f32 %v200, 0.0
  %v217 = vmax.f32 %v201, 0.0
  %v218 = vmax.f32 %v202, 0.0
  %v219 = vmax.f32 %v203, 0.0
  %v220 = vmax.f32 %v204, 0.0
  %v221 = vmax.f32 %v205, 0.0
  %v222 = vmax.f32 %v206, 0.0
  %v223 = vmax.f32 %v207, 0.0
  %v224 = vmax.f32 %v208, 0.0
  %v225 = vmax.f32 %v209, 0.0
  %v226 = vmax.f32 %v210, 0.0
  %v227 = vmax.f32 %v211, 0.0
  %v228 = vmax.f32 %v212, 0.0
  %229 = vst.msk [vmem:[%s3] sm:$0xff] %vm30, %v213
  %230 = vst.msk [vmem:[%s3 + $0x8] sm:$0xff] %vm30, %v214
  %231 = vst.msk [vmem:[%s3 + $0x10] sm:$0xff] %vm30, %v215
  %232 = vst.msk [vmem:[%s3 + $0x18] sm:$0xff] %vm30, %v216
  %233 = vst.msk [vmem:[%s3 + $0x20] sm:$0xff] %vm30, %v217
  %234 = vst.msk [vmem:[%s3 + $0x28] sm:$0xff] %vm30, %v218
  %235 = vst.msk [vmem:[%s3 + $0x30] sm:$0xff] %vm30, %v219
  %236 = vst.msk [vmem:[%s3 + $0x38] sm:$0xff] %vm30, %v220
  %237 = vst.msk [vmem:[%s3 + $0x40] sm:$0xff] %vm30, %v221
  %238 = vst.msk [vmem:[%s3 + $0x48] sm:$0xff] %vm30, %v222
  %239 = vst.msk [vmem:[%s3 + $0x50] sm:$0xff] %vm30, %v223
  %240 = vst.msk [vmem:[%s3 + $0x58] sm:$0xff] %vm30, %v224
  %241 = vst.msk [vmem:[%s3 + $0x60] sm:$0xff] %vm30, %v225
  %242 = vst.msk [vmem:[%s3 + $0x68] sm:$0xff] %vm30, %v226
  %243 = vst.msk [vmem:[%s3 + $0x70] sm:$0xff] %vm30, %v227
  %244 = vst.msk [vmem:[%s3 + $0x78] sm:$0xff] %vm30, %v228
  // Predicated region
  $region14: #{generator_forward.22} parent=0 // pred_check
    _
  $region15: #{generator_forward.22} parent=0 // pred_check_branch
    %246 = sbr.rel (0) target = $region17
  $region16: #{generator_forward.22} parent=0 // pred_region
    _
  $region17: #{generator_forward.22} parent=0 // pred_fallthru
    _
  // Predicated region
  $region18: #{generator_forward.22} parent=0 // pred_check
    _
  $region19: #{generator_forward.22} parent=0 // pred_check_branch
    %248 = sbr.rel (0) target = $region21
  $region20: #{generator_forward.22} parent=0 // pred_region
    _
  $region21: #{generator_forward.22} parent=0 // pred_fallthru
    _

// kernel: generator_forward.21
$region0: #{generator_forward.21}
  #allocation0 [shape = 'u32[]', space=smem, size = 0x4, offset = 0x4, fixed_abs, tag = 'smem constant byte address 0x4 - core index']
  #allocation1 [shape = 'u32[72,128]{1,0:T(1,128)}', space=vmem, size = 0x9000, scoped, tag = 'internal scratch']
  #allocation2 [shape = 'f32[128,128]{1,0:T(8,128)}', space=vmem, size = 0x10000, scoped, tag = 'scratch operand']
  %s0 = inlined_call_operand.vmem [shape: f32[128,128], index: 0, kind: input, shape index: {}]
  %s1 = inlined_call_operand.vmem [shape: f32[128,128], index: 1, kind: input, shape index: {}]
  %s2 = inlined_call_operand.vmem [shape: f32[1,128], index: 2, kind: input, shape index: {}]
  %s3 = inlined_call_operand.vmem [shape: f32[128,128], index: 3, kind: output, shape index: {}]
  %s4 = sld [smem:[#allocation0]]
  $region30: #{generator_forward.21} parent=0
    _
  %s6 = ssub.s32 1, %s4
  %s7 = scalar_select 0, %s6, %s4
  // Predicated region
  $region2: #{generator_forward.21} parent=0 // pred_check
    _
  $region3: #{generator_forward.21} parent=0 // pred_check_branch
    %9 = sbr.rel (0) target = $region5
  $region4: #{generator_forward.21} parent=0 // pred_region
    _
  $region5: #{generator_forward.21} parent=0 // pred_fallthru
    _
  // Predicated region
  $region6: #{generator_forward.21} parent=0 // pred_check
    _
  $region7: #{generator_forward.21} parent=0 // pred_check_branch
    %11 = sbr.rel (0) target = $region9
  $region8: #{generator_forward.21} parent=0 // pred_region
    _
  $region9: #{generator_forward.21} parent=0 // pred_fallthru
    _
  // Predicated region
  $region10: #{generator_forward.21} parent=0 // pred_check
    _
  $region11: #{generator_forward.21} parent=0 // pred_check_branch
    %13 = sbr.rel (0) target = $region13
  $region12: #{generator_forward.21} parent=0 // pred_region
    _
  $region13: #{generator_forward.21} parent=0 // pred_fallthru
    _
  %p14 = scmp.eq.s32.totalorder 0, 0
  // Predicated region
  $region14: #{generator_forward.21} parent=0 // pred_check
    %p15 = pneg %p14
  $region15: #{generator_forward.21} parent=0 // pred_check_branch
    %17 = sbr.rel (%p15) target = $region17
  $region16: #{generator_forward.21} parent=0 // pred_region
    %18 = vst [vmem:[#allocation2] sm:$0xff] 0.0
    %19 = vst [vmem:[#allocation2 + $0x8] sm:$0xff] 0.0
    %20 = vst [vmem:[#allocation2 + $0x10] sm:$0xff] 0.0
    %21 = vst [vmem:[#allocation2 + $0x18] sm:$0xff] 0.0
    %22 = vst [vmem:[#allocation2 + $0x20] sm:$0xff] 0.0
    %23 = vst [vmem:[#allocation2 + $0x28] sm:$0xff] 0.0
    %24 = vst [vmem:[#allocation2 + $0x30] sm:$0xff] 0.0
    %25 = vst [vmem:[#allocation2 + $0x38] sm:$0xff] 0.0
    %26 = vst [vmem:[#allocation2 + $0x40] sm:$0xff] 0.0
    %27 = vst [vmem:[#allocation2 + $0x48] sm:$0xff] 0.0
    %28 = vst [vmem:[#allocation2 + $0x50] sm:$0xff] 0.0
    %29 = vst [vmem:[#allocation2 + $0x58] sm:$0xff] 0.0
    %30 = vst [vmem:[#allocation2 + $0x60] sm:$0xff] 0.0
    %31 = vst [vmem:[#allocation2 + $0x68] sm:$0xff] 0.0
    %32 = vst [vmem:[#allocation2 + $0x70] sm:$0xff] 0.0
    %33 = vst [vmem:[#allocation2 + $0x78] sm:$0xff] 0.0
  $region17: #{generator_forward.21} parent=0 // pred_fallthru
    _
  %v34 = vld [vmem:[#allocation2] sm:$0xff]
  %v35 = vld [vmem:[#allocation2 + $0x8] sm:$0xff]
  %v36 = vld [vmem:[#allocation2 + $0x10] sm:$0xff]
  %v37 = vld [vmem:[#allocation2 + $0x18] sm:$0xff]
  %v38 = vld [vmem:[#allocation2 + $0x20] sm:$0xff]
  %v39 = vld [vmem:[#allocation2 + $0x28] sm:$0xff]
  %v40 = vld [vmem:[#allocation2 + $0x30] sm:$0xff]
  %v41 = vld [vmem:[#allocation2 + $0x38] sm:$0xff]
  %v42 = vld [vmem:[#allocation2 + $0x40] sm:$0xff]
  %v43 = vld [vmem:[#allocation2 + $0x48] sm:$0xff]
  %v44 = vld [vmem:[#allocation2 + $0x50] sm:$0xff]
  %v45 = vld [vmem:[#allocation2 + $0x58] sm:$0xff]
  %v46 = vld [vmem:[#allocation2 + $0x60] sm:$0xff]
  %v47 = vld [vmem:[#allocation2 + $0x68] sm:$0xff]
  %v48 = vld [vmem:[#allocation2 + $0x70] sm:$0xff]
  %v49 = vld [vmem:[#allocation2 + $0x78] sm:$0xff]
  %v50 = vld [vmem:[%s0] sm:$0xff]
  %v51 = vld [vmem:[%s0 + $0x8] sm:$0xff]
  %v52 = vld [vmem:[%s0 + $0x10] sm:$0xff]
  %v53 = vld [vmem:[%s0 + $0x18] sm:$0xff]
  %v54 = vld [vmem:[%s0 + $0x20] sm:$0xff]
  %v55 = vld [vmem:[%s0 + $0x28] sm:$0xff]
  %v56 = vld [vmem:[%s0 + $0x30] sm:$0xff]
  %v57 = vld [vmem:[%s0 + $0x38] sm:$0xff]
  %v58 = vld [vmem:[%s0 + $0x40] sm:$0xff]
  %v59 = vld [vmem:[%s0 + $0x48] sm:$0xff]
  %v60 = vld [vmem:[%s0 + $0x50] sm:$0xff]
  %v61 = vld [vmem:[%s0 + $0x58] sm:$0xff]
  %v62 = vld [vmem:[%s0 + $0x60] sm:$0xff]
  %v63 = vld [vmem:[%s0 + $0x68] sm:$0xff]
  %v64 = vld [vmem:[%s0 + $0x70] sm:$0xff]
  %v65 = vld [vmem:[%s0 + $0x78] sm:$0xff]
  %v66 = vld [vmem:[%s1] sm:$0xff]
  %v67 = vld [vmem:[%s1 + $0x8] sm:$0xff]
  %v68 = vld [vmem:[%s1 + $0x10] sm:$0xff]
  %v69 = vld [vmem:[%s1 + $0x18] sm:$0xff]
  %v70 = vld [vmem:[%s1 + $0x20] sm:$0xff]
  %v71 = vld [vmem:[%s1 + $0x28] sm:$0xff]
  %v72 = vld [vmem:[%s1 + $0x30] sm:$0xff]
  %v73 = vld [vmem:[%s1 + $0x38] sm:$0xff]
  %v74 = vld [vmem:[%s1 + $0x40] sm:$0xff]
  %v75 = vld [vmem:[%s1 + $0x48] sm:$0xff]
  %v76 = vld [vmem:[%s1 + $0x50] sm:$0xff]
  %v77 = vld [vmem:[%s1 + $0x58] sm:$0xff]
  %v78 = vld [vmem:[%s1 + $0x60] sm:$0xff]
  %v79 = vld [vmem:[%s1 + $0x68] sm:$0xff]
  %v80 = vld [vmem:[%s1 + $0x70] sm:$0xff]
  %v81 = vld [vmem:[%s1 + $0x78] sm:$0xff]
  %82 = vmatpush.msra.mxu0 %v81
  %83 = vmatpush.msra.mxu0 %v80
  %84 = vmatpush.msra.mxu0 %v79
  %85 = vmatpush.msra.mxu0 %v78
  %86 = vmatpush.msra.mxu0 %v77
  %87 = vmatpush.msra.mxu0 %v76
  %88 = vmatpush.msra.mxu0 %v75
  %89 = vmatpush.msra.mxu0 %v74
  %90 = vmatpush.msra.mxu0 %v73
  %91 = vmatpush.msra.mxu0 %v72
  %92 = vmatpush.msra.mxu0 %v71
  %93 = vmatpush.msra.mxu0 %v70
  %94 = vmatpush.msra.mxu0 %v69
  %95 = vmatpush.msra.mxu0 %v68
  %96 = vmatpush.msra.mxu0 %v67
  %97 = vmatpush.msra.mxu0 %v66
  %98 = vmatmul.f32.gmra.mxu0 %v50
  %v99 = vpop.f32.mrf.mxu0
  %v100 = vadd.f32 0.0, %v99
  %101 = vmatmul.f32.gmra.mxu0 %v51
  %v102 = vpop.f32.mrf.mxu0
  %v103 = vadd.f32 0.0, %v102
  %104 = vmatmul.f32.gmra.mxu0 %v52
  %v105 = vpop.f32.mrf.mxu0
  %v106 = vadd.f32 0.0, %v105
  %107 = vmatmul.f32.gmra.mxu0 %v53
  %v108 = vpop.f32.mrf.mxu0
  %v109 = vadd.f32 0.0, %v108
  %110 = vmatmul.f32.gmra.mxu0 %v54
  %v111 = vpop.f32.mrf.mxu0
  %v112 = vadd.f32 0.0, %v111
  %113 = vmatmul.f32.gmra.mxu0 %v55
  %v114 = vpop.f32.mrf.mxu0
  %v115 = vadd.f32 0.0, %v114
  %116 = vmatmul.f32.gmra.mxu0 %v56
  %v117 = vpop.f32.mrf.mxu0
  %v118 = vadd.f32 0.0, %v117
  %119 = vmatmul.f32.gmra.mxu0 %v57
  %v120 = vpop.f32.mrf.mxu0
  %v121 = vadd.f32 0.0, %v120
  %122 = vmatmul.f32.gmra.mxu0 %v58
  %v123 = vpop.f32.mrf.mxu0
  %v124 = vadd.f32 0.0, %v123
  %125 = vmatmul.f32.gmra.mxu0 %v59
  %v126 = vpop.f32.mrf.mxu0
  %v127 = vadd.f32 0.0, %v126
  %128 = vmatmul.f32.gmra.mxu0 %v60
  %v129 = vpop.f32.mrf.mxu0
  %v130 = vadd.f32 0.0, %v129
  %131 = vmatmul.f32.gmra.mxu0 %v61
  %v132 = vpop.f32.mrf.mxu0
  %v133 = vadd.f32 0.0, %v132
  %134 = vmatmul.f32.gmra.mxu0 %v62
  %v135 = vpop.f32.mrf.mxu0
  %v136 = vadd.f32 0.0, %v135
  %137 = vmatmul.f32.gmra.mxu0 %v63
  %v138 = vpop.f32.mrf.mxu0
  %v139 = vadd.f32 0.0, %v138
  %140 = vmatmul.f32.gmra.mxu0 %v64
  %v141 = vpop.f32.mrf.mxu0
  %v142 = vadd.f32 0.0, %v141
  %143 = vmatmul.f32.gmra.mxu0 %v65
  %v144 = vpop.f32.mrf.mxu0
  %v145 = vadd.f32 0.0, %v144
  %146 = vdwg.mxu0
  %v147 = vadd.f32 %v34, %v100
  %v148 = vadd.f32 %v35, %v103
  %v149 = vadd.f32 %v36, %v106
  %v150 = vadd.f32 %v37, %v109
  %v151 = vadd.f32 %v38, %v112
  %v152 = vadd.f32 %v39, %v115
  %v153 = vadd.f32 %v40, %v118
  %v154 = vadd.f32 %v41, %v121
  %v155 = vadd.f32 %v42, %v124
  %v156 = vadd.f32 %v43, %v127
  %v157 = vadd.f32 %v44, %v130
  %v158 = vadd.f32 %v45, %v133
  %v159 = vadd.f32 %v46, %v136
  %v160 = vadd.f32 %v47, %v139
  %v161 = vadd.f32 %v48, %v142
  %v162 = vadd.f32 %v49, %v145
  %163 = vst [vmem:[#allocation2] sm:$0xff] %v147
  %164 = vst [vmem:[#allocation2 + $0x8] sm:$0xff] %v148
  %165 = vst [vmem:[#allocation2 + $0x10] sm:$0xff] %v149
  %166 = vst [vmem:[#allocation2 + $0x18] sm:$0xff] %v150
  %167 = vst [vmem:[#allocation2 + $0x20] sm:$0xff] %v151
  %168 = vst [vmem:[#allocation2 + $0x28] sm:$0xff] %v152
  %169 = vst [vmem:[#allocation2 + $0x30] sm:$0xff] %v153
  %170 = vst [vmem:[#allocation2 + $0x38] sm:$0xff] %v154
  %171 = vst [vmem:[#allocation2 + $0x40] sm:$0xff] %v155
  %172 = vst [vmem:[#allocation2 + $0x48] sm:$0xff] %v156
  %173 = vst [vmem:[#allocation2 + $0x50] sm:$0xff] %v157
  %174 = vst [vmem:[#allocation2 + $0x58] sm:$0xff] %v158
  %175 = vst [vmem:[#allocation2 + $0x60] sm:$0xff] %v159
  %176 = vst [vmem:[#allocation2 + $0x68] sm:$0xff] %v160
  %177 = vst [vmem:[#allocation2 + $0x70] sm:$0xff] %v161
  %178 = vst [vmem:[#allocation2 + $0x78] sm:$0xff] %v162
  // Predicated region
  $region18: #{generator_forward.21} parent=0 // pred_check
    %p179 = pneg %p14
  $region19: #{generator_forward.21} parent=0 // pred_check_branch
    %181 = sbr.rel (%p179) target = $region21
  $region20: #{generator_forward.21} parent=0 // pred_region
    %v182 = vld [vmem:[#allocation2] sm:$0xff]
    %v183 = vld [vmem:[#allocation2 + $0x8] sm:$0xff]
    %v184 = vld [vmem:[#allocation2 + $0x10] sm:$0xff]
    %v185 = vld [vmem:[#allocation2 + $0x18] sm:$0xff]
    %v186 = vld [vmem:[#allocation2 + $0x20] sm:$0xff]
    %v187 = vld [vmem:[#allocation2 + $0x28] sm:$0xff]
    %v188 = vld [vmem:[#allocation2 + $0x30] sm:$0xff]
    %v189 = vld [vmem:[#allocation2 + $0x38] sm:$0xff]
    %v190 = vld [vmem:[#allocation2 + $0x40] sm:$0xff]
    %v191 = vld [vmem:[#allocation2 + $0x48] sm:$0xff]
    %v192 = vld [vmem:[#allocation2 + $0x50] sm:$0xff]
    %v193 = vld [vmem:[#allocation2 + $0x58] sm:$0xff]
    %v194 = vld [vmem:[#allocation2 + $0x60] sm:$0xff]
    %v195 = vld [vmem:[#allocation2 + $0x68] sm:$0xff]
    %v196 = vld [vmem:[#allocation2 + $0x70] sm:$0xff]
    %v197 = vld [vmem:[#allocation2 + $0x78] sm:$0xff]
    %v198 = vld [vmem:[%s2] sm:$0x1]
    %v200 = vperm.slane %v198, 0
    %v202 = vadd.f32 %v182, %v200
    %v203 = vadd.f32 %v183, %v200
    %v204 = vadd.f32 %v184, %v200
    %v205 = vadd.f32 %v185, %v200
    %v206 = vadd.f32 %v186, %v200
    %v207 = vadd.f32 %v187, %v200
    %v208 = vadd.f32 %v188, %v200
    %v209 = vadd.f32 %v189, %v200
    %v210 = vadd.f32 %v190, %v200
    %v211 = vadd.f32 %v191, %v200
    %v212 = vadd.f32 %v192, %v200
    %v213 = vadd.f32 %v193, %v200
    %v214 = vadd.f32 %v194, %v200
    %v215 = vadd.f32 %v195, %v200
    %v216 = vadd.f32 %v196, %v200
    %v217 = vadd.f32 %v197, %v200
    %218 = vst [vmem:[%s3] sm:$0xff] %v202
    %219 = vst [vmem:[%s3 + $0x8] sm:$0xff] %v203
    %220 = vst [vmem:[%s3 + $0x10] sm:$0xff] %v204
    %221 = vst [vmem:[%s3 + $0x18] sm:$0xff] %v205
    %222 = vst [vmem:[%s3 + $0x20] sm:$0xff] %v206
    %223 = vst [vmem:[%s3 + $0x28] sm:$0xff] %v207
    %224 = vst [vmem:[%s3 + $0x30] sm:$0xff] %v208
    %225 = vst [vmem:[%s3 + $0x38] sm:$0xff] %v209
    %226 = vst [vmem:[%s3 + $0x40] sm:$0xff] %v210
    %227 = vst [vmem:[%s3 + $0x48] sm:$0xff] %v211
    %228 = vst [vmem:[%s3 + $0x50] sm:$0xff] %v212
    %229 = vst [vmem:[%s3 + $0x58] sm:$0xff] %v213
    %230 = vst [vmem:[%s3 + $0x60] sm:$0xff] %v214
    %231 = vst [vmem:[%s3 + $0x68] sm:$0xff] %v215
    %232 = vst [vmem:[%s3 + $0x70] sm:$0xff] %v216
    %233 = vst [vmem:[%s3 + $0x78] sm:$0xff] %v217
  $region21: #{generator_forward.21} parent=0 // pred_fallthru
    _
  // Predicated region
  $region22: #{generator_forward.21} parent=0 // pred_check
    _
  $region23: #{generator_forward.21} parent=0 // pred_check_branch
    %235 = sbr.rel (0) target = $region25
  $region24: #{generator_forward.21} parent=0 // pred_region
    _
  $region25: #{generator_forward.21} parent=0 // pred_fallthru
    _
  // Predicated region
  $region26: #{generator_forward.21} parent=0 // pred_check
    _
  $region27: #{generator_forward.21} parent=0 // pred_check_branch
    %237 = sbr.rel (0) target = $region29
  $region28: #{generator_forward.21} parent=0 // pred_region
    _
  $region29: #{generator_forward.21} parent=0 // pred_fallthru
    _

// kernel: generator_forward.23
$region0: #{generator_forward.23}
  #allocation0 [shape = 'u32[]', space=smem, size = 0x4, offset = 0x4, fixed_abs, tag = 'smem constant byte address 0x4 - core index']
  #allocation1 [shape = 'u32[72,128]{1,0:T(1,128)}', space=vmem, size = 0x9000, scoped, tag = 'internal scratch']
  #allocation2 [shape = 'f32[32,128]{1,0:T(8,128)}', space=vmem, size = 0x4000, scoped, tag = 'scratch operand']
  %s0 = inlined_call_operand.vmem [shape: f32[32,256], index: 0, kind: input, shape index: {}]
  %s1 = inlined_call_operand.vmem [shape: f32[256,128], index: 1, kind: input, shape index: {}]
  %s2 = inlined_call_operand.vmem [shape: f32[1,128], index: 2, kind: input, shape index: {}]
  %s3 = inlined_call_operand.vmem [shape: f32[32,128], index: 3, kind: output, shape index: {}]
  %s4 = sld [smem:[#allocation0]]
  $region91: #{generator_forward.23} parent=0
    _
  %s6 = ssub.s32 1, %s4
  %s7 = scalar_select 0, %s6, %s4
  $region1: #{generator_forward.23} parent=0
    #allocation3 [shape = 'u8[32768]{0}', space=vmem, size = 0x8000, scoped, tag = 'input window, operand 0']
    loop: start=0, step=1, limit=4
    $region2: #{generator_forward.23} parent=1 // loop_pre_header
      _
    $region3: #{generator_forward.23} parent=1 // loop_header
      %s9 = sphi 0, %s13
      %p10 = scmp.ge.s32.totalorder %s9, 4
      %s16 = sphi 0, %s35
      %s17 = sphi 0, %s31
      %s18 = sphi 0, %s27
      %s19 = sphi 0, %s16
      %s20 = sphi 0, %s17
      %s21 = sphi 0, %s18
      %s22 = sphi 0, %s19
      %s23 = sphi 0, %s20
      %s24 = sphi 0, %s21
      %s40 = sphi 0, %s42
      %s43 = sphi 0, %s40
      %s44 = sphi 0, %s43
      %s60 = sphi 0, %s44
      %s68 = sphi 0, %s70
      %s71 = sphi 0, %s68
      %s72 = sphi 0, %s71
      %s88 = sphi 0, %s72
      %s94 = sphi 0, %s96
      %s97 = sphi 0, %s94
      %s98 = sphi 0, %s97
      %s114 = sphi 0, %s98
      %s122 = sphi 0, %s124
      %s125 = sphi 0, %s122
      %s126 = sphi 0, %s125
      %s142 = sphi 0, %s126
    $region4: #{generator_forward.23} parent=1 // loop_header_branch
      %12 = sbr.rel (%p10) target = $region8
    $region5: #{generator_forward.23} parent=1 // loop_body
      %s14 = ssub.s32 %s9, 1
      %s15 = ssub.s32 %s9, 2
      %s25 = sadd.s32 1, %s18
      %p26 = scmp.ge.s32.totalorder %s25, 2
      %s27 = scalar_select %p26, 0, %s25
      %s28 = sadd.s32 1, %s17
      %s29 = scalar_select %p26, %s28, %s17
      %p30 = scmp.ge.s32.totalorder %s29, 1
      %s31 = scalar_select %p30, 0, %s29
      %s32 = sadd.s32 1, %s16
      %s33 = scalar_select %p30, %s32, %s16
      %p34 = scmp.ge.s32.totalorder %s33, 1
      %s35 = scalar_select %p34, 0, %s33
      %s36 = ssub.s32 %s16, %s35
      %s37 = ssub.s32 %s18, %s27
      %s38 = sor.u32 %s36, %s37
      %p39 = scmp.eq.s32.totalorder %s38, 0
      %s41 = sadd.s32 %s40, 1
      %s42 = scalar_select %p39, %s40, %s41
      %p45 = pneg %p39
      %p46 = scmp.eq.s32.totalorder %s9, 1
      %p47 = por %p45, %p46
      %p48 = scmp.ne.s32.totalorder %s40, %s43
      %p49 = scmp.eq.s32.totalorder %s9, 0
      %p50 = por %p48, %p49
      %p51 = scmp.ne.s32.totalorder %s40, %s43
      %p52 = scmp.eq.s32.totalorder %s14, 1
      %p53 = por %p51, %p52
      %p54 = scmp.ne.s32.totalorder %s43, %s44
      %p55 = scmp.eq.s32.totalorder %s14, 0
      %p56 = por %p54, %p55
      %p57 = scmp.ne.s32.totalorder %s43, %s44
      %p58 = scmp.eq.s32.totalorder %s15, 1
      %p59 = por %p57, %p58
      %p61 = scmp.ne.s32.totalorder %s44, %s60
      %p62 = scmp.eq.s32.totalorder %s15, 0
      %p63 = por %p61, %p62
      %s64 = ssub.s32 %s18, %s27
      %s65 = ssub.s32 %s17, %s31
      %s66 = sor.u32 %s64, %s65
      %p67 = scmp.eq.s32.totalorder %s66, 0
      %s69 = sadd.s32 %s68, 1
      %s70 = scalar_select %p67, %s68, %s69
      %p73 = pneg %p67
      %p74 = scmp.eq.s32.totalorder %s9, 1
      %p75 = por %p73, %p74
      %p76 = scmp.ne.s32.totalorder %s68, %s71
      %p77 = scmp.eq.s32.totalorder %s9, 0
      %p78 = por %p76, %p77
      %p79 = scmp.ne.s32.totalorder %s68, %s71
      %p80 = scmp.eq.s32.totalorder %s14, 1
      %p81 = por %p79, %p80
      %p82 = scmp.ne.s32.totalorder %s71, %s72
      %p83 = scmp.eq.s32.totalorder %s14, 0
      %p84 = por %p82, %p83
      %p85 = scmp.ne.s32.totalorder %s71, %s72
      %p86 = scmp.eq.s32.totalorder %s15, 1
      %p87 = por %p85, %p86
      %p89 = scmp.ne.s32.totalorder %s72, %s88
      %p90 = scmp.eq.s32.totalorder %s15, 0
      %p91 = por %p89, %p90
      %s92 = ssub.s32 %s17, %s31
      %p93 = scmp.eq.s32.totalorder %s92, 0
      %s95 = sadd.s32 %s94, 1
      %s96 = scalar_select %p93, %s94, %s95
      %p99 = pneg %p93
      %p100 = scmp.eq.s32.totalorder %s9, 1
      %p101 = por %p99, %p100
      %p102 = scmp.ne.s32.totalorder %s94, %s97
      %p103 = scmp.eq.s32.totalorder %s9, 0
      %p104 = por %p102, %p103
      %p105 = scmp.ne.s32.totalorder %s94, %s97
      %p106 = scmp.eq.s32.totalorder %s14, 1
      %p107 = por %p105, %p106
      %p108 = scmp.ne.s32.totalorder %s97, %s98
      %p109 = scmp.eq.s32.totalorder %s14, 0
      %p110 = por %p108, %p109
      %p111 = scmp.ne.s32.totalorder %s97, %s98
      %p112 = scmp.eq.s32.totalorder %s15, 1
      %p113 = por %p111, %p112
      %p115 = scmp.ne.s32.totalorder %s98, %s114
      %p116 = scmp.eq.s32.totalorder %s15, 0
      %p117 = por %p115, %p116
      %s118 = ssub.s32 %s16, %s35
      %s119 = ssub.s32 %s17, %s31
      %s120 = sor.u32 %s118, %s119
      %p121 = scmp.eq.s32.totalorder %s120, 0
      %s123 = sadd.s32 %s122, 1
      %s124 = scalar_select %p121, %s122, %s123
      %p127 = pneg %p121
      %p128 = scmp.eq.s32.totalorder %s9, 1
      %p129 = por %p127, %p128
      %p130 = scmp.ne.s32.totalorder %s122, %s125
      %p131 = scmp.eq.s32.totalorder %s9, 0
      %p132 = por %p130, %p131
      %p133 = scmp.ne.s32.totalorder %s122, %s125
      %p134 = scmp.eq.s32.totalorder %s14, 1
      %p135 = por %p133, %p134
      %p136 = scmp.ne.s32.totalorder %s125, %s126
      %p137 = scmp.eq.s32.totalorder %s14, 0
      %p138 = por %p136, %p137
      %p139 = scmp.ne.s32.totalorder %s125, %s126
      %p140 = scmp.eq.s32.totalorder %s15, 1
      %p141 = por %p139, %p140
      %p143 = scmp.ne.s32.totalorder %s126, %s142
      %p144 = scmp.eq.s32.totalorder %s15, 0
      %p145 = por %p143, %p144
      %p146 = scmp.le.s32.totalorder 1, %s9
      %p147 = scmp.lt.s32.totalorder %s9, 3
      %p148 = pnand %p146, %p147
      %p149 = pneg %p148
      // Predicated region
      $region9: #{generator_forward.23} parent=5 // pred_check
        _
      $region10: #{generator_forward.23} parent=5 // pred_check_branch
        %151 = sbr.rel (%p148) target = $region12
      $region11: #{generator_forward.23} parent=5 // pred_region
        %s152 = ssub.s32 %s9, 1
        // Predicated region
        $region13: #{generator_forward.23} parent=11 // pred_check
          %p153 = pneg %p110
        $region14: #{generator_forward.23} parent=11 // pred_check_branch
          %155 = sbr.rel (%p153) target = $region16
        $region15: #{generator_forward.23} parent=11 // pred_region
          %p156 = scmp.lt.s32.totalorder %s20, 0
          %s157 = scalar_select %p156, %s20, 0
          %s158 = scalar_lea.vmem %s2, %s157
        $region16: #{generator_forward.23} parent=11 // pred_fallthru
          _
      $region12: #{generator_forward.23} parent=5 // pred_fallthru
        _
      %p159 = scmp.lt.s32.totalorder %s9, 2
      // Predicated region
      $region17: #{generator_forward.23} parent=5 // pred_check
        %p160 = pneg %p159
      $region18: #{generator_forward.23} parent=5 // pred_check_branch
        %162 = sbr.rel (%p160) target = $region20
      $region19: #{generator_forward.23} parent=5 // pred_region
        // Predicated region
        $region21: #{generator_forward.23} parent=19 // pred_check
          %p163 = pneg %p50
        $region22: #{generator_forward.23} parent=19 // pred_check_branch
          %165 = sbr.rel (%p163) target = $region24
        $region23: #{generator_forward.23} parent=19 // pred_region
          %s166 = sand.u32 %s40, 1
          %s167 = sand.u32 %s40, 1
          %s168 = smul.addr %s167, 32
          %s169 = scalar_lea.vmem [#allocation3], %s168
          %s170 = smul.u32 4, %s16
          %s171 = smul.addr %s170, 2
          %s172 = sadd.s32 %s18, %s171
          %s173 = smul.addr %s172, 8
          %s174 = scalar_lea.vmem %s0, %s173
          // Predicated region
          $region25: #{generator_forward.23} parent=23 // pred_check
            _
          $region26: #{generator_forward.23} parent=23 // pred_check_branch
            %176 = sbr.rel (0) target = $region28
          $region27: #{generator_forward.23} parent=23 // pred_region
            // Predicated region
            $region29: #{generator_forward.23} parent=27 // pred_check
              _
            $region30: #{generator_forward.23} parent=27 // pred_check_branch
              %178 = sbr.rel (0) target = $region32
            $region31: #{generator_forward.23} parent=27 // pred_region
              // Predicated region
              $region44: #{generator_forward.23} parent=31 // pred_check
                _
              $region45: #{generator_forward.23} parent=31 // pred_check_branch
                %200 = sbr.rel (0) target = $region47
              $region46: #{generator_forward.23} parent=31 // pred_region
                loop: start=0, step=1, limit=1
                $region48: #{generator_forward.23} parent=46 // loop_pre_header
                  _
                $region49: #{generator_forward.23} parent=46 // loop_header
                  %s202 = sphi 0, %s206
                  %p203 = scmp.ge.s32.totalorder %s202, 1
                  %s207 = sphi %s174, %s174
                  %s208 = sphi %s169, %s169
                $region50: #{generator_forward.23} parent=46 // loop_header_branch
                  %205 = sbr.rel (%p203) target = $region54
                $region51: #{generator_forward.23} parent=46 // loop_body
                  %v209 = vld [vmem:[%s207] sm:$0xff]
                  %210 = vst [vmem:[%s208] sm:$0xff] %v209
                  %v211 = vld [vmem:[%s207 + $0x10] sm:$0xff]
                  %212 = vst [vmem:[%s208 + $0x8] sm:$0xff] %v211
                  %v213 = vld [vmem:[%s207 + $0x20] sm:$0xff]
                  %214 = vst [vmem:[%s208 + $0x10] sm:$0xff] %v213
                  %v215 = vld [vmem:[%s207 + $0x30] sm:$0xff]
                  %216 = vst [vmem:[%s208 + $0x18] sm:$0xff] %v215
                $region52: #{generator_forward.23} parent=46 // loop_footer
                  %s206 = sadd.s32 1, %s202
                $region53: #{generator_forward.23} parent=46 // loop_footer_branch
                  %201 = sbr.rel target = $region49
                $region54: #{generator_forward.23} parent=46 // loop_exit
                  _
              $region47: #{generator_forward.23} parent=31 // pred_fallthru
                _
              // Predicated region
              $region55: #{generator_forward.23} parent=31 // pred_check
                _
              $region56: #{generator_forward.23} parent=31 // pred_check_branch
                %218 = sbr.rel target = $region58
              $region57: #{generator_forward.23} parent=31 // pred_region
                _
              $region58: #{generator_forward.23} parent=31 // pred_fallthru
                _
            $region32: #{generator_forward.23} parent=27 // pred_fallthru
              _
            // Predicated region
            $region33: #{generator_forward.23} parent=27 // pred_check
              _
            $region34: #{generator_forward.23} parent=27 // pred_check_branch
              %180 = sbr.rel target = $region36
            $region35: #{generator_forward.23} parent=27 // pred_region
              %s182 = ssub.s32 256, 1
              loop: start=0, step=1, limit=1
              $region37: #{generator_forward.23} parent=35 // loop_pre_header
                _
              $region38: #{generator_forward.23} parent=35 // loop_header
                %s184 = sphi 0, %s188
                %p185 = scmp.ge.s32.totalorder %s184, 1
                %s189 = sphi %s174, %s174
                %s190 = sphi %s169, %s169
              $region39: #{generator_forward.23} parent=35 // loop_header_branch
                %187 = sbr.rel (%p185) target = $region43
              $region40: #{generator_forward.23} parent=35 // loop_body
                %v191 = vld [vmem:[%s189] sm:%s182]
                %192 = vst [vmem:[%s190] sm:%s182] %v191
                %v193 = vld [vmem:[%s189 + $0x10] sm:%s182]
                %194 = vst [vmem:[%s190 + $0x8] sm:%s182] %v193
                %v195 = vld [vmem:[%s189 + $0x20] sm:%s182]
                %196 = vst [vmem:[%s190 + $0x10] sm:%s182] %v195
                %v197 = vld [vmem:[%s189 + $0x30] sm:%s182]
                %198 = vst [vmem:[%s190 + $0x18] sm:%s182] %v197
              $region41: #{generator_forward.23} parent=35 // loop_footer
                %s188 = sadd.s32 1, %s184
              $region42: #{generator_forward.23} parent=35 // loop_footer_branch
                %183 = sbr.rel target = $region38
              $region43: #{generator_forward.23} parent=35 // loop_exit
                _
            $region36: #{generator_forward.23} parent=27 // pred_fallthru
              _
          $region28: #{generator_forward.23} parent=23 // pred_fallthru
            _
          %219 = vnop
        $region24: #{generator_forward.23} parent=19 // pred_fallthru
          _
        // Predicated region
        $region59: #{generator_forward.23} parent=19 // pred_check
          %p220 = pneg %p78
        $region60: #{generator_forward.23} parent=19 // pred_check_branch
          %222 = sbr.rel (%p220) target = $region62
        $region61: #{generator_forward.23} parent=19 // pred_region
          %s223 = smul.u32 16, %s18
          %p224 = scmp.lt.s32.totalorder %s223, 31
          %s225 = scalar_select %p224, %s223, 31
          %p226 = scmp.lt.s32.totalorder %s17, 0
          %s227 = scalar_select %p226, %s17, 0
          %s228 = sadd.s32 %s227, %s225
          %s229 = smul.addr %s228, 8
          %s230 = scalar_lea.vmem %s1, %s229
          %s231 = smul.u32 16, %s18
        $region62: #{generator_forward.23} parent=19 // pred_fallthru
          _
      $region20: #{generator_forward.23} parent=5 // pred_fallthru
        _
      %p232 = scmp.le.s32.totalorder 1, %s9
      %p233 = scmp.lt.s32.totalorder %s9, 3
      %p234 = pnand %p232, %p233
      %p235 = pneg %p234
      // Predicated region
      $region63: #{generator_forward.23} parent=5 // pred_check
        _
      $region64: #{generator_forward.23} parent=5 // pred_check_branch
        %237 = sbr.rel (%p234) target = $region66
      $region65: #{generator_forward.23} parent=5 // pred_region
        %s238 = ssub.s32 %s9, 1
        %s239 = sand.u32 %s43, 1
        %s240 = sand.u32 %s43, 1
        %s241 = smul.addr %s240, 32
        %s242 = scalar_lea.vmem [#allocation3], %s241
        // Predicated region
        $region67: #{generator_forward.23} parent=65 // pred_check
          %p243 = pneg %p56
        $region68: #{generator_forward.23} parent=65 // pred_check_branch
          %245 = sbr.rel (%p243) target = $region70
        $region69: #{generator_forward.23} parent=65 // pred_region
          _
        $region70: #{generator_forward.23} parent=65 // pred_fallthru
          _
        %s246 = sand.u32 %s43, 1
        %s247 = sand.u32 %s43, 1
        %s248 = smul.addr %s247, 32
        %s249 = scalar_lea.vmem [#allocation3], %s248
        %p250 = pneg %p56
        %p251 = pneg %p53
        %s252 = smul.u32 16, %s21
        %p253 = scmp.lt.s32.totalorder %s252, 31
        %s254 = scalar_select %p253, %s252, 31
        %p255 = scmp.lt.s32.totalorder %s20, 0
        %s256 = scalar_select %p255, %s20, 0
        %s257 = sadd.s32 %s256, %s254
        %s258 = smul.addr %s257, 8
        %s259 = scalar_lea.vmem %s1, %s258
        %p260 = pneg %p84
        %p261 = pneg %p81
        %p262 = scmp.lt.s32.totalorder %s20, 0
        %s263 = scalar_select %p262, %s20, 0
        %s264 = scalar_lea.vmem %s2, %s263
        %p265 = pneg %p110
        %p266 = pneg %p107
        %p267 = pneg %p138
        %p268 = pneg %p135
        %s269 = smul.u32 4, %s19
        %p270 = scmp.lt.s32.totalorder %s269, 3
        %s271 = scalar_select %p270, %s269, 3
        %p272 = scmp.lt.s32.totalorder %s20, 0
        %s273 = scalar_select %p272, %s20, 0
        %s274 = sadd.s32 %s273, %s271
        %s275 = smul.addr %s274, 8
        %s276 = scalar_lea.vmem %s3, %s275
        %s277 = smul.u32 4, %s19
        %s278 = smul.u32 16, %s21
        %p279 = scmp.lt.s32.totalorder %s278, 31
        %s280 = scalar_select %p279, %s278, 31
        %p281 = scmp.lt.s32.totalorder %s20, 0
        %s282 = scalar_select %p281, %s20, 0
        %s283 = sadd.s32 %s282, %s280
        %s284 = smul.addr %s283, 8
        %s285 = scalar_lea.vmem %s1, %s284
        %s286 = smul.u32 16, %s21
        %p287 = scmp.lt.s32.totalorder %s20, 0
        %s288 = scalar_select %p287, %s20, 0
        %s289 = scalar_lea.vmem %s2, %s288
        %s290 = smul.u32 4, %s19
        %p291 = scmp.lt.s32.totalorder %s290, 3
        %s292 = scalar_select %p291, %s290, 3
        %p293 = scmp.lt.s32.totalorder %s20, 0
        %s294 = scalar_select %p293, %s20, 0
        %s295 = sadd.s32 %s294, %s292
        %s296 = smul.addr %s295, 8
        %s297 = scalar_lea.vmem %s3, %s296
        %s298 = smul.u32 4, %s19
        %p299 = scmp.eq.s32.totalorder %s21, 0
        // Predicated region
        $region71: #{generator_forward.23} parent=65 // pred_check
          %p300 = pneg %p299
        $region72: #{generator_forward.23} parent=65 // pred_check_branch
          %302 = sbr.rel (%p300) target = $region74
        $region73: #{generator_forward.23} parent=65 // pred_region
          %303 = vst [vmem:[#allocation2] sm:$0xff] 0.0
          %304 = vst [vmem:[#allocation2 + $0x8] sm:$0xff] 0.0
          %305 = vst [vmem:[#allocation2 + $0x10] sm:$0xff] 0.0
          %306 = vst [vmem:[#allocation2 + $0x18] sm:$0xff] 0.0
        $region74: #{generator_forward.23} parent=65 // pred_fallthru
          _
        %v307 = vld [vmem:[#allocation2] sm:$0xff]
        %v308 = vld [vmem:[#allocation2 + $0x8] sm:$0xff]
        %v309 = vld [vmem:[#allocation2 + $0x10] sm:$0xff]
        %v310 = vld [vmem:[#allocation2 + $0x18] sm:$0xff]
        %v311 = vld [vmem:[%s242] sm:$0xff]
        %v312 = vld [vmem:[%s242 + $0x8] sm:$0xff]
        %v313 = vld [vmem:[%s242 + $0x10] sm:$0xff]
        %v314 = vld [vmem:[%s242 + $0x18] sm:$0xff]
        %v315 = vld [vmem:[%s285] sm:$0xff]
        %v316 = vld [vmem:[%s285 + $0x8] sm:$0xff]
        %v317 = vld [vmem:[%s285 + $0x10] sm:$0xff]
        %v318 = vld [vmem:[%s285 + $0x18] sm:$0xff]
        %v319 = vld [vmem:[%s285 + $0x20] sm:$0xff]
        %v320 = vld [vmem:[%s285 + $0x28] sm:$0xff]
        %v321 = vld [vmem:[%s285 + $0x30] sm:$0xff]
        %v322 = vld [vmem:[%s285 + $0x38] sm:$0xff]
        %v323 = vld [vmem:[%s285 + $0x40] sm:$0xff]
        %v324 = vld [vmem:[%s285 + $0x48] sm:$0xff]
        %v325 = vld [vmem:[%s285 + $0x50] sm:$0xff]
        %v326 = vld [vmem:[%s285 + $0x58] sm:$0xff]
        %v327 = vld [vmem:[%s285 + $0x60] sm:$0xff]
        %v328 = vld [vmem:[%s285 + $0x68] sm:$0xff]
        %v329 = vld [vmem:[%s285 + $0x70] sm:$0xff]
        %v330 = vld [vmem:[%s285 + $0x78] sm:$0xff]
        %331 = vmatpush.msra.mxu0 %v330
        %332 = vmatpush.msra.mxu0 %v329
        %333 = vmatpush.msra.mxu0 %v328
        %334 = vmatpush.msra.mxu0 %v327
        %335 = vmatpush.msra.mxu0 %v326
        %336 = vmatpush.msra.mxu0 %v325
        %337 = vmatpush.msra.mxu0 %v324
        %338 = vmatpush.msra.mxu0 %v323
        %339 = vmatpush.msra.mxu0 %v322
        %340 = vmatpush.msra.mxu0 %v321
        %341 = vmatpush.msra.mxu0 %v320
        %342 = vmatpush.msra.mxu0 %v319
        %343 = vmatpush.msra.mxu0 %v318
        %344 = vmatpush.msra.mxu0 %v317
        %345 = vmatpush.msra.mxu0 %v316
        %346 = vmatpush.msra.mxu0 %v315
        %347 = vmatmul.f32.gmra.mxu0 %v311
        %v348 = vpop.f32.mrf.mxu0
        %v349 = vadd.f32 0.0, %v348
        %350 = vmatmul.f32.gmra.mxu0 %v312
        %v351 = vpop.f32.mrf.mxu0
        %v352 = vadd.f32 0.0, %v351
        %353 = vmatmul.f32.gmra.mxu0 %v313
        %v354 = vpop.f32.mrf.mxu0
        %v355 = vadd.f32 0.0, %v354
        %356 = vmatmul.f32.gmra.mxu0 %v314
        %v357 = vpop.f32.mrf.mxu0
        %v358 = vadd.f32 0.0, %v357
        %359 = vdwg.mxu0
        %v360 = vadd.f32 %v307, %v349
        %v361 = vadd.f32 %v308, %v352
        %v362 = vadd.f32 %v309, %v355
        %v363 = vadd.f32 %v310, %v358
        %364 = vst [vmem:[#allocation2] sm:$0xff] %v360
        %365 = vst [vmem:[#allocation2 + $0x8] sm:$0xff] %v361
        %366 = vst [vmem:[#allocation2 + $0x10] sm:$0xff] %v362
        %367 = vst [vmem:[#allocation2 + $0x18] sm:$0xff] %v363
        %p368 = scmp.eq.s32.totalorder %s21, 1
        // Predicated region
        $region75: #{generator_forward.23} parent=65 // pred_check
          %p369 = pneg %p368
        $region76: #{generator_forward.23} parent=65 // pred_check_branch
          %371 = sbr.rel (%p369) target = $region78
        $region77: #{generator_forward.23} parent=65 // pred_region
          %v372 = vld [vmem:[#allocation2] sm:$0xff]
          %v373 = vld [vmem:[#allocation2 + $0x8] sm:$0xff]
          %v374 = vld [vmem:[#allocation2 + $0x10] sm:$0xff]
          %v375 = vld [vmem:[#allocation2 + $0x18] sm:$0xff]
          %v376 = vld [vmem:[%s289] sm:$0x1]
          %v378 = vperm.slane %v376, 0
          %v380 = vadd.f32 %v372, %v378
          %v381 = vadd.f32 %v373, %v378
          %v382 = vadd.f32 %v374, %v378
          %v383 = vadd.f32 %v375, %v378
          %384 = vst [vmem:[%s297] sm:$0xff] %v380
          %385 = vst [vmem:[%s297 + $0x8] sm:$0xff] %v381
          %386 = vst [vmem:[%s297 + $0x10] sm:$0xff] %v382
          %387 = vst [vmem:[%s297 + $0x18] sm:$0xff] %v383
        $region78: #{generator_forward.23} parent=65 // pred_fallthru
          _
        %s388 = smul.u32 4, %s19
        %p389 = scmp.lt.s32.totalorder %s388, 3
        %s390 = scalar_select %p389, %s388, 3
        %p391 = scmp.lt.s32.totalorder %s20, 0
        %s392 = scalar_select %p391, %s20, 0
        %s393 = sadd.s32 %s392, %s390
        %s394 = smul.addr %s393, 8
        %s395 = scalar_lea.vmem %s3, %s394
        // Predicated region
        $region79: #{generator_forward.23} parent=65 // pred_check
          %p396 = pneg %p135
        $region80: #{generator_forward.23} parent=65 // pred_check_branch
          %398 = sbr.rel (%p396) target = $region82
        $region81: #{generator_forward.23} parent=65 // pred_region
          %s399 = smul.u32 4, %s19
        $region82: #{generator_forward.23} parent=65 // pred_fallthru
          _
        // Predicated region
        $region83: #{generator_forward.23} parent=65 // pred_check
          %p400 = pneg %p135
        $region84: #{generator_forward.23} parent=65 // pred_check_branch
          %402 = sbr.rel (%p400) target = $region86
        $region85: #{generator_forward.23} parent=65 // pred_region
          %s403 = smul.u32 4, %s19
          %p404 = scmp.lt.s32.totalorder %s403, 3
          %s405 = scalar_select %p404, %s403, 3
          %p406 = scmp.lt.s32.totalorder %s20, 0
          %s407 = scalar_select %p406, %s20, 0
          %s408 = sadd.s32 %s407, %s405
          %s409 = smul.addr %s408, 8
          %s410 = scalar_lea.vmem %s3, %s409
        $region86: #{generator_forward.23} parent=65 // pred_fallthru
          _
      $region66: #{generator_forward.23} parent=5 // pred_fallthru
        _
      %p411 = scmp.le.s32.totalorder 2, %s9
      // Predicated region
      $region87: #{generator_forward.23} parent=5 // pred_check
        %p412 = pneg %p411
      $region88: #{generator_forward.23} parent=5 // pred_check_branch
        %414 = sbr.rel (%p412) target = $region90
      $region89: #{generator_forward.23} parent=5 // pred_region
        %s415 = ssub.s32 %s9, 2
      $region90: #{generator_forward.23} parent=5 // pred_fallthru
        _
    $region6: #{generator_forward.23} parent=1 // loop_footer
      %s13 = sadd.s32 1, %s9
    $region7: #{generator_forward.23} parent=1 // loop_footer_branch
      %8 = sbr.rel target = $region3
    $region8: #{generator_forward.23} parent=1 // loop_exit
      _

// kernel: generator_forward.24
$region0: #{generator_forward.24}
  #allocation0 [shape = 'u32[]', space=smem, size = 0x4, offset = 0x4, fixed_abs, tag = 'smem constant byte address 0x4 - core index']
  #allocation1 [shape = 'u32[72,128]{1,0:T(1,128)}', space=vmem, size = 0x9000, scoped, tag = 'internal scratch']
  %s0 = inlined_call_operand.vmem [shape: f32[32,32], index: 0, kind: input, shape index: {}]
  %s1 = inlined_call_operand.vmem [shape: f32[1,32], index: 1, kind: input, shape index: {}]
  %s2 = inlined_call_operand.vmem [shape: f32[1,32], index: 2, kind: input, shape index: {}]
  %s3 = inlined_call_operand.vmem [shape: f32[32,32], index: 3, kind: output, shape index: {}]
  %s4 = sld [smem:[#allocation0]]
  $region22: #{generator_forward.24} parent=0
    _
  %s6 = ssub.s32 1, %s4
  %s7 = scalar_select 0, %s6, %s4
  // Predicated region
  $region2: #{generator_forward.24} parent=0 // pred_check
    _
  $region3: #{generator_forward.24} parent=0 // pred_check_branch
    %9 = sbr.rel (0) target = $region5
  $region4: #{generator_forward.24} parent=0 // pred_region
    _
  $region5: #{generator_forward.24} parent=0 // pred_fallthru
    _
  // Predicated region
  $region6: #{generator_forward.24} parent=0 // pred_check
    _
  $region7: #{generator_forward.24} parent=0 // pred_check_branch
    %11 = sbr.rel (0) target = $region9
  $region8: #{generator_forward.24} parent=0 // pred_region
    _
  $region9: #{generator_forward.24} parent=0 // pred_fallthru
    _
  // Predicated region
  $region10: #{generator_forward.24} parent=0 // pred_check
    _
  $region11: #{generator_forward.24} parent=0 // pred_check_branch
    %13 = sbr.rel (0) target = $region13
  $region12: #{generator_forward.24} parent=0 // pred_region
    _
  $region13: #{generator_forward.24} parent=0 // pred_fallthru
    _
  %v14 = vld [vmem:[%s0] sm:$0xff]
  %v15 = vld [vmem:[%s0 + $0x8] sm:$0xff]
  %v16 = vld [vmem:[%s0 + $0x10] sm:$0xff]
  %v17 = vld [vmem:[%s0 + $0x18] sm:$0xff]
  %vm18 = vcmask 261120
  %v19 = vsel %vm18, %v14, 0.0
  %v20 = vsel %vm18, %v15, 0.0
  %v21 = vadd.f32 %v19, %v20
  %v22 = vsel %vm18, %v16, 0.0
  %v23 = vadd.f32 %v21, %v22
  %v24 = vsel %vm18, %v17, 0.0
  %v25 = vadd.f32 %v23, %v24
  %v26 = vrot.slane %v25, 4
  %v27 = vadd.f32 %v25, %v26
  %v28 = vrot.slane %v27, 2
  %v29 = vadd.f32 %v27, %v28
  %v30 = vrot.slane %v29, 1
  %v31 = vadd.f32 %v29, %v30
  %v32 = vrcp.pop 32.0
  %v33 = vmul.f32 32.0, %v32
  %v34 = vsub.f32 1.0, %v33
  %v35 = vmul.f32 %v32, %v34
  %v36 = vadd.f32 %v32, %v35
  %vm37 = vweird.f32 %v32
  %v38 = vsel %vm37, %v32, %v36
  %v39 = vmul.f32 %v31, %v38
  %v40 = vsub.f32 %v14, %v39
  %v41 = vsub.f32 %v15, %v39
  %v42 = vsub.f32 %v16, %v39
  %v43 = vsub.f32 %v17, %v39
  %v44 = vmul.f32 %v40, %v40
  %v45 = vmul.f32 %v41, %v41
  %v46 = vmul.f32 %v42, %v42
  %v47 = vmul.f32 %v43, %v43
  %v48 = vsel %vm18, %v44, 0.0
  %v49 = vsel %vm18, %v45, 0.0
  %v50 = vadd.f32 %v48, %v49
  %v51 = vsel %vm18, %v46, 0.0
  %v52 = vadd.f32 %v50, %v51
  %v53 = vsel %vm18, %v47, 0.0
  %v54 = vadd.f32 %v52, %v53
  %v55 = vrot.slane %v54, 4
  %v56 = vadd.f32 %v54, %v55
  %v57 = vrot.slane %v56, 2
  %v58 = vadd.f32 %v56, %v57
  %v59 = vrot.slane %v58, 1
  %v60 = vadd.f32 %v58, %v59
  %v61 = vmul.f32 %v60, %v38
  %v62 = vadd.f32 %v61, 1e-05
  %v63 = vrsqrt.pop %v62
  %v64 = vmul.f32 %v63, %v62
  %v65 = vmul.f32 %v64, %v63
  %v66 = vmul.f32 0.5, %v65
  %v67 = vsub.f32 1.5, %v66
  %v68 = vmul.f32 %v63, %v67
  %vm69 = vweird.f32 %v62
  %vm70 = vweird.f32 %v63
  %vm71 = vmor %vm69, %vm70
  %v72 = vsel %vm71, %v63, %v68
  %v73 = vmul.f32 %v40, %v72
  %v74 = vmul.f32 %v41, %v72
  %v75 = vmul.f32 %v42, %v72
  %v76 = vmul.f32 %v43, %v72
  %v77 = vld [vmem:[%s1] sm:$0x1]
  %v79 = vperm.slane %v77, 0
  %v81 = vmul.f32 %v73, %v79
  %v82 = vmul.f32 %v74, %v79
  %v83 = vmul.f32 %v75, %v79
  %v84 = vmul.f32 %v76, %v79
  %v85 = vld [vmem:[%s2] sm:$0x1]
  %v87 = vperm.slane %v85, 0
  %v89 = vadd.f32 %v81, %v87
  %v90 = vadd.f32 %v82, %v87
  %v91 = vadd.f32 %v83, %v87
  %v92 = vadd.f32 %v84, %v87
  %v93 = vmax.f32 %v89, 0.0
  %v94 = vmax.f32 %v90, 0.0
  %v95 = vmax.f32 %v91, 0.0
  %v96 = vmax.f32 %v92, 0.0
  %97 = vst.msk [vmem:[%s3] sm:$0xff] %vm18, %v93
  %98 = vst.msk [vmem:[%s3 + $0x8] sm:$0xff] %vm18, %v94
  %99 = vst.msk [vmem:[%s3 + $0x10] sm:$0xff] %vm18, %v95
  %100 = vst.msk [vmem:[%s3 + $0x18] sm:$0xff] %vm18, %v96
  // Predicated region
  $region14: #{generator_forward.24} parent=0 // pred_check
    _
  $region15: #{generator_forward.24} parent=0 // pred_check_branch
    %102 = sbr.rel (0) target = $region17
  $region16: #{generator_forward.24} parent=0 // pred_region
    _
  $region17: #{generator_forward.24} parent=0 // pred_fallthru
    _
  // Predicated region
  $region18: #{generator_forward.24} parent=0 // pred_check
    _
  $region19: #{generator_forward.24} parent=0 // pred_check_branch
    %104 = sbr.rel (0) target = $region21
  $region20: #{generator_forward.24} parent=0 // pred_region
    _
  $region21: #{generator_forward.24} parent=0 // pred_fallthru
    _

// kernel: generator_forward.28
$region0: #{generator_forward.28}
  #allocation0 [shape = 'u32[]', space=smem, size = 0x4, offset = 0x4, fixed_abs, tag = 'smem constant byte address 0x4 - core index']
  #allocation1 [shape = 'u32[72,128]{1,0:T(1,128)}', space=vmem, size = 0x9000, scoped, tag = 'internal scratch']
  %s0 = inlined_call_operand.vmem [shape: f32[32,32], index: 0, kind: input, shape index: {}]
  %s1 = inlined_call_operand.vmem [shape: f32[1,32], index: 1, kind: input, shape index: {}]
  %s2 = inlined_call_operand.vmem [shape: f32[1,32], index: 2, kind: input, shape index: {}]
  %s3 = inlined_call_operand.vmem [shape: f32[32,32], index: 3, kind: input, shape index: {}]
  %s4 = inlined_call_operand.vmem [shape: f32[32,32], index: 4, kind: output, shape index: {}]
  %s5 = sld [smem:[#allocation0]]
  $region26: #{generator_forward.28} parent=0
    _
  %s7 = ssub.s32 1, %s5
  %s8 = scalar_select 0, %s7, %s5
  // Predicated region
  $region2: #{generator_forward.28} parent=0 // pred_check
    _
  $region3: #{generator_forward.28} parent=0 // pred_check_branch
    %10 = sbr.rel (0) target = $region5
  $region4: #{generator_forward.28} parent=0 // pred_region
    _
  $region5: #{generator_forward.28} parent=0 // pred_fallthru
    _
  // Predicated region
  $region6: #{generator_forward.28} parent=0 // pred_check
    _
  $region7: #{generator_forward.28} parent=0 // pred_check_branch
    %12 = sbr.rel (0) target = $region9
  $region8: #{generator_forward.28} parent=0 // pred_region
    _
  $region9: #{generator_forward.28} parent=0 // pred_fallthru
    _
  // Predicated region
  $region10: #{generator_forward.28} parent=0 // pred_check
    _
  $region11: #{generator_forward.28} parent=0 // pred_check_branch
    %14 = sbr.rel (0) target = $region13
  $region12: #{generator_forward.28} parent=0 // pred_region
    _
  $region13: #{generator_forward.28} parent=0 // pred_fallthru
    _
  // Predicated region
  $region14: #{generator_forward.28} parent=0 // pred_check
    _
  $region15: #{generator_forward.28} parent=0 // pred_check_branch
    %16 = sbr.rel (0) target = $region17
  $region16: #{generator_forward.28} parent=0 // pred_region
    _
  $region17: #{generator_forward.28} parent=0 // pred_fallthru
    _
  %v17 = vld [vmem:[%s0] sm:$0xff]
  %v18 = vld [vmem:[%s0 + $0x8] sm:$0xff]
  %v19 = vld [vmem:[%s0 + $0x10] sm:$0xff]
  %v20 = vld [vmem:[%s0 + $0x18] sm:$0xff]
  %vm21 = vcmask 261120
  %v22 = vsel %vm21, %v17, 0.0
  %v23 = vsel %vm21, %v18, 0.0
  %v24 = vadd.f32 %v22, %v23
  %v25 = vsel %vm21, %v19, 0.0
  %v26 = vadd.f32 %v24, %v25
  %v27 = vsel %vm21, %v20, 0.0
  %v28 = vadd.f32 %v26, %v27
  %v29 = vrot.slane %v28, 4
  %v30 = vadd.f32 %v28, %v29
  %v31 = vrot.slane %v30, 2
  %v32 = vadd.f32 %v30, %v31
  %v33 = vrot.slane %v32, 1
  %v34 = vadd.f32 %v32, %v33
  %v35 = vrcp.pop 32.0
  %v36 = vmul.f32 32.0, %v35
  %v37 = vsub.f32 1.0, %v36
  %v38 = vmul.f32 %v35, %v37
  %v39 = vadd.f32 %v35, %v38
  %vm40 = vweird.f32 %v35
  %v41 = vsel %vm40, %v35, %v39
  %v42 = vmul.f32 %v34, %v41
  %v43 = vsub.f32 %v17, %v42
  %v44 = vsub.f32 %v18, %v42
  %v45 = vsub.f32 %v19, %v42
  %v46 = vsub.f32 %v20, %v42
  %v47 = vmul.f32 %v43, %v43
  %v48 = vmul.f32 %v44, %v44
  %v49 = vmul.f32 %v45, %v45
  %v50 = vmul.f32 %v46, %v46
  %v51 = vsel %vm21, %v47, 0.0
  %v52 = vsel %vm21, %v48, 0.0
  %v53 = vadd.f32 %v51, %v52
  %v54 = vsel %vm21, %v49, 0.0
  %v55 = vadd.f32 %v53, %v54
  %v56 = vsel %vm21, %v50, 0.0
  %v57 = vadd.f32 %v55, %v56
  %v58 = vrot.slane %v57, 4
  %v59 = vadd.f32 %v57, %v58
  %v60 = vrot.slane %v59, 2
  %v61 = vadd.f32 %v59, %v60
  %v62 = vrot.slane %v61, 1
  %v63 = vadd.f32 %v61, %v62
  %v64 = vmul.f32 %v63, %v41
  %v65 = vadd.f32 %v64, 1e-05
  %v66 = vrsqrt.pop %v65
  %v67 = vmul.f32 %v66, %v65
  %v68 = vmul.f32 %v67, %v66
  %v69 = vmul.f32 0.5, %v68
  %v70 = vsub.f32 1.5, %v69
  %v71 = vmul.f32 %v66, %v70
  %vm72 = vweird.f32 %v65
  %vm73 = vweird.f32 %v66
  %vm74 = vmor %vm72, %vm73
  %v75 = vsel %vm74, %v66, %v71
  %v76 = vmul.f32 %v43, %v75
  %v77 = vmul.f32 %v44, %v75
  %v78 = vmul.f32 %v45, %v75
  %v79 = vmul.f32 %v46, %v75
  %v80 = vld [vmem:[%s1] sm:$0x1]
  %v82 = vperm.slane %v80, 0
  %v84 = vmul.f32 %v76, %v82
  %v85 = vmul.f32 %v77, %v82
  %v86 = vmul.f32 %v78, %v82
  %v87 = vmul.f32 %v79, %v82
  %v88 = vld [vmem:[%s2] sm:$0x1]
  %v90 = vperm.slane %v88, 0
  %v92 = vadd.f32 %v84, %v90
  %v93 = vadd.f32 %v85, %v90
  %v94 = vadd.f32 %v86, %v90
  %v95 = vadd.f32 %v87, %v90
  %v96 = vld [vmem:[%s3] sm:$0xff]
  %v97 = vld [vmem:[%s3 + $0x8] sm:$0xff]
  %v98 = vld [vmem:[%s3 + $0x10] sm:$0xff]
  %v99 = vld [vmem:[%s3 + $0x18] sm:$0xff]
  %v100 = vadd.f32 %v92, %v96
  %v101 = vadd.f32 %v93, %v97
  %v102 = vadd.f32 %v94, %v98
  %v103 = vadd.f32 %v95, %v99
  %104 = vst.msk [vmem:[%s4] sm:$0xff] %vm21, %v100
  %105 = vst.msk [vmem:[%s4 + $0x8] sm:$0xff] %vm21, %v101
  %106 = vst.msk [vmem:[%s4 + $0x10] sm:$0xff] %vm21, %v102
  %107 = vst.msk [vmem:[%s4 + $0x18] sm:$0xff] %vm21, %v103
  // Predicated region
  $region18: #{generator_forward.28} parent=0 // pred_check
    _
  $region19: #{generator_forward.28} parent=0 // pred_check_branch
    %109 = sbr.rel (0) target = $region21
  $region20: #{generator_forward.28} parent=0 // pred_region
    _
  $region21: #{generator_forward.28} parent=0 // pred_fallthru
    _
  // Predicated region
  $region22: #{generator_forward.28} parent=0 // pred_check
    _
  $region23: #{generator_forward.28} parent=0 // pred_check_branch
    %111 = sbr.rel (0) target = $region25
  $region24: #{generator_forward.28} parent=0 // pred_region
    _
  $region25: #{generator_forward.28} parent=0 // pred_fallthru
    _

// kernel: generator_forward.25
$region0: #{generator_forward.25}
  #allocation0 [shape = 'u32[]', space=smem, size = 0x4, offset = 0x4, fixed_abs, tag = 'smem constant byte address 0x4 - core index']
  #allocation1 [shape = 'u32[72,128]{1,0:T(1,128)}', space=vmem, size = 0x9000, scoped, tag = 'internal scratch']
  #allocation2 [shape = 'f32[32,128]{1,0:T(8,128)}', space=vmem, size = 0x4000, scoped, tag = 'scratch operand']
  %s0 = inlined_call_operand.vmem [shape: f32[32,384], index: 0, kind: input, shape index: {}]
  %s1 = inlined_call_operand.vmem [shape: f32[384,128], index: 1, kind: input, shape index: {}]
  %s2 = inlined_call_operand.vmem [shape: f32[1,128], index: 2, kind: input, shape index: {}]
  %s3 = inlined_call_operand.vmem [shape: f32[32,128], index: 3, kind: output, shape index: {}]
  %s4 = sld [smem:[#allocation0]]
  $region91: #{generator_forward.25} parent=0
    _
  %s6 = ssub.s32 1, %s4
  %s7 = scalar_select 0, %s6, %s4
  $region1: #{generator_forward.25} parent=0
    #allocation3 [shape = 'u8[32768]{0}', space=vmem, size = 0x8000, scoped, tag = 'input window, operand 0']
    loop: start=0, step=1, limit=5
    $region2: #{generator_forward.25} parent=1 // loop_pre_header
      _
    $region3: #{generator_forward.25} parent=1 // loop_header
      %s9 = sphi 0, %s13
      %p10 = scmp.ge.s32.totalorder %s9, 5
      %s16 = sphi 0, %s35
      %s17 = sphi 0, %s31
      %s18 = sphi 0, %s27
      %s19 = sphi 0, %s16
      %s20 = sphi 0, %s17
      %s21 = sphi 0, %s18
      %s22 = sphi 0, %s19
      %s23 = sphi 0, %s20
      %s24 = sphi 0, %s21
      %s40 = sphi 0, %s42
      %s43 = sphi 0, %s40
      %s44 = sphi 0, %s43
      %s60 = sphi 0, %s44
      %s68 = sphi 0, %s70
      %s71 = sphi 0, %s68
      %s72 = sphi 0, %s71
      %s88 = sphi 0, %s72
      %s94 = sphi 0, %s96
      %s97 = sphi 0, %s94
      %s98 = sphi 0, %s97
      %s114 = sphi 0, %s98
      %s122 = sphi 0, %s124
      %s125 = sphi 0, %s122
      %s126 = sphi 0, %s125
      %s142 = sphi 0, %s126
    $region4: #{generator_forward.25} parent=1 // loop_header_branch
      %12 = sbr.rel (%p10) target = $region8
    $region5: #{generator_forward.25} parent=1 // loop_body
      %s14 = ssub.s32 %s9, 1
      %s15 = ssub.s32 %s9, 2
      %s25 = sadd.s32 1, %s18
      %p26 = scmp.ge.s32.totalorder %s25, 3
      %s27 = scalar_select %p26, 0, %s25
      %s28 = sadd.s32 1, %s17
      %s29 = scalar_select %p26, %s28, %s17
      %p30 = scmp.ge.s32.totalorder %s29, 1
      %s31 = scalar_select %p30, 0, %s29
      %s32 = sadd.s32 1, %s16
      %s33 = scalar_select %p30, %s32, %s16
      %p34 = scmp.ge.s32.totalorder %s33, 1
      %s35 = scalar_select %p34, 0, %s33
      %s36 = ssub.s32 %s16, %s35
      %s37 = ssub.s32 %s18, %s27
      %s38 = sor.u32 %s36, %s37
      %p39 = scmp.eq.s32.totalorder %s38, 0
      %s41 = sadd.s32 %s40, 1
      %s42 = scalar_select %p39, %s40, %s41
      %p45 = pneg %p39
      %p46 = scmp.eq.s32.totalorder %s9, 2
      %p47 = por %p45, %p46
      %p48 = scmp.ne.s32.totalorder %s40, %s43
      %p49 = scmp.eq.s32.totalorder %s9, 0
      %p50 = por %p48, %p49
      %p51 = scmp.ne.s32.totalorder %s40, %s43
      %p52 = scmp.eq.s32.totalorder %s14, 2
      %p53 = por %p51, %p52
      %p54 = scmp.ne.s32.totalorder %s43, %s44
      %p55 = scmp.eq.s32.totalorder %s14, 0
      %p56 = por %p54, %p55
      %p57 = scmp.ne.s32.totalorder %s43, %s44
      %p58 = scmp.eq.s32.totalorder %s15, 2
      %p59 = por %p57, %p58
      %p61 = scmp.ne.s32.totalorder %s44, %s60
      %p62 = scmp.eq.s32.totalorder %s15, 0
      %p63 = por %p61, %p62
      %s64 = ssub.s32 %s18, %s27
      %s65 = ssub.s32 %s17, %s31
      %s66 = sor.u32 %s64, %s65
      %p67 = scmp.eq.s32.totalorder %s66, 0
      %s69 = sadd.s32 %s68, 1
      %s70 = scalar_select %p67, %s68, %s69
      %p73 = pneg %p67
      %p74 = scmp.eq.s32.totalorder %s9, 2
      %p75 = por %p73, %p74
      %p76 = scmp.ne.s32.totalorder %s68, %s71
      %p77 = scmp.eq.s32.totalorder %s9, 0
      %p78 = por %p76, %p77
      %p79 = scmp.ne.s32.totalorder %s68, %s71
      %p80 = scmp.eq.s32.totalorder %s14, 2
      %p81 = por %p79, %p80
      %p82 = scmp.ne.s32.totalorder %s71, %s72
      %p83 = scmp.eq.s32.totalorder %s14, 0
      %p84 = por %p82, %p83
      %p85 = scmp.ne.s32.totalorder %s71, %s72
      %p86 = scmp.eq.s32.totalorder %s15, 2
      %p87 = por %p85, %p86
      %p89 = scmp.ne.s32.totalorder %s72, %s88
      %p90 = scmp.eq.s32.totalorder %s15, 0
      %p91 = por %p89, %p90
      %s92 = ssub.s32 %s17, %s31
      %p93 = scmp.eq.s32.totalorder %s92, 0
      %s95 = sadd.s32 %s94, 1
      %s96 = scalar_select %p93, %s94, %s95
      %p99 = pneg %p93
      %p100 = scmp.eq.s32.totalorder %s9, 2
      %p101 = por %p99, %p100
      %p102 = scmp.ne.s32.totalorder %s94, %s97
      %p103 = scmp.eq.s32.totalorder %s9, 0
      %p104 = por %p102, %p103
      %p105 = scmp.ne.s32.totalorder %s94, %s97
      %p106 = scmp.eq.s32.totalorder %s14, 2
      %p107 = por %p105, %p106
      %p108 = scmp.ne.s32.totalorder %s97, %s98
      %p109 = scmp.eq.s32.totalorder %s14, 0
      %p110 = por %p108, %p109
      %p111 = scmp.ne.s32.totalorder %s97, %s98
      %p112 = scmp.eq.s32.totalorder %s15, 2
      %p113 = por %p111, %p112
      %p115 = scmp.ne.s32.totalorder %s98, %s114
      %p116 = scmp.eq.s32.totalorder %s15, 0
      %p117 = por %p115, %p116
      %s118 = ssub.s32 %s16, %s35
      %s119 = ssub.s32 %s17, %s31
      %s120 = sor.u32 %s118, %s119
      %p121 = scmp.eq.s32.totalorder %s120, 0
      %s123 = sadd.s32 %s122, 1
      %s124 = scalar_select %p121, %s122, %s123
      %p127 = pneg %p121
      %p128 = scmp.eq.s32.totalorder %s9, 2
      %p129 = por %p127, %p128
      %p130 = scmp.ne.s32.totalorder %s122, %s125
      %p131 = scmp.eq.s32.totalorder %s9, 0
      %p132 = por %p130, %p131
      %p133 = scmp.ne.s32.totalorder %s122, %s125
      %p134 = scmp.eq.s32.totalorder %s14, 2
      %p135 = por %p133, %p134
      %p136 = scmp.ne.s32.totalorder %s125, %s126
      %p137 = scmp.eq.s32.totalorder %s14, 0
      %p138 = por %p136, %p137
      %p139 = scmp.ne.s32.totalorder %s125, %s126
      %p140 = scmp.eq.s32.totalorder %s15, 2
      %p141 = por %p139, %p140
      %p143 = scmp.ne.s32.totalorder %s126, %s142
      %p144 = scmp.eq.s32.totalorder %s15, 0
      %p145 = por %p143, %p144
      %p146 = scmp.le.s32.totalorder 1, %s9
      %p147 = scmp.lt.s32.totalorder %s9, 4
      %p148 = pnand %p146, %p147
      %p149 = pneg %p148
      // Predicated region
      $region9: #{generator_forward.25} parent=5 // pred_check
        _
      $region10: #{generator_forward.25} parent=5 // pred_check_branch
        %151 = sbr.rel (%p148) target = $region12
      $region11: #{generator_forward.25} parent=5 // pred_region
        %s152 = ssub.s32 %s9, 1
        // Predicated region
        $region13: #{generator_forward.25} parent=11 // pred_check
          %p153 = pneg %p110
        $region14: #{generator_forward.25} parent=11 // pred_check_branch
          %155 = sbr.rel (%p153) target = $region16
        $region15: #{generator_forward.25} parent=11 // pred_region
          %p156 = scmp.lt.s32.totalorder %s20, 0
          %s157 = scalar_select %p156, %s20, 0
          %s158 = scalar_lea.vmem %s2, %s157
        $region16: #{generator_forward.25} parent=11 // pred_fallthru
          _
      $region12: #{generator_forward.25} parent=5 // pred_fallthru
        _
      %p159 = scmp.lt.s32.totalorder %s9, 3
      // Predicated region
      $region17: #{generator_forward.25} parent=5 // pred_check
        %p160 = pneg %p159
      $region18: #{generator_forward.25} parent=5 // pred_check_branch
        %162 = sbr.rel (%p160) target = $region20
      $region19: #{generator_forward.25} parent=5 // pred_region
        // Predicated region
        $region21: #{generator_forward.25} parent=19 // pred_check
          %p163 = pneg %p50
        $region22: #{generator_forward.25} parent=19 // pred_check_branch
          %165 = sbr.rel (%p163) target = $region24
        $region23: #{generator_forward.25} parent=19 // pred_region
          %s166 = sand.u32 %s40, 1
          %s167 = sand.u32 %s40, 1
          %s168 = smul.addr %s167, 32
          %s169 = scalar_lea.vmem [#allocation3], %s168
          %s170 = smul.u32 4, %s16
          %s171 = smul.addr %s170, 3
          %s172 = sadd.s32 %s18, %s171
          %s173 = smul.addr %s172, 8
          %s174 = scalar_lea.vmem %s0, %s173
          // Predicated region
          $region25: #{generator_forward.25} parent=23 // pred_check
            _
          $region26: #{generator_forward.25} parent=23 // pred_check_branch
            %176 = sbr.rel (0) target = $region28
          $region27: #{generator_forward.25} parent=23 // pred_region
            // Predicated region
            $region29: #{generator_forward.25} parent=27 // pred_check
              _
            $region30: #{generator_forward.25} parent=27 // pred_check_branch
              %178 = sbr.rel (0) target = $region32
            $region31: #{generator_forward.25} parent=27 // pred_region
              // Predicated region
              $region44: #{generator_forward.25} parent=31 // pred_check
                _
              $region45: #{generator_forward.25} parent=31 // pred_check_branch
                %200 = sbr.rel (0) target = $region47
              $region46: #{generator_forward.25} parent=31 // pred_region
                loop: start=0, step=1, limit=1
                $region48: #{generator_forward.25} parent=46 // loop_pre_header
                  _
                $region49: #{generator_forward.25} parent=46 // loop_header
                  %s202 = sphi 0, %s206
                  %p203 = scmp.ge.s32.totalorder %s202, 1
                  %s207 = sphi %s174, %s174
                  %s208 = sphi %s169, %s169
                $region50: #{generator_forward.25} parent=46 // loop_header_branch
                  %205 = sbr.rel (%p203) target = $region54
                $region51: #{generator_forward.25} parent=46 // loop_body
                  %v209 = vld [vmem:[%s207] sm:$0xff]
                  %210 = vst [vmem:[%s208] sm:$0xff] %v209
                  %v211 = vld [vmem:[%s207 + $0x18] sm:$0xff]
                  %212 = vst [vmem:[%s208 + $0x8] sm:$0xff] %v211
                  %v213 = vld [vmem:[%s207 + $0x30] sm:$0xff]
                  %214 = vst [vmem:[%s208 + $0x10] sm:$0xff] %v213
                  %v215 = vld [vmem:[%s207 + $0x48] sm:$0xff]
                  %216 = vst [vmem:[%s208 + $0x18] sm:$0xff] %v215
                $region52: #{generator_forward.25} parent=46 // loop_footer
                  %s206 = sadd.s32 1, %s202
                $region53: #{generator_forward.25} parent=46 // loop_footer_branch
                  %201 = sbr.rel target = $region49
                $region54: #{generator_forward.25} parent=46 // loop_exit
                  _
              $region47: #{generator_forward.25} parent=31 // pred_fallthru
                _
              // Predicated region
              $region55: #{generator_forward.25} parent=31 // pred_check
                _
              $region56: #{generator_forward.25} parent=31 // pred_check_branch
                %218 = sbr.rel target = $region58
              $region57: #{generator_forward.25} parent=31 // pred_region
                _
              $region58: #{generator_forward.25} parent=31 // pred_fallthru
                _
            $region32: #{generator_forward.25} parent=27 // pred_fallthru
              _
            // Predicated region
            $region33: #{generator_forward.25} parent=27 // pred_check
              _
            $region34: #{generator_forward.25} parent=27 // pred_check_branch
              %180 = sbr.rel target = $region36
            $region35: #{generator_forward.25} parent=27 // pred_region
              %s182 = ssub.s32 256, 1
              loop: start=0, step=1, limit=1
              $region37: #{generator_forward.25} parent=35 // loop_pre_header
                _
              $region38: #{generator_forward.25} parent=35 // loop_header
                %s184 = sphi 0, %s188
                %p185 = scmp.ge.s32.totalorder %s184, 1
                %s189 = sphi %s174, %s174
                %s190 = sphi %s169, %s169
              $region39: #{generator_forward.25} parent=35 // loop_header_branch
                %187 = sbr.rel (%p185) target = $region43
              $region40: #{generator_forward.25} parent=35 // loop_body
                %v191 = vld [vmem:[%s189] sm:%s182]
                %192 = vst [vmem:[%s190] sm:%s182] %v191
                %v193 = vld [vmem:[%s189 + $0x18] sm:%s182]
                %194 = vst [vmem:[%s190 + $0x8] sm:%s182] %v193
                %v195 = vld [vmem:[%s189 + $0x30] sm:%s182]
                %196 = vst [vmem:[%s190 + $0x10] sm:%s182] %v195
                %v197 = vld [vmem:[%s189 + $0x48] sm:%s182]
                %198 = vst [vmem:[%s190 + $0x18] sm:%s182] %v197
              $region41: #{generator_forward.25} parent=35 // loop_footer
                %s188 = sadd.s32 1, %s184
              $region42: #{generator_forward.25} parent=35 // loop_footer_branch
                %183 = sbr.rel target = $region38
              $region43: #{generator_forward.25} parent=35 // loop_exit
                _
            $region36: #{generator_forward.25} parent=27 // pred_fallthru
              _
          $region28: #{generator_forward.25} parent=23 // pred_fallthru
            _
          %219 = vnop
        $region24: #{generator_forward.25} parent=19 // pred_fallthru
          _
        // Predicated region
        $region59: #{generator_forward.25} parent=19 // pred_check
          %p220 = pneg %p78
        $region60: #{generator_forward.25} parent=19 // pred_check_branch
          %222 = sbr.rel (%p220) target = $region62
        $region61: #{generator_forward.25} parent=19 // pred_region
          %s223 = smul.u32 16, %s18
          %p224 = scmp.lt.s32.totalorder %s223, 47
          %s225 = scalar_select %p224, %s223, 47
          %p226 = scmp.lt.s32.totalorder %s17, 0
          %s227 = scalar_select %p226, %s17, 0
          %s228 = sadd.s32 %s227, %s225
          %s229 = smul.addr %s228, 8
          %s230 = scalar_lea.vmem %s1, %s229
          %s231 = smul.u32 16, %s18
        $region62: #{generator_forward.25} parent=19 // pred_fallthru
          _
      $region20: #{generator_forward.25} parent=5 // pred_fallthru
        _
      %p232 = scmp.le.s32.totalorder 1, %s9
      %p233 = scmp.lt.s32.totalorder %s9, 4
      %p234 = pnand %p232, %p233
      %p235 = pneg %p234
      // Predicated region
      $region63: #{generator_forward.25} parent=5 // pred_check
        _
      $region64: #{generator_forward.25} parent=5 // pred_check_branch
        %237 = sbr.rel (%p234) target = $region66
      $region65: #{generator_forward.25} parent=5 // pred_region
        %s238 = ssub.s32 %s9, 1
        %s239 = sand.u32 %s43, 1
        %s240 = sand.u32 %s43, 1
        %s241 = smul.addr %s240, 32
        %s242 = scalar_lea.vmem [#allocation3], %s241
        // Predicated region
        $region67: #{generator_forward.25} parent=65 // pred_check
          %p243 = pneg %p56
        $region68: #{generator_forward.25} parent=65 // pred_check_branch
          %245 = sbr.rel (%p243) target = $region70
        $region69: #{generator_forward.25} parent=65 // pred_region
          _
        $region70: #{generator_forward.25} parent=65 // pred_fallthru
          _
        %s246 = sand.u32 %s43, 1
        %s247 = sand.u32 %s43, 1
        %s248 = smul.addr %s247, 32
        %s249 = scalar_lea.vmem [#allocation3], %s248
        %p250 = pneg %p56
        %p251 = pneg %p53
        %s252 = smul.u32 16, %s21
        %p253 = scmp.lt.s32.totalorder %s252, 47
        %s254 = scalar_select %p253, %s252, 47
        %p255 = scmp.lt.s32.totalorder %s20, 0
        %s256 = scalar_select %p255, %s20, 0
        %s257 = sadd.s32 %s256, %s254
        %s258 = smul.addr %s257, 8
        %s259 = scalar_lea.vmem %s1, %s258
        %p260 = pneg %p84
        %p261 = pneg %p81
        %p262 = scmp.lt.s32.totalorder %s20, 0
        %s263 = scalar_select %p262, %s20, 0
        %s264 = scalar_lea.vmem %s2, %s263
        %p265 = pneg %p110
        %p266 = pneg %p107
        %p267 = pneg %p138
        %p268 = pneg %p135
        %s269 = smul.u32 4, %s19
        %p270 = scmp.lt.s32.totalorder %s269, 3
        %s271 = scalar_select %p270, %s269, 3
        %p272 = scmp.lt.s32.totalorder %s20, 0
        %s273 = scalar_select %p272, %s20, 0
        %s274 = sadd.s32 %s273, %s271
        %s275 = smul.addr %s274, 8
        %s276 = scalar_lea.vmem %s3, %s275
        %s277 = smul.u32 4, %s19
        %s278 = smul.u32 16, %s21
        %p279 = scmp.lt.s32.totalorder %s278, 47
        %s280 = scalar_select %p279, %s278, 47
        %p281 = scmp.lt.s32.totalorder %s20, 0
        %s282 = scalar_select %p281, %s20, 0
        %s283 = sadd.s32 %s282, %s280
        %s284 = smul.addr %s283, 8
        %s285 = scalar_lea.vmem %s1, %s284
        %s286 = smul.u32 16, %s21
        %p287 = scmp.lt.s32.totalorder %s20, 0
        %s288 = scalar_select %p287, %s20, 0
        %s289 = scalar_lea.vmem %s2, %s288
        %s290 = smul.u32 4, %s19
        %p291 = scmp.lt.s32.totalorder %s290, 3
        %s292 = scalar_select %p291, %s290, 3
        %p293 = scmp.lt.s32.totalorder %s20, 0
        %s294 = scalar_select %p293, %s20, 0
        %s295 = sadd.s32 %s294, %s292
        %s296 = smul.addr %s295, 8
        %s297 = scalar_lea.vmem %s3, %s296
        %s298 = smul.u32 4, %s19
        %p299 = scmp.eq.s32.totalorder %s21, 0
        // Predicated region
        $region71: #{generator_forward.25} parent=65 // pred_check
          %p300 = pneg %p299
        $region72: #{generator_forward.25} parent=65 // pred_check_branch
          %302 = sbr.rel (%p300) target = $region74
        $region73: #{generator_forward.25} parent=65 // pred_region
          %303 = vst [vmem:[#allocation2] sm:$0xff] 0.0
          %304 = vst [vmem:[#allocation2 + $0x8] sm:$0xff] 0.0
          %305 = vst [vmem:[#allocation2 + $0x10] sm:$0xff] 0.0
          %306 = vst [vmem:[#allocation2 + $0x18] sm:$0xff] 0.0
        $region74: #{generator_forward.25} parent=65 // pred_fallthru
          _
        %v307 = vld [vmem:[#allocation2] sm:$0xff]
        %v308 = vld [vmem:[#allocation2 + $0x8] sm:$0xff]
        %v309 = vld [vmem:[#allocation2 + $0x10] sm:$0xff]
        %v310 = vld [vmem:[#allocation2 + $0x18] sm:$0xff]
        %v311 = vld [vmem:[%s242] sm:$0xff]
        %v312 = vld [vmem:[%s242 + $0x8] sm:$0xff]
        %v313 = vld [vmem:[%s242 + $0x10] sm:$0xff]
        %v314 = vld [vmem:[%s242 + $0x18] sm:$0xff]
        %v315 = vld [vmem:[%s285] sm:$0xff]
        %v316 = vld [vmem:[%s285 + $0x8] sm:$0xff]
        %v317 = vld [vmem:[%s285 + $0x10] sm:$0xff]
        %v318 = vld [vmem:[%s285 + $0x18] sm:$0xff]
        %v319 = vld [vmem:[%s285 + $0x20] sm:$0xff]
        %v320 = vld [vmem:[%s285 + $0x28] sm:$0xff]
        %v321 = vld [vmem:[%s285 + $0x30] sm:$0xff]
        %v322 = vld [vmem:[%s285 + $0x38] sm:$0xff]
        %v323 = vld [vmem:[%s285 + $0x40] sm:$0xff]
        %v324 = vld [vmem:[%s285 + $0x48] sm:$0xff]
        %v325 = vld [vmem:[%s285 + $0x50] sm:$0xff]
        %v326 = vld [vmem:[%s285 + $0x58] sm:$0xff]
        %v327 = vld [vmem:[%s285 + $0x60] sm:$0xff]
        %v328 = vld [vmem:[%s285 + $0x68] sm:$0xff]
        %v329 = vld [vmem:[%s285 + $0x70] sm:$0xff]
        %v330 = vld [vmem:[%s285 + $0x78] sm:$0xff]
        %331 = vmatpush.msra.mxu0 %v330
        %332 = vmatpush.msra.mxu0 %v329
        %333 = vmatpush.msra.mxu0 %v328
        %334 = vmatpush.msra.mxu0 %v327
        %335 = vmatpush.msra.mxu0 %v326
        %336 = vmatpush.msra.mxu0 %v325
        %337 = vmatpush.msra.mxu0 %v324
        %338 = vmatpush.msra.mxu0 %v323
        %339 = vmatpush.msra.mxu0 %v322
        %340 = vmatpush.msra.mxu0 %v321
        %341 = vmatpush.msra.mxu0 %v320
        %342 = vmatpush.msra.mxu0 %v319
        %343 = vmatpush.msra.mxu0 %v318
        %344 = vmatpush.msra.mxu0 %v317
        %345 = vmatpush.msra.mxu0 %v316
        %346 = vmatpush.msra.mxu0 %v315
        %347 = vmatmul.f32.gmra.mxu0 %v311
        %v348 = vpop.f32.mrf.mxu0
        %v349 = vadd.f32 0.0, %v348
        %350 = vmatmul.f32.gmra.mxu0 %v312
        %v351 = vpop.f32.mrf.mxu0
        %v352 = vadd.f32 0.0, %v351
        %353 = vmatmul.f32.gmra.mxu0 %v313
        %v354 = vpop.f32.mrf.mxu0
        %v355 = vadd.f32 0.0, %v354
        %356 = vmatmul.f32.gmra.mxu0 %v314
        %v357 = vpop.f32.mrf.mxu0
        %v358 = vadd.f32 0.0, %v357
        %359 = vdwg.mxu0
        %v360 = vadd.f32 %v307, %v349
        %v361 = vadd.f32 %v308, %v352
        %v362 = vadd.f32 %v309, %v355
        %v363 = vadd.f32 %v310, %v358
        %364 = vst [vmem:[#allocation2] sm:$0xff] %v360
        %365 = vst [vmem:[#allocation2 + $0x8] sm:$0xff] %v361
        %366 = vst [vmem:[#allocation2 + $0x10] sm:$0xff] %v362
        %367 = vst [vmem:[#allocation2 + $0x18] sm:$0xff] %v363
        %p368 = scmp.eq.s32.totalorder %s21, 2
        // Predicated region
        $region75: #{generator_forward.25} parent=65 // pred_check
          %p369 = pneg %p368
        $region76: #{generator_forward.25} parent=65 // pred_check_branch
          %371 = sbr.rel (%p369) target = $region78
        $region77: #{generator_forward.25} parent=65 // pred_region
          %v372 = vld [vmem:[#allocation2] sm:$0xff]
          %v373 = vld [vmem:[#allocation2 + $0x8] sm:$0xff]
          %v374 = vld [vmem:[#allocation2 + $0x10] sm:$0xff]
          %v375 = vld [vmem:[#allocation2 + $0x18] sm:$0xff]
          %v376 = vld [vmem:[%s289] sm:$0x1]
          %v378 = vperm.slane %v376, 0
          %v380 = vadd.f32 %v372, %v378
          %v381 = vadd.f32 %v373, %v378
          %v382 = vadd.f32 %v374, %v378
          %v383 = vadd.f32 %v375, %v378
          %384 = vst [vmem:[%s297] sm:$0xff] %v380
          %385 = vst [vmem:[%s297 + $0x8] sm:$0xff] %v381
          %386 = vst [vmem:[%s297 + $0x10] sm:$0xff] %v382
          %387 = vst [vmem:[%s297 + $0x18] sm:$0xff] %v383
        $region78: #{generator_forward.25} parent=65 // pred_fallthru
          _
        %s388 = smul.u32 4, %s19
        %p389 = scmp.lt.s32.totalorder %s388, 3
        %s390 = scalar_select %p389, %s388, 3
        %p391 = scmp.lt.s32.totalorder %s20, 0
        %s392 = scalar_select %p391, %s20, 0
        %s393 = sadd.s32 %s392, %s390
        %s394 = smul.addr %s393, 8
        %s395 = scalar_lea.vmem %s3, %s394
        // Predicated region
        $region79: #{generator_forward.25} parent=65 // pred_check
          %p396 = pneg %p135
        $region80: #{generator_forward.25} parent=65 // pred_check_branch
          %398 = sbr.rel (%p396) target = $region82
        $region81: #{generator_forward.25} parent=65 // pred_region
          %s399 = smul.u32 4, %s19
        $region82: #{generator_forward.25} parent=65 // pred_fallthru
          _
        // Predicated region
        $region83: #{generator_forward.25} parent=65 // pred_check
          %p400 = pneg %p135
        $region84: #{generator_forward.25} parent=65 // pred_check_branch
          %402 = sbr.rel (%p400) target = $region86
        $region85: #{generator_forward.25} parent=65 // pred_region
          %s403 = smul.u32 4, %s19
          %p404 = scmp.lt.s32.totalorder %s403, 3
          %s405 = scalar_select %p404, %s403, 3
          %p406 = scmp.lt.s32.totalorder %s20, 0
          %s407 = scalar_select %p406, %s20, 0
          %s408 = sadd.s32 %s407, %s405
          %s409 = smul.addr %s408, 8
          %s410 = scalar_lea.vmem %s3, %s409
        $region86: #{generator_forward.25} parent=65 // pred_fallthru
          _
      $region66: #{generator_forward.25} parent=5 // pred_fallthru
        _
      %p411 = scmp.le.s32.totalorder 2, %s9
      // Predicated region
      $region87: #{generator_forward.25} parent=5 // pred_check
        %p412 = pneg %p411
      $region88: #{generator_forward.25} parent=5 // pred_check_branch
        %414 = sbr.rel (%p412) target = $region90
      $region89: #{generator_forward.25} parent=5 // pred_region
        %s415 = ssub.s32 %s9, 2
      $region90: #{generator_forward.25} parent=5 // pred_fallthru
        _
    $region6: #{generator_forward.25} parent=1 // loop_footer
      %s13 = sadd.s32 1, %s9
    $region7: #{generator_forward.25} parent=1 // loop_footer_branch
      %8 = sbr.rel target = $region3
    $region8: #{generator_forward.25} parent=1 // loop_exit
      _

// kernel: generator_forward.33
$region0: #{generator_forward.33}
  #allocation0 [shape = 'u32[]', space=smem, size = 0x4, offset = 0x4, fixed_abs, tag = 'smem constant byte address 0x4 - core index']
  #allocation1 [shape = 'u32[72,128]{1,0:T(1,128)}', space=vmem, size = 0x9000, scoped, tag = 'internal scratch']
  #allocation2 [shape = 'f32[128,128]{1,0:T(8,128)}', space=vmem, size = 0x10000, scoped, tag = 'scratch operand']
  %s0 = inlined_call_operand.vmem [shape: f32[128,384], index: 0, kind: input, shape index: {}]
  %s1 = inlined_call_operand.vmem [shape: f32[384,128], index: 1, kind: input, shape index: {}]
  %s2 = inlined_call_operand.vmem [shape: f32[1,128], index: 2, kind: input, shape index: {}]
  %s3 = inlined_call_operand.vmem [shape: f32[128,128], index: 3, kind: output, shape index: {}]
  %s4 = sld [smem:[#allocation0]]
  $region91: #{generator_forward.33} parent=0
    _
  %s6 = ssub.s32 1, %s4
  %s7 = scalar_select 0, %s6, %s4
  $region1: #{generator_forward.33} parent=0
    #allocation3 [shape = 'u8[131072]{0}', space=vmem, size = 0x20000, scoped, tag = 'input window, operand 0']
    loop: start=0, step=1, limit=5
    $region2: #{generator_forward.33} parent=1 // loop_pre_header
      _
    $region3: #{generator_forward.33} parent=1 // loop_header
      %s9 = sphi 0, %s13
      %p10 = scmp.ge.s32.totalorder %s9, 5
      %s16 = sphi 0, %s35
      %s17 = sphi 0, %s31
      %s18 = sphi 0, %s27
      %s19 = sphi 0, %s16
      %s20 = sphi 0, %s17
      %s21 = sphi 0, %s18
      %s22 = sphi 0, %s19
      %s23 = sphi 0, %s20
      %s24 = sphi 0, %s21
      %s40 = sphi 0, %s42
      %s43 = sphi 0, %s40
      %s44 = sphi 0, %s43
      %s60 = sphi 0, %s44
      %s68 = sphi 0, %s70
      %s71 = sphi 0, %s68
      %s72 = sphi 0, %s71
      %s88 = sphi 0, %s72
      %s94 = sphi 0, %s96
      %s97 = sphi 0, %s94
      %s98 = sphi 0, %s97
      %s114 = sphi 0, %s98
      %s122 = sphi 0, %s124
      %s125 = sphi 0, %s122
      %s126 = sphi 0, %s125
      %s142 = sphi 0, %s126
    $region4: #{generator_forward.33} parent=1 // loop_header_branch
      %12 = sbr.rel (%p10) target = $region8
    $region5: #{generator_forward.33} parent=1 // loop_body
      %s14 = ssub.s32 %s9, 1
      %s15 = ssub.s32 %s9, 2
      %s25 = sadd.s32 1, %s18
      %p26 = scmp.ge.s32.totalorder %s25, 3
      %s27 = scalar_select %p26, 0, %s25
      %s28 = sadd.s32 1, %s17
      %s29 = scalar_select %p26, %s28, %s17
      %p30 = scmp.ge.s32.totalorder %s29, 1
      %s31 = scalar_select %p30, 0, %s29
      %s32 = sadd.s32 1, %s16
      %s33 = scalar_select %p30, %s32, %s16
      %p34 = scmp.ge.s32.totalorder %s33, 1
      %s35 = scalar_select %p34, 0, %s33
      %s36 = ssub.s32 %s16, %s35
      %s37 = ssub.s32 %s18, %s27
      %s38 = sor.u32 %s36, %s37
      %p39 = scmp.eq.s32.totalorder %s38, 0
      %s41 = sadd.s32 %s40, 1
      %s42 = scalar_select %p39, %s40, %s41
      %p45 = pneg %p39
      %p46 = scmp.eq.s32.totalorder %s9, 2
      %p47 = por %p45, %p46
      %p48 = scmp.ne.s32.totalorder %s40, %s43
      %p49 = scmp.eq.s32.totalorder %s9, 0
      %p50 = por %p48, %p49
      %p51 = scmp.ne.s32.totalorder %s40, %s43
      %p52 = scmp.eq.s32.totalorder %s14, 2
      %p53 = por %p51, %p52
      %p54 = scmp.ne.s32.totalorder %s43, %s44
      %p55 = scmp.eq.s32.totalorder %s14, 0
      %p56 = por %p54, %p55
      %p57 = scmp.ne.s32.totalorder %s43, %s44
      %p58 = scmp.eq.s32.totalorder %s15, 2
      %p59 = por %p57, %p58
      %p61 = scmp.ne.s32.totalorder %s44, %s60
      %p62 = scmp.eq.s32.totalorder %s15, 0
      %p63 = por %p61, %p62
      %s64 = ssub.s32 %s18, %s27
      %s65 = ssub.s32 %s17, %s31
      %s66 = sor.u32 %s64, %s65
      %p67 = scmp.eq.s32.totalorder %s66, 0
      %s69 = sadd.s32 %s68, 1
      %s70 = scalar_select %p67, %s68, %s69
      %p73 = pneg %p67
      %p74 = scmp.eq.s32.totalorder %s9, 2
      %p75 = por %p73, %p74
      %p76 = scmp.ne.s32.totalorder %s68, %s71
      %p77 = scmp.eq.s32.totalorder %s9, 0
      %p78 = por %p76, %p77
      %p79 = scmp.ne.s32.totalorder %s68, %s71
      %p80 = scmp.eq.s32.totalorder %s14, 2
      %p81 = por %p79, %p80
      %p82 = scmp.ne.s32.totalorder %s71, %s72
      %p83 = scmp.eq.s32.totalorder %s14, 0
      %p84 = por %p82, %p83
      %p85 = scmp.ne.s32.totalorder %s71, %s72
      %p86 = scmp.eq.s32.totalorder %s15, 2
      %p87 = por %p85, %p86
      %p89 = scmp.ne.s32.totalorder %s72, %s88
      %p90 = scmp.eq.s32.totalorder %s15, 0
      %p91 = por %p89, %p90
      %s92 = ssub.s32 %s17, %s31
      %p93 = scmp.eq.s32.totalorder %s92, 0
      %s95 = sadd.s32 %s94, 1
      %s96 = scalar_select %p93, %s94, %s95
      %p99 = pneg %p93
      %p100 = scmp.eq.s32.totalorder %s9, 2
      %p101 = por %p99, %p100
      %p102 = scmp.ne.s32.totalorder %s94, %s97
      %p103 = scmp.eq.s32.totalorder %s9, 0
      %p104 = por %p102, %p103
      %p105 = scmp.ne.s32.totalorder %s94, %s97
      %p106 = scmp.eq.s32.totalorder %s14, 2
      %p107 = por %p105, %p106
      %p108 = scmp.ne.s32.totalorder %s97, %s98
      %p109 = scmp.eq.s32.totalorder %s14, 0
      %p110 = por %p108, %p109
      %p111 = scmp.ne.s32.totalorder %s97, %s98
      %p112 = scmp.eq.s32.totalorder %s15, 2
      %p113 = por %p111, %p112
      %p115 = scmp.ne.s32.totalorder %s98, %s114
      %p116 = scmp.eq.s32.totalorder %s15, 0
      %p117 = por %p115, %p116
      %s118 = ssub.s32 %s16, %s35
      %s119 = ssub.s32 %s17, %s31
      %s120 = sor.u32 %s118, %s119
      %p121 = scmp.eq.s32.totalorder %s120, 0
      %s123 = sadd.s32 %s122, 1
      %s124 = scalar_select %p121, %s122, %s123
      %p127 = pneg %p121
      %p128 = scmp.eq.s32.totalorder %s9, 2
      %p129 = por %p127, %p128
      %p130 = scmp.ne.s32.totalorder %s122, %s125
      %p131 = scmp.eq.s32.totalorder %s9, 0
      %p132 = por %p130, %p131
      %p133 = scmp.ne.s32.totalorder %s122, %s125
      %p134 = scmp.eq.s32.totalorder %s14, 2
      %p135 = por %p133, %p134
      %p136 = scmp.ne.s32.totalorder %s125, %s126
      %p137 = scmp.eq.s32.totalorder %s14, 0
      %p138 = por %p136, %p137
      %p139 = scmp.ne.s32.totalorder %s125, %s126
      %p140 = scmp.eq.s32.totalorder %s15, 2
      %p141 = por %p139, %p140
      %p143 = scmp.ne.s32.totalorder %s126, %s142
      %p144 = scmp.eq.s32.totalorder %s15, 0
      %p145 = por %p143, %p144
      %p146 = scmp.le.s32.totalorder 1, %s9
      %p147 = scmp.lt.s32.totalorder %s9, 4
      %p148 = pnand %p146, %p147
      %p149 = pneg %p148
      // Predicated region
      $region9: #{generator_forward.33} parent=5 // pred_check
        _
      $region10: #{generator_forward.33} parent=5 // pred_check_branch
        %151 = sbr.rel (%p148) target = $region12
      $region11: #{generator_forward.33} parent=5 // pred_region
        %s152 = ssub.s32 %s9, 1
        // Predicated region
        $region13: #{generator_forward.33} parent=11 // pred_check
          %p153 = pneg %p110
        $region14: #{generator_forward.33} parent=11 // pred_check_branch
          %155 = sbr.rel (%p153) target = $region16
        $region15: #{generator_forward.33} parent=11 // pred_region
          %p156 = scmp.lt.s32.totalorder %s20, 0
          %s157 = scalar_select %p156, %s20, 0
          %s158 = scalar_lea.vmem %s2, %s157
        $region16: #{generator_forward.33} parent=11 // pred_fallthru
          _
      $region12: #{generator_forward.33} parent=5 // pred_fallthru
        _
      %p159 = scmp.lt.s32.totalorder %s9, 3
      // Predicated region
      $region17: #{generator_forward.33} parent=5 // pred_check
        %p160 = pneg %p159
      $region18: #{generator_forward.33} parent=5 // pred_check_branch
        %162 = sbr.rel (%p160) target = $region20
      $region19: #{generator_forward.33} parent=5 // pred_region
        // Predicated region
        $region21: #{generator_forward.33} parent=19 // pred_check
          %p163 = pneg %p50
        $region22: #{generator_forward.33} parent=19 // pred_check_branch
          %165 = sbr.rel (%p163) target = $region24
        $region23: #{generator_forward.33} parent=19 // pred_region
          %s166 = sand.u32 %s40, 1
          %s167 = sand.u32 %s40, 1
          %s168 = smul.addr %s167, 128
          %s169 = scalar_lea.vmem [#allocation3], %s168
          %s170 = smul.u32 16, %s16
          %s171 = smul.addr %s170, 3
          %s172 = sadd.s32 %s18, %s171
          %s173 = smul.addr %s172, 8
          %s174 = scalar_lea.vmem %s0, %s173
          // Predicated region
          $region25: #{generator_forward.33} parent=23 // pred_check
            _
          $region26: #{generator_forward.33} parent=23 // pred_check_branch
            %176 = sbr.rel (0) target = $region28
          $region27: #{generator_forward.33} parent=23 // pred_region
            // Predicated region
            $region29: #{generator_forward.33} parent=27 // pred_check
              _
            $region30: #{generator_forward.33} parent=27 // pred_check_branch
              %178 = sbr.rel (0) target = $region32
            $region31: #{generator_forward.33} parent=27 // pred_region
              // Predicated region
              $region44: #{generator_forward.33} parent=31 // pred_check
                _
              $region45: #{generator_forward.33} parent=31 // pred_check_branch
                %224 = sbr.rel (0) target = $region47
              $region46: #{generator_forward.33} parent=31 // pred_region
                loop: start=0, step=1, limit=1
                $region48: #{generator_forward.33} parent=46 // loop_pre_header
                  _
                $region49: #{generator_forward.33} parent=46 // loop_header
                  %s226 = sphi 0, %s230
                  %p227 = scmp.ge.s32.totalorder %s226, 1
                  %s231 = sphi %s174, %s174
                  %s232 = sphi %s169, %s169
                $region50: #{generator_forward.33} parent=46 // loop_header_branch
                  %229 = sbr.rel (%p227) target = $region54
                $region51: #{generator_forward.33} parent=46 // loop_body
                  %v233 = vld [vmem:[%s231] sm:$0xff]
                  %234 = vst [vmem:[%s232] sm:$0xff] %v233
                  %v235 = vld [vmem:[%s231 + $0x18] sm:$0xff]
                  %236 = vst [vmem:[%s232 + $0x8] sm:$0xff] %v235
                  %v237 = vld [vmem:[%s231 + $0x30] sm:$0xff]
                  %238 = vst [vmem:[%s232 + $0x10] sm:$0xff] %v237
                  %v239 = vld [vmem:[%s231 + $0x48] sm:$0xff]
                  %240 = vst [vmem:[%s232 + $0x18] sm:$0xff] %v239
                  %v241 = vld [vmem:[%s231 + $0x60] sm:$0xff]
                  %242 = vst [vmem:[%s232 + $0x20] sm:$0xff] %v241
                  %v243 = vld [vmem:[%s231 + $0x78] sm:$0xff]
                  %244 = vst [vmem:[%s232 + $0x28] sm:$0xff] %v243
                  %v245 = vld [vmem:[%s231 + $0x90] sm:$0xff]
                  %246 = vst [vmem:[%s232 + $0x30] sm:$0xff] %v245
                  %v247 = vld [vmem:[%s231 + $0xa8] sm:$0xff]
                  %248 = vst [vmem:[%s232 + $0x38] sm:$0xff] %v247
                  %v249 = vld [vmem:[%s231 + $0xc0] sm:$0xff]
                  %250 = vst [vmem:[%s232 + $0x40] sm:$0xff] %v249
                  %v251 = vld [vmem:[%s231 + $0xd8] sm:$0xff]
                  %252 = vst [vmem:[%s232 + $0x48] sm:$0xff] %v251
                  %v253 = vld [vmem:[%s231 + $0xf0] sm:$0xff]
                  %254 = vst [vmem:[%s232 + $0x50] sm:$0xff] %v253
                  %v255 = vld [vmem:[%s231 + $0x108] sm:$0xff]
                  %256 = vst [vmem:[%s232 + $0x58] sm:$0xff] %v255
                  %v257 = vld [vmem:[%s231 + $0x120] sm:$0xff]
                  %258 = vst [vmem:[%s232 + $0x60] sm:$0xff] %v257
                  %v259 = vld [vmem:[%s231 + $0x138] sm:$0xff]
                  %260 = vst [vmem:[%s232 + $0x68] sm:$0xff] %v259
                  %v261 = vld [vmem:[%s231 + $0x150] sm:$0xff]
                  %262 = vst [vmem:[%s232 + $0x70] sm:$0xff] %v261
                  %v263 = vld [vmem:[%s231 + $0x168] sm:$0xff]
                  %264 = vst [vmem:[%s232 + $0x78] sm:$0xff] %v263
                $region52: #{generator_forward.33} parent=46 // loop_footer
                  %s230 = sadd.s32 1, %s226
                $region53: #{generator_forward.33} parent=46 // loop_footer_branch
                  %225 = sbr.rel target = $region49
                $region54: #{generator_forward.33} parent=46 // loop_exit
                  _
              $region47: #{generator_forward.33} parent=31 // pred_fallthru
                _
              // Predicated region
              $region55: #{generator_forward.33} parent=31 // pred_check
                _
              $region56: #{generator_forward.33} parent=31 // pred_check_branch
                %266 = sbr.rel target = $region58
              $region57: #{generator_forward.33} parent=31 // pred_region
                _
              $region58: #{generator_forward.33} parent=31 // pred_fallthru
                _
            $region32: #{generator_forward.33} parent=27 // pred_fallthru
              _
            // Predicated region
            $region33: #{generator_forward.33} parent=27 // pred_check
              _
            $region34: #{generator_forward.33} parent=27 // pred_check_branch
              %180 = sbr.rel target = $region36
            $region35: #{generator_forward.33} parent=27 // pred_region
              %s182 = ssub.s32 256, 1
              loop: start=0, step=1, limit=1
              $region37: #{generator_forward.33} parent=35 // loop_pre_header
                _
              $region38: #{generator_forward.33} parent=35 // loop_header
                %s184 = sphi 0, %s188
                %p185 = scmp.ge.s32.totalorder %s184, 1
                %s189 = sphi %s174, %s174
                %s190 = sphi %s169, %s169
              $region39: #{generator_forward.33} parent=35 // loop_header_branch
                %187 = sbr.rel (%p185) target = $region43
              $region40: #{generator_forward.33} parent=35 // loop_body
                %v191 = vld [vmem:[%s189] sm:%s182]
                %192 = vst [vmem:[%s190] sm:%s182] %v191
                %v193 = vld [vmem:[%s189 + $0x18] sm:%s182]
                %194 = vst [vmem:[%s190 + $0x8] sm:%s182] %v193
                %v195 = vld [vmem:[%s189 + $0x30] sm:%s182]
                %196 = vst [vmem:[%s190 + $0x10] sm:%s182] %v195
                %v197 = vld [vmem:[%s189 + $0x48] sm:%s182]
                %198 = vst [vmem:[%s190 + $0x18] sm:%s182] %v197
                %v199 = vld [vmem:[%s189 + $0x60] sm:%s182]
                %200 = vst [vmem:[%s190 + $0x20] sm:%s182] %v199
                %v201 = vld [vmem:[%s189 + $0x78] sm:%s182]
                %202 = vst [vmem:[%s190 + $0x28] sm:%s182] %v201
                %v203 = vld [vmem:[%s189 + $0x90] sm:%s182]
                %204 = vst [vmem:[%s190 + $0x30] sm:%s182] %v203
                %v205 = vld [vmem:[%s189 + $0xa8] sm:%s182]
                %206 = vst [vmem:[%s190 + $0x38] sm:%s182] %v205
                %v207 = vld [vmem:[%s189 + $0xc0] sm:%s182]
                %208 = vst [vmem:[%s190 + $0x40] sm:%s182] %v207
                %v209 = vld [vmem:[%s189 + $0xd8] sm:%s182]
                %210 = vst [vmem:[%s190 + $0x48] sm:%s182] %v209
                %v211 = vld [vmem:[%s189 + $0xf0] sm:%s182]
                %212 = vst [vmem:[%s190 + $0x50] sm:%s182] %v211
                %v213 = vld [vmem:[%s189 + $0x108] sm:%s182]
                %214 = vst [vmem:[%s190 + $0x58] sm:%s182] %v213
                %v215 = vld [vmem:[%s189 + $0x120] sm:%s182]
                %216 = vst [vmem:[%s190 + $0x60] sm:%s182] %v215
                %v217 = vld [vmem:[%s189 + $0x138] sm:%s182]
                %218 = vst [vmem:[%s190 + $0x68] sm:%s182] %v217
                %v219 = vld [vmem:[%s189 + $0x150] sm:%s182]
                %220 = vst [vmem:[%s190 + $0x70] sm:%s182] %v219
                %v221 = vld [vmem:[%s189 + $0x168] sm:%s182]
                %222 = vst [vmem:[%s190 + $0x78] sm:%s182] %v221
              $region41: #{generator_forward.33} parent=35 // loop_footer
                %s188 = sadd.s32 1, %s184
              $region42: #{generator_forward.33} parent=35 // loop_footer_branch
                %183 = sbr.rel target = $region38
              $region43: #{generator_forward.33} parent=35 // loop_exit
                _
            $region36: #{generator_forward.33} parent=27 // pred_fallthru
              _
          $region28: #{generator_forward.33} parent=23 // pred_fallthru
            _
          %267 = vnop
        $region24: #{generator_forward.33} parent=19 // pred_fallthru
          _
        // Predicated region
        $region59: #{generator_forward.33} parent=19 // pred_check
          %p268 = pneg %p78
        $region60: #{generator_forward.33} parent=19 // pred_check_branch
          %270 = sbr.rel (%p268) target = $region62
        $region61: #{generator_forward.33} parent=19 // pred_region
          %s271 = smul.u32 16, %s18
          %p272 = scmp.lt.s32.totalorder %s271, 47
          %s273 = scalar_select %p272, %s271, 47
          %p274 = scmp.lt.s32.totalorder %s17, 0
          %s275 = scalar_select %p274, %s17, 0
          %s276 = sadd.s32 %s275, %s273
          %s277 = smul.addr %s276, 8
          %s278 = scalar_lea.vmem %s1, %s277
          %s279 = smul.u32 16, %s18
        $region62: #{generator_forward.33} parent=19 // pred_fallthru
          _
      $region20: #{generator_forward.33} parent=5 // pred_fallthru
        _
      %p280 = scmp.le.s32.totalorder 1, %s9
      %p281 = scmp.lt.s32.totalorder %s9, 4
      %p282 = pnand %p280, %p281
      %p283 = pneg %p282
      // Predicated region
      $region63: #{generator_forward.33} parent=5 // pred_check
        _
      $region64: #{generator_forward.33} parent=5 // pred_check_branch
        %285 = sbr.rel (%p282) target = $region66
      $region65: #{generator_forward.33} parent=5 // pred_region
        %s286 = ssub.s32 %s9, 1
        %s287 = sand.u32 %s43, 1
        %s288 = sand.u32 %s43, 1
        %s289 = smul.addr %s288, 128
        %s290 = scalar_lea.vmem [#allocation3], %s289
        // Predicated region
        $region67: #{generator_forward.33} parent=65 // pred_check
          %p291 = pneg %p56
        $region68: #{generator_forward.33} parent=65 // pred_check_branch
          %293 = sbr.rel (%p291) target = $region70
        $region69: #{generator_forward.33} parent=65 // pred_region
          _
        $region70: #{generator_forward.33} parent=65 // pred_fallthru
          _
        %s294 = sand.u32 %s43, 1
        %s295 = sand.u32 %s43, 1
        %s296 = smul.addr %s295, 128
        %s297 = scalar_lea.vmem [#allocation3], %s296
        %p298 = pneg %p56
        %p299 = pneg %p53
        %s300 = smul.u32 16, %s21
        %p301 = scmp.lt.s32.totalorder %s300, 47
        %s302 = scalar_select %p301, %s300, 47
        %p303 = scmp.lt.s32.totalorder %s20, 0
        %s304 = scalar_select %p303, %s20, 0
        %s305 = sadd.s32 %s304, %s302
        %s306 = smul.addr %s305, 8
        %s307 = scalar_lea.vmem %s1, %s306
        %p308 = pneg %p84
        %p309 = pneg %p81
        %p310 = scmp.lt.s32.totalorder %s20, 0
        %s311 = scalar_select %p310, %s20, 0
        %s312 = scalar_lea.vmem %s2, %s311
        %p313 = pneg %p110
        %p314 = pneg %p107
        %p315 = pneg %p138
        %p316 = pneg %p135
        %s317 = smul.u32 16, %s19
        %p318 = scmp.lt.s32.totalorder %s317, 15
        %s319 = scalar_select %p318, %s317, 15
        %p320 = scmp.lt.s32.totalorder %s20, 0
        %s321 = scalar_select %p320, %s20, 0
        %s322 = sadd.s32 %s321, %s319
        %s323 = smul.addr %s322, 8
        %s324 = scalar_lea.vmem %s3, %s323
        %s325 = smul.u32 16, %s19
        %s326 = smul.u32 16, %s21
        %p327 = scmp.lt.s32.totalorder %s326, 47
        %s328 = scalar_select %p327, %s326, 47
        %p329 = scmp.lt.s32.totalorder %s20, 0
        %s330 = scalar_select %p329, %s20, 0
        %s331 = sadd.s32 %s330, %s328
        %s332 = smul.addr %s331, 8
        %s333 = scalar_lea.vmem %s1, %s332
        %s334 = smul.u32 16, %s21
        %p335 = scmp.lt.s32.totalorder %s20, 0
        %s336 = scalar_select %p335, %s20, 0
        %s337 = scalar_lea.vmem %s2, %s336
        %s338 = smul.u32 16, %s19
        %p339 = scmp.lt.s32.totalorder %s338, 15
        %s340 = scalar_select %p339, %s338, 15
        %p341 = scmp.lt.s32.totalorder %s20, 0
        %s342 = scalar_select %p341, %s20, 0
        %s343 = sadd.s32 %s342, %s340
        %s344 = smul.addr %s343, 8
        %s345 = scalar_lea.vmem %s3, %s344
        %s346 = smul.u32 16, %s19
        %p347 = scmp.eq.s32.totalorder %s21, 0
        // Predicated region
        $region71: #{generator_forward.33} parent=65 // pred_check
          %p348 = pneg %p347
        $region72: #{generator_forward.33} parent=65 // pred_check_branch
          %350 = sbr.rel (%p348) target = $region74
        $region73: #{generator_forward.33} parent=65 // pred_region
          %351 = vst [vmem:[#allocation2] sm:$0xff] 0.0
          %352 = vst [vmem:[#allocation2 + $0x8] sm:$0xff] 0.0
          %353 = vst [vmem:[#allocation2 + $0x10] sm:$0xff] 0.0
          %354 = vst [vmem:[#allocation2 + $0x18] sm:$0xff] 0.0
          %355 = vst [vmem:[#allocation2 + $0x20] sm:$0xff] 0.0
          %356 = vst [vmem:[#allocation2 + $0x28] sm:$0xff] 0.0
          %357 = vst [vmem:[#allocation2 + $0x30] sm:$0xff] 0.0
          %358 = vst [vmem:[#allocation2 + $0x38] sm:$0xff] 0.0
          %359 = vst [vmem:[#allocation2 + $0x40] sm:$0xff] 0.0
          %360 = vst [vmem:[#allocation2 + $0x48] sm:$0xff] 0.0
          %361 = vst [vmem:[#allocation2 + $0x50] sm:$0xff] 0.0
          %362 = vst [vmem:[#allocation2 + $0x58] sm:$0xff] 0.0
          %363 = vst [vmem:[#allocation2 + $0x60] sm:$0xff] 0.0
          %364 = vst [vmem:[#allocation2 + $0x68] sm:$0xff] 0.0
          %365 = vst [vmem:[#allocation2 + $0x70] sm:$0xff] 0.0
          %366 = vst [vmem:[#allocation2 + $0x78] sm:$0xff] 0.0
        $region74: #{generator_forward.33} parent=65 // pred_fallthru
          _
        %v367 = vld [vmem:[#allocation2] sm:$0xff]
        %v368 = vld [vmem:[#allocation2 + $0x8] sm:$0xff]
        %v369 = vld [vmem:[#allocation2 + $0x10] sm:$0xff]
        %v370 = vld [vmem:[#allocation2 + $0x18] sm:$0xff]
        %v371 = vld [vmem:[#allocation2 + $0x20] sm:$0xff]
        %v372 = vld [vmem:[#allocation2 + $0x28] sm:$0xff]
        %v373 = vld [vmem:[#allocation2 + $0x30] sm:$0xff]
        %v374 = vld [vmem:[#allocation2 + $0x38] sm:$0xff]
        %v375 = vld [vmem:[#allocation2 + $0x40] sm:$0xff]
        %v376 = vld [vmem:[#allocation2 + $0x48] sm:$0xff]
        %v377 = vld [vmem:[#allocation2 + $0x50] sm:$0xff]
        %v378 = vld [vmem:[#allocation2 + $0x58] sm:$0xff]
        %v379 = vld [vmem:[#allocation2 + $0x60] sm:$0xff]
        %v380 = vld [vmem:[#allocation2 + $0x68] sm:$0xff]
        %v381 = vld [vmem:[#allocation2 + $0x70] sm:$0xff]
        %v382 = vld [vmem:[#allocation2 + $0x78] sm:$0xff]
        %v383 = vld [vmem:[%s290] sm:$0xff]
        %v384 = vld [vmem:[%s290 + $0x8] sm:$0xff]
        %v385 = vld [vmem:[%s290 + $0x10] sm:$0xff]
        %v386 = vld [vmem:[%s290 + $0x18] sm:$0xff]
        %v387 = vld [vmem:[%s290 + $0x20] sm:$0xff]
        %v388 = vld [vmem:[%s290 + $0x28] sm:$0xff]
        %v389 = vld [vmem:[%s290 + $0x30] sm:$0xff]
        %v390 = vld [vmem:[%s290 + $0x38] sm:$0xff]
        %v391 = vld [vmem:[%s290 + $0x40] sm:$0xff]
        %v392 = vld [vmem:[%s290 + $0x48] sm:$0xff]
        %v393 = vld [vmem:[%s290 + $0x50] sm:$0xff]
        %v394 = vld [vmem:[%s290 + $0x58] sm:$0xff]
        %v395 = vld [vmem:[%s290 + $0x60] sm:$0xff]
        %v396 = vld [vmem:[%s290 + $0x68] sm:$0xff]
        %v397 = vld [vmem:[%s290 + $0x70] sm:$0xff]
        %v398 = vld [vmem:[%s290 + $0x78] sm:$0xff]
        %v399 = vld [vmem:[%s333] sm:$0xff]
        %v400 = vld [vmem:[%s333 + $0x8] sm:$0xff]
        %v401 = vld [vmem:[%s333 + $0x10] sm:$0xff]
        %v402 = vld [vmem:[%s333 + $0x18] sm:$0xff]
        %v403 = vld [vmem:[%s333 + $0x20] sm:$0xff]
        %v404 = vld [vmem:[%s333 + $0x28] sm:$0xff]
        %v405 = vld [vmem:[%s333 + $0x30] sm:$0xff]
        %v406 = vld [vmem:[%s333 + $0x38] sm:$0xff]
        %v407 = vld [vmem:[%s333 + $0x40] sm:$0xff]
        %v408 = vld [vmem:[%s333 + $0x48] sm:$0xff]
        %v409 = vld [vmem:[%s333 + $0x50] sm:$0xff]
        %v410 = vld [vmem:[%s333 + $0x58] sm:$0xff]
        %v411 = vld [vmem:[%s333 + $0x60] sm:$0xff]
        %v412 = vld [vmem:[%s333 + $0x68] sm:$0xff]
        %v413 = vld [vmem:[%s333 + $0x70] sm:$0xff]
        %v414 = vld [vmem:[%s333 + $0x78] sm:$0xff]
        %415 = vmatpush.msra.mxu0 %v414
        %416 = vmatpush.msra.mxu0 %v413
        %417 = vmatpush.msra.mxu0 %v412
        %418 = vmatpush.msra.mxu0 %v411
        %419 = vmatpush.msra.mxu0 %v410
        %420 = vmatpush.msra.mxu0 %v409
        %421 = vmatpush.msra.mxu0 %v408
        %422 = vmatpush.msra.mxu0 %v407
        %423 = vmatpush.msra.mxu0 %v406
        %424 = vmatpush.msra.mxu0 %v405
        %425 = vmatpush.msra.mxu0 %v404
        %426 = vmatpush.msra.mxu0 %v403
        %427 = vmatpush.msra.mxu0 %v402
        %428 = vmatpush.msra.mxu0 %v401
        %429 = vmatpush.msra.mxu0 %v400
        %430 = vmatpush.msra.mxu0 %v399
        %431 = vmatmul.f32.gmra.mxu0 %v383
        %v432 = vpop.f32.mrf.mxu0
        %v433 = vadd.f32 0.0, %v432
        %434 = vmatmul.f32.gmra.mxu0 %v384
        %v435 = vpop.f32.mrf.mxu0
        %v436 = vadd.f32 0.0, %v435
        %437 = vmatmul.f32.gmra.mxu0 %v385
        %v438 = vpop.f32.mrf.mxu0
        %v439 = vadd.f32 0.0, %v438
        %440 = vmatmul.f32.gmra.mxu0 %v386
        %v441 = vpop.f32.mrf.mxu0
        %v442 = vadd.f32 0.0, %v441
        %443 = vmatmul.f32.gmra.mxu0 %v387
        %v444 = vpop.f32.mrf.mxu0
        %v445 = vadd.f32 0.0, %v444
        %446 = vmatmul.f32.gmra.mxu0 %v388
        %v447 = vpop.f32.mrf.mxu0
        %v448 = vadd.f32 0.0, %v447
        %449 = vmatmul.f32.gmra.mxu0 %v389
        %v450 = vpop.f32.mrf.mxu0
        %v451 = vadd.f32 0.0, %v450
        %452 = vmatmul.f32.gmra.mxu0 %v390
        %v453 = vpop.f32.mrf.mxu0
        %v454 = vadd.f32 0.0, %v453
        %455 = vmatmul.f32.gmra.mxu0 %v391
        %v456 = vpop.f32.mrf.mxu0
        %v457 = vadd.f32 0.0, %v456
        %458 = vmatmul.f32.gmra.mxu0 %v392
        %v459 = vpop.f32.mrf.mxu0
        %v460 = vadd.f32 0.0, %v459
        %461 = vmatmul.f32.gmra.mxu0 %v393
        %v462 = vpop.f32.mrf.mxu0
        %v463 = vadd.f32 0.0, %v462
        %464 = vmatmul.f32.gmra.mxu0 %v394
        %v465 = vpop.f32.mrf.mxu0
        %v466 = vadd.f32 0.0, %v465
        %467 = vmatmul.f32.gmra.mxu0 %v395
        %v468 = vpop.f32.mrf.mxu0
        %v469 = vadd.f32 0.0, %v468
        %470 = vmatmul.f32.gmra.mxu0 %v396
        %v471 = vpop.f32.mrf.mxu0
        %v472 = vadd.f32 0.0, %v471
        %473 = vmatmul.f32.gmra.mxu0 %v397
        %v474 = vpop.f32.mrf.mxu0
        %v475 = vadd.f32 0.0, %v474
        %476 = vmatmul.f32.gmra.mxu0 %v398
        %v477 = vpop.f32.mrf.mxu0
        %v478 = vadd.f32 0.0, %v477
        %479 = vdwg.mxu0
        %v480 = vadd.f32 %v367, %v433
        %v481 = vadd.f32 %v368, %v436
        %v482 = vadd.f32 %v369, %v439
        %v483 = vadd.f32 %v370, %v442
        %v484 = vadd.f32 %v371, %v445
        %v485 = vadd.f32 %v372, %v448
        %v486 = vadd.f32 %v373, %v451
        %v487 = vadd.f32 %v374, %v454
        %v488 = vadd.f32 %v375, %v457
        %v489 = vadd.f32 %v376, %v460
        %v490 = vadd.f32 %v377, %v463
        %v491 = vadd.f32 %v378, %v466
        %v492 = vadd.f32 %v379, %v469
        %v493 = vadd.f32 %v380, %v472
        %v494 = vadd.f32 %v381, %v475
        %v495 = vadd.f32 %v382, %v478
        %496 = vst [vmem:[#allocation2] sm:$0xff] %v480
        %497 = vst [vmem:[#allocation2 + $0x8] sm:$0xff] %v481
        %498 = vst [vmem:[#allocation2 + $0x10] sm:$0xff] %v482
        %499 = vst [vmem:[#allocation2 + $0x18] sm:$0xff] %v483
        %500 = vst [vmem:[#allocation2 + $0x20] sm:$0xff] %v484
        %501 = vst [vmem:[#allocation2 + $0x28] sm:$0xff] %v485
        %502 = vst [vmem:[#allocation2 + $0x30] sm:$0xff] %v486
        %503 = vst [vmem:[#allocation2 + $0x38] sm:$0xff] %v487
        %504 = vst [vmem:[#allocation2 + $0x40] sm:$0xff] %v488
        %505 = vst [vmem:[#allocation2 + $0x48] sm:$0xff] %v489
        %506 = vst [vmem:[#allocation2 + $0x50] sm:$0xff] %v490
        %507 = vst [vmem:[#allocation2 + $0x58] sm:$0xff] %v491
        %508 = vst [vmem:[#allocation2 + $0x60] sm:$0xff] %v492
        %509 = vst [vmem:[#allocation2 + $0x68] sm:$0xff] %v493
        %510 = vst [vmem:[#allocation2 + $0x70] sm:$0xff] %v494
        %511 = vst [vmem:[#allocation2 + $0x78] sm:$0xff] %v495
        %p512 = scmp.eq.s32.totalorder %s21, 2
        // Predicated region
        $region75: #{generator_forward.33} parent=65 // pred_check
          %p513 = pneg %p512
        $region76: #{generator_forward.33} parent=65 // pred_check_branch
          %515 = sbr.rel (%p513) target = $region78
        $region77: #{generator_forward.33} parent=65 // pred_region
          %v516 = vld [vmem:[#allocation2] sm:$0xff]
          %v517 = vld [vmem:[#allocation2 + $0x8] sm:$0xff]
          %v518 = vld [vmem:[#allocation2 + $0x10] sm:$0xff]
          %v519 = vld [vmem:[#allocation2 + $0x18] sm:$0xff]
          %v520 = vld [vmem:[#allocation2 + $0x20] sm:$0xff]
          %v521 = vld [vmem:[#allocation2 + $0x28] sm:$0xff]
          %v522 = vld [vmem:[#allocation2 + $0x30] sm:$0xff]
          %v523 = vld [vmem:[#allocation2 + $0x38] sm:$0xff]
          %v524 = vld [vmem:[#allocation2 + $0x40] sm:$0xff]
          %v525 = vld [vmem:[#allocation2 + $0x48] sm:$0xff]
          %v526 = vld [vmem:[#allocation2 + $0x50] sm:$0xff]
          %v527 = vld [vmem:[#allocation2 + $0x58] sm:$0xff]
          %v528 = vld [vmem:[#allocation2 + $0x60] sm:$0xff]
          %v529 = vld [vmem:[#allocation2 + $0x68] sm:$0xff]
          %v530 = vld [vmem:[#allocation2 + $0x70] sm:$0xff]
          %v531 = vld [vmem:[#allocation2 + $0x78] sm:$0xff]
          %v532 = vld [vmem:[%s337] sm:$0x1]
          %v534 = vperm.slane %v532, 0
          %v536 = vadd.f32 %v516, %v534
          %v537 = vadd.f32 %v517, %v534
          %v538 = vadd.f32 %v518, %v534
          %v539 = vadd.f32 %v519, %v534
          %v540 = vadd.f32 %v520, %v534
          %v541 = vadd.f32 %v521, %v534
          %v542 = vadd.f32 %v522, %v534
          %v543 = vadd.f32 %v523, %v534
          %v544 = vadd.f32 %v524, %v534
          %v545 = vadd.f32 %v525, %v534
          %v546 = vadd.f32 %v526, %v534
          %v547 = vadd.f32 %v527, %v534
          %v548 = vadd.f32 %v528, %v534
          %v549 = vadd.f32 %v529, %v534
          %v550 = vadd.f32 %v530, %v534
          %v551 = vadd.f32 %v531, %v534
          %552 = vst [vmem:[%s345] sm:$0xff] %v536
          %553 = vst [vmem:[%s345 + $0x8] sm:$0xff] %v537
          %554 = vst [vmem:[%s345 + $0x10] sm:$0xff] %v538
          %555 = vst [vmem:[%s345 + $0x18] sm:$0xff] %v539
          %556 = vst [vmem:[%s345 + $0x20] sm:$0xff] %v540
          %557 = vst [vmem:[%s345 + $0x28] sm:$0xff] %v541
          %558 = vst [vmem:[%s345 + $0x30] sm:$0xff] %v542
          %559 = vst [vmem:[%s345 + $0x38] sm:$0xff] %v543
          %560 = vst [vmem:[%s345 + $0x40] sm:$0xff] %v544
          %561 = vst [vmem:[%s345 + $0x48] sm:$0xff] %v545
          %562 = vst [vmem:[%s345 + $0x50] sm:$0xff] %v546
          %563 = vst [vmem:[%s345 + $0x58] sm:$0xff] %v547
          %564 = vst [vmem:[%s345 + $0x60] sm:$0xff] %v548
          %565 = vst [vmem:[%s345 + $0x68] sm:$0xff] %v549
          %566 = vst [vmem:[%s345 + $0x70] sm:$0xff] %v550
          %567 = vst [vmem:[%s345 + $0x78] sm:$0xff] %v551
        $region78: #{generator_forward.33} parent=65 // pred_fallthru
          _
        %s568 = smul.u32 16, %s19
        %p569 = scmp.lt.s32.totalorder %s568, 15
        %s570 = scalar_select %p569, %s568, 15
        %p571 = scmp.lt.s32.totalorder %s20, 0
        %s572 = scalar_select %p571, %s20, 0
        %s573 = sadd.s32 %s572, %s570
        %s574 = smul.addr %s573, 8
        %s575 = scalar_lea.vmem %s3, %s574
        // Predicated region
        $region79: #{generator_forward.33} parent=65 // pred_check
          %p576 = pneg %p135
        $region80: #{generator_forward.33} parent=65 // pred_check_branch
          %578 = sbr.rel (%p576) target = $region82
        $region81: #{generator_forward.33} parent=65 // pred_region
          %s579 = smul.u32 16, %s19
        $region82: #{generator_forward.33} parent=65 // pred_fallthru
          _
        // Predicated region
        $region83: #{generator_forward.33} parent=65 // pred_check
          %p580 = pneg %p135
        $region84: #{generator_forward.33} parent=65 // pred_check_branch
          %582 = sbr.rel (%p580) target = $region86
        $region85: #{generator_forward.33} parent=65 // pred_region
          %s583 = smul.u32 16, %s19
          %p584 = scmp.lt.s32.totalorder %s583, 15
          %s585 = scalar_select %p584, %s583, 15
          %p586 = scmp.lt.s32.totalorder %s20, 0
          %s587 = scalar_select %p586, %s20, 0
          %s588 = sadd.s32 %s587, %s585
          %s589 = smul.addr %s588, 8
          %s590 = scalar_lea.vmem %s3, %s589
        $region86: #{generator_forward.33} parent=65 // pred_fallthru
          _
      $region66: #{generator_forward.33} parent=5 // pred_fallthru
        _
      %p591 = scmp.le.s32.totalorder 2, %s9
      // Predicated region
      $region87: #{generator_forward.33} parent=5 // pred_check
        %p592 = pneg %p591
      $region88: #{generator_forward.33} parent=5 // pred_check_branch
        %594 = sbr.rel (%p592) target = $region90
      $region89: #{generator_forward.33} parent=5 // pred_region
        %s595 = ssub.s32 %s9, 2
      $region90: #{generator_forward.33} parent=5 // pred_fallthru
        _
    $region6: #{generator_forward.33} parent=1 // loop_footer
      %s13 = sadd.s32 1, %s9
    $region7: #{generator_forward.33} parent=1 // loop_footer_branch
      %8 = sbr.rel target = $region3
    $region8: #{generator_forward.33} parent=1 // loop_exit
      _

// kernel: generator_forward.37
$region0: #{generator_forward.37}
  #allocation0 [shape = 'u32[]', space=smem, size = 0x4, offset = 0x4, fixed_abs, tag = 'smem constant byte address 0x4 - core index']
  #allocation1 [shape = 'u32[72,128]{1,0:T(1,128)}', space=vmem, size = 0x9000, scoped, tag = 'internal scratch']
  #allocation2 [shape = 'f32[256,128]{1,0:T(8,128)}', space=vmem, size = 0x20000, scoped, tag = 'scratch operand']
  %s0 = inlined_call_operand.vmem [shape: f32[512,512], index: 0, kind: input, shape index: {}]
  %s1 = inlined_call_operand.vmem [shape: f32[512,128], index: 1, kind: input, shape index: {}]
  %s2 = inlined_call_operand.vmem [shape: f32[1,128], index: 2, kind: input, shape index: {}]
  %s3 = inlined_call_operand.vmem [shape: f32[512,128], index: 3, kind: output, shape index: {}]
  %s4 = sld [smem:[#allocation0]]
  $region91: #{generator_forward.37} parent=0
    _
  %s6 = ssub.s32 1, %s4
  %s7 = scalar_select 0, %s6, %s4
  $region1: #{generator_forward.37} parent=0
    #allocation3 [shape = 'u8[262144]{0}', space=vmem, size = 0x40000, scoped, tag = 'input window, operand 0']
    loop: start=0, step=1, limit=10
    $region2: #{generator_forward.37} parent=1 // loop_pre_header
      _
    $region3: #{generator_forward.37} parent=1 // loop_header
      %s9 = sphi 0, %s13
      %p10 = scmp.ge.s32.totalorder %s9, 10
      %s16 = sphi 0, %s35
      %s17 = sphi 0, %s31
      %s18 = sphi 0, %s27
      %s19 = sphi 0, %s16
      %s20 = sphi 0, %s17
      %s21 = sphi 0, %s18
      %s22 = sphi 0, %s19
      %s23 = sphi 0, %s20
      %s24 = sphi 0, %s21
      %s40 = sphi 0, %s42
      %s43 = sphi 0, %s40
      %s44 = sphi 0, %s43
      %s60 = sphi 0, %s44
      %s68 = sphi 0, %s70
      %s71 = sphi 0, %s68
      %s72 = sphi 0, %s71
      %s88 = sphi 0, %s72
      %s94 = sphi 0, %s96
      %s97 = sphi 0, %s94
      %s98 = sphi 0, %s97
      %s114 = sphi 0, %s98
      %s122 = sphi 0, %s124
      %s125 = sphi 0, %s122
      %s126 = sphi 0, %s125
      %s142 = sphi 0, %s126
    $region4: #{generator_forward.37} parent=1 // loop_header_branch
      %12 = sbr.rel (%p10) target = $region8
    $region5: #{generator_forward.37} parent=1 // loop_body
      %s14 = ssub.s32 %s9, 1
      %s15 = ssub.s32 %s9, 2
      %s25 = sadd.s32 1, %s18
      %p26 = scmp.ge.s32.totalorder %s25, 4
      %s27 = scalar_select %p26, 0, %s25
      %s28 = sadd.s32 1, %s17
      %s29 = scalar_select %p26, %s28, %s17
      %p30 = scmp.ge.s32.totalorder %s29, 1
      %s31 = scalar_select %p30, 0, %s29
      %s32 = sadd.s32 1, %s16
      %s33 = scalar_select %p30, %s32, %s16
      %p34 = scmp.ge.s32.totalorder %s33, 2
      %s35 = scalar_select %p34, 0, %s33
      %s36 = ssub.s32 %s16, %s35
      %s37 = ssub.s32 %s18, %s27
      %s38 = sor.u32 %s36, %s37
      %p39 = scmp.eq.s32.totalorder %s38, 0
      %s41 = sadd.s32 %s40, 1
      %s42 = scalar_select %p39, %s40, %s41
      %p45 = pneg %p39
      %p46 = scmp.eq.s32.totalorder %s9, 7
      %p47 = por %p45, %p46
      %p48 = scmp.ne.s32.totalorder %s40, %s43
      %p49 = scmp.eq.s32.totalorder %s9, 0
      %p50 = por %p48, %p49
      %p51 = scmp.ne.s32.totalorder %s40, %s43
      %p52 = scmp.eq.s32.totalorder %s14, 7
      %p53 = por %p51, %p52
      %p54 = scmp.ne.s32.totalorder %s43, %s44
      %p55 = scmp.eq.s32.totalorder %s14, 0
      %p56 = por %p54, %p55
      %p57 = scmp.ne.s32.totalorder %s43, %s44
      %p58 = scmp.eq.s32.totalorder %s15, 7
      %p59 = por %p57, %p58
      %p61 = scmp.ne.s32.totalorder %s44, %s60
      %p62 = scmp.eq.s32.totalorder %s15, 0
      %p63 = por %p61, %p62
      %s64 = ssub.s32 %s18, %s27
      %s65 = ssub.s32 %s17, %s31
      %s66 = sor.u32 %s64, %s65
      %p67 = scmp.eq.s32.totalorder %s66, 0
      %s69 = sadd.s32 %s68, 1
      %s70 = scalar_select %p67, %s68, %s69
      %p73 = pneg %p67
      %p74 = scmp.eq.s32.totalorder %s9, 7
      %p75 = por %p73, %p74
      %p76 = scmp.ne.s32.totalorder %s68, %s71
      %p77 = scmp.eq.s32.totalorder %s9, 0
      %p78 = por %p76, %p77
      %p79 = scmp.ne.s32.totalorder %s68, %s71
      %p80 = scmp.eq.s32.totalorder %s14, 7
      %p81 = por %p79, %p80
      %p82 = scmp.ne.s32.totalorder %s71, %s72
      %p83 = scmp.eq.s32.totalorder %s14, 0
      %p84 = por %p82, %p83
      %p85 = scmp.ne.s32.totalorder %s71, %s72
      %p86 = scmp.eq.s32.totalorder %s15, 7
      %p87 = por %p85, %p86
      %p89 = scmp.ne.s32.totalorder %s72, %s88
      %p90 = scmp.eq.s32.totalorder %s15, 0
      %p91 = por %p89, %p90
      %s92 = ssub.s32 %s17, %s31
      %p93 = scmp.eq.s32.totalorder %s92, 0
      %s95 = sadd.s32 %s94, 1
      %s96 = scalar_select %p93, %s94, %s95
      %p99 = pneg %p93
      %p100 = scmp.eq.s32.totalorder %s9, 7
      %p101 = por %p99, %p100
      %p102 = scmp.ne.s32.totalorder %s94, %s97
      %p103 = scmp.eq.s32.totalorder %s9, 0
      %p104 = por %p102, %p103
      %p105 = scmp.ne.s32.totalorder %s94, %s97
      %p106 = scmp.eq.s32.totalorder %s14, 7
      %p107 = por %p105, %p106
      %p108 = scmp.ne.s32.totalorder %s97, %s98
      %p109 = scmp.eq.s32.totalorder %s14, 0
      %p110 = por %p108, %p109
      %p111 = scmp.ne.s32.totalorder %s97, %s98
      %p112 = scmp.eq.s32.totalorder %s15, 7
      %p113 = por %p111, %p112
      %p115 = scmp.ne.s32.totalorder %s98, %s114
      %p116 = scmp.eq.s32.totalorder %s15, 0
      %p117 = por %p115, %p116
      %s118 = ssub.s32 %s16, %s35
      %s119 = ssub.s32 %s17, %s31
      %s120 = sor.u32 %s118, %s119
      %p121 = scmp.eq.s32.totalorder %s120, 0
      %s123 = sadd.s32 %s122, 1
      %s124 = scalar_select %p121, %s122, %s123
      %p127 = pneg %p121
      %p128 = scmp.eq.s32.totalorder %s9, 7
      %p129 = por %p127, %p128
      %p130 = scmp.ne.s32.totalorder %s122, %s125
      %p131 = scmp.eq.s32.totalorder %s9, 0
      %p132 = por %p130, %p131
      %p133 = scmp.ne.s32.totalorder %s122, %s125
      %p134 = scmp.eq.s32.totalorder %s14, 7
      %p135 = por %p133, %p134
      %p136 = scmp.ne.s32.totalorder %s125, %s126
      %p137 = scmp.eq.s32.totalorder %s14, 0
      %p138 = por %p136, %p137
      %p139 = scmp.ne.s32.totalorder %s125, %s126
      %p140 = scmp.eq.s32.totalorder %s15, 7
      %p141 = por %p139, %p140
      %p143 = scmp.ne.s32.totalorder %s126, %s142
      %p144 = scmp.eq.s32.totalorder %s15, 0
      %p145 = por %p143, %p144
      %p146 = scmp.le.s32.totalorder 1, %s9
      %p147 = scmp.lt.s32.totalorder %s9, 9
      %p148 = pnand %p146, %p147
      %p149 = pneg %p148
      // Predicated region
      $region9: #{generator_forward.37} parent=5 // pred_check
        _
      $region10: #{generator_forward.37} parent=5 // pred_check_branch
        %151 = sbr.rel (%p148) target = $region12
      $region11: #{generator_forward.37} parent=5 // pred_region
        %s152 = ssub.s32 %s9, 1
        // Predicated region
        $region13: #{generator_forward.37} parent=11 // pred_check
          %p153 = pneg %p110
        $region14: #{generator_forward.37} parent=11 // pred_check_branch
          %155 = sbr.rel (%p153) target = $region16
        $region15: #{generator_forward.37} parent=11 // pred_region
          %p156 = scmp.lt.s32.totalorder %s20, 0
          %s157 = scalar_select %p156, %s20, 0
          %s158 = scalar_lea.vmem %s2, %s157
        $region16: #{generator_forward.37} parent=11 // pred_fallthru
          _
      $region12: #{generator_forward.37} parent=5 // pred_fallthru
        _
      %p159 = scmp.lt.s32.totalorder %s9, 8
      // Predicated region
      $region17: #{generator_forward.37} parent=5 // pred_check
        %p160 = pneg %p159
      $region18: #{generator_forward.37} parent=5 // pred_check_branch
        %162 = sbr.rel (%p160) target = $region20
      $region19: #{generator_forward.37} parent=5 // pred_region
        // Predicated region
        $region21: #{generator_forward.37} parent=19 // pred_check
          %p163 = pneg %p50
        $region22: #{generator_forward.37} parent=19 // pred_check_branch
          %165 = sbr.rel (%p163) target = $region24
        $region23: #{generator_forward.37} parent=19 // pred_region
          %s166 = sand.u32 %s40, 1
          %s167 = sand.u32 %s40, 1
          %s168 = smul.addr %s167, 256
          %s169 = scalar_lea.vmem [#allocation3], %s168
          %s170 = smul.u32 32, %s16
          %s171 = smul.addr %s170, 4
          %s172 = sadd.s32 %s18, %s171
          %s173 = smul.addr %s172, 8
          %s174 = scalar_lea.vmem %s0, %s173
          // Predicated region
          $region25: #{generator_forward.37} parent=23 // pred_check
            _
          $region26: #{generator_forward.37} parent=23 // pred_check_branch
            %176 = sbr.rel (0) target = $region28
          $region27: #{generator_forward.37} parent=23 // pred_region
            // Predicated region
            $region29: #{generator_forward.37} parent=27 // pred_check
              _
            $region30: #{generator_forward.37} parent=27 // pred_check_branch
              %178 = sbr.rel (0) target = $region32
            $region31: #{generator_forward.37} parent=27 // pred_region
              // Predicated region
              $region44: #{generator_forward.37} parent=31 // pred_check
                _
              $region45: #{generator_forward.37} parent=31 // pred_check_branch
                %256 = sbr.rel (0) target = $region47
              $region46: #{generator_forward.37} parent=31 // pred_region
                loop: start=0, step=1, limit=1
                $region48: #{generator_forward.37} parent=46 // loop_pre_header
                  _
                $region49: #{generator_forward.37} parent=46 // loop_header
                  %s258 = sphi 0, %s262
                  %p259 = scmp.ge.s32.totalorder %s258, 1
                  %s263 = sphi %s174, %s174
                  %s264 = sphi %s169, %s169
                $region50: #{generator_forward.37} parent=46 // loop_header_branch
                  %261 = sbr.rel (%p259) target = $region54
                $region51: #{generator_forward.37} parent=46 // loop_body
                  %v265 = vld [vmem:[%s263] sm:$0xff]
                  %266 = vst [vmem:[%s264] sm:$0xff] %v265
                  %v267 = vld [vmem:[%s263 + $0x20] sm:$0xff]
                  %268 = vst [vmem:[%s264 + $0x8] sm:$0xff] %v267
                  %v269 = vld [vmem:[%s263 + $0x40] sm:$0xff]
                  %270 = vst [vmem:[%s264 + $0x10] sm:$0xff] %v269
                  %v271 = vld [vmem:[%s263 + $0x60] sm:$0xff]
                  %272 = vst [vmem:[%s264 + $0x18] sm:$0xff] %v271
                  %v273 = vld [vmem:[%s263 + $0x80] sm:$0xff]
                  %274 = vst [vmem:[%s264 + $0x20] sm:$0xff] %v273
                  %v275 = vld [vmem:[%s263 + $0xa0] sm:$0xff]
                  %276 = vst [vmem:[%s264 + $0x28] sm:$0xff] %v275
                  %v277 = vld [vmem:[%s263 + $0xc0] sm:$0xff]
                  %278 = vst [vmem:[%s264 + $0x30] sm:$0xff] %v277
                  %v279 = vld [vmem:[%s263 + $0xe0] sm:$0xff]
                  %280 = vst [vmem:[%s264 + $0x38] sm:$0xff] %v279
                  %v281 = vld [vmem:[%s263 + $0x100] sm:$0xff]
                  %282 = vst [vmem:[%s264 + $0x40] sm:$0xff] %v281
                  %v283 = vld [vmem:[%s263 + $0x120] sm:$0xff]
                  %284 = vst [vmem:[%s264 + $0x48] sm:$0xff] %v283
                  %v285 = vld [vmem:[%s263 + $0x140] sm:$0xff]
                  %286 = vst [vmem:[%s264 + $0x50] sm:$0xff] %v285
                  %v287 = vld [vmem:[%s263 + $0x160] sm:$0xff]
                  %288 = vst [vmem:[%s264 + $0x58] sm:$0xff] %v287
                  %v289 = vld [vmem:[%s263 + $0x180] sm:$0xff]
                  %290 = vst [vmem:[%s264 + $0x60] sm:$0xff] %v289
                  %v291 = vld [vmem:[%s263 + $0x1a0] sm:$0xff]
                  %292 = vst [vmem:[%s264 + $0x68] sm:$0xff] %v291
                  %v293 = vld [vmem:[%s263 + $0x1c0] sm:$0xff]
                  %294 = vst [vmem:[%s264 + $0x70] sm:$0xff] %v293
                  %v295 = vld [vmem:[%s263 + $0x1e0] sm:$0xff]
                  %296 = vst [vmem:[%s264 + $0x78] sm:$0xff] %v295
                  %v297 = vld [vmem:[%s263 + $0x200] sm:$0xff]
                  %298 = vst [vmem:[%s264 + $0x80] sm:$0xff] %v297
                  %v299 = vld [vmem:[%s263 + $0x220] sm:$0xff]
                  %300 = vst [vmem:[%s264 + $0x88] sm:$0xff] %v299
                  %v301 = vld [vmem:[%s263 + $0x240] sm:$0xff]
                  %302 = vst [vmem:[%s264 + $0x90] sm:$0xff] %v301
                  %v303 = vld [vmem:[%s263 + $0x260] sm:$0xff]
                  %304 = vst [vmem:[%s264 + $0x98] sm:$0xff] %v303
                  %v305 = vld [vmem:[%s263 + $0x280] sm:$0xff]
                  %306 = vst [vmem:[%s264 + $0xa0] sm:$0xff] %v305
                  %v307 = vld [vmem:[%s263 + $0x2a0] sm:$0xff]
                  %308 = vst [vmem:[%s264 + $0xa8] sm:$0xff] %v307
                  %v309 = vld [vmem:[%s263 + $0x2c0] sm:$0xff]
                  %310 = vst [vmem:[%s264 + $0xb0] sm:$0xff] %v309
                  %v311 = vld [vmem:[%s263 + $0x2e0] sm:$0xff]
                  %312 = vst [vmem:[%s264 + $0xb8] sm:$0xff] %v311
                  %v313 = vld [vmem:[%s263 + $0x300] sm:$0xff]
                  %314 = vst [vmem:[%s264 + $0xc0] sm:$0xff] %v313
                  %v315 = vld [vmem:[%s263 + $0x320] sm:$0xff]
                  %316 = vst [vmem:[%s264 + $0xc8] sm:$0xff] %v315
                  %v317 = vld [vmem:[%s263 + $0x340] sm:$0xff]
                  %318 = vst [vmem:[%s264 + $0xd0] sm:$0xff] %v317
                  %v319 = vld [vmem:[%s263 + $0x360] sm:$0xff]
                  %320 = vst [vmem:[%s264 + $0xd8] sm:$0xff] %v319
                  %v321 = vld [vmem:[%s263 + $0x380] sm:$0xff]
                  %322 = vst [vmem:[%s264 + $0xe0] sm:$0xff] %v321
                  %v323 = vld [vmem:[%s263 + $0x3a0] sm:$0xff]
                  %324 = vst [vmem:[%s264 + $0xe8] sm:$0xff] %v323
                  %v325 = vld [vmem:[%s263 + $0x3c0] sm:$0xff]
                  %326 = vst [vmem:[%s264 + $0xf0] sm:$0xff] %v325
                  %v327 = vld [vmem:[%s263 + $0x3e0] sm:$0xff]
                  %328 = vst [vmem:[%s264 + $0xf8] sm:$0xff] %v327
                $region52: #{generator_forward.37} parent=46 // loop_footer
                  %s262 = sadd.s32 1, %s258
                $region53: #{generator_forward.37} parent=46 // loop_footer_branch
                  %257 = sbr.rel target = $region49
                $region54: #{generator_forward.37} parent=46 // loop_exit
                  _
              $region47: #{generator_forward.37} parent=31 // pred_fallthru
                _
              // Predicated region
              $region55: #{generator_forward.37} parent=31 // pred_check
                _
              $region56: #{generator_forward.37} parent=31 // pred_check_branch
                %330 = sbr.rel target = $region58
              $region57: #{generator_forward.37} parent=31 // pred_region
                _
              $region58: #{generator_forward.37} parent=31 // pred_fallthru
                _
            $region32: #{generator_forward.37} parent=27 // pred_fallthru
              _
            // Predicated region
            $region33: #{generator_forward.37} parent=27 // pred_check
              _
            $region34: #{generator_forward.37} parent=27 // pred_check_branch
              %180 = sbr.rel target = $region36
            $region35: #{generator_forward.37} parent=27 // pred_region
              %s182 = ssub.s32 256, 1
              loop: start=0, step=1, limit=1
              $region37: #{generator_forward.37} parent=35 // loop_pre_header
                _
              $region38: #{generator_forward.37} parent=35 // loop_header
                %s184 = sphi 0, %s188
                %p185 = scmp.ge.s32.totalorder %s184, 1
                %s189 = sphi %s174, %s174
                %s190 = sphi %s169, %s169
              $region39: #{generator_forward.37} parent=35 // loop_header_branch
                %187 = sbr.rel (%p185) target = $region43
              $region40: #{generator_forward.37} parent=35 // loop_body
                %v191 = vld [vmem:[%s189] sm:%s182]
                %192 = vst [vmem:[%s190] sm:%s182] %v191
                %v193 = vld [vmem:[%s189 + $0x20] sm:%s182]
                %194 = vst [vmem:[%s190 + $0x8] sm:%s182] %v193
                %v195 = vld [vmem:[%s189 + $0x40] sm:%s182]
                %196 = vst [vmem:[%s190 + $0x10] sm:%s182] %v195
                %v197 = vld [vmem:[%s189 + $0x60] sm:%s182]
                %198 = vst [vmem:[%s190 + $0x18] sm:%s182] %v197
                %v199 = vld [vmem:[%s189 + $0x80] sm:%s182]
                %200 = vst [vmem:[%s190 + $0x20] sm:%s182] %v199
                %v201 = vld [vmem:[%s189 + $0xa0] sm:%s182]
                %202 = vst [vmem:[%s190 + $0x28] sm:%s182] %v201
                %v203 = vld [vmem:[%s189 + $0xc0] sm:%s182]
                %204 = vst [vmem:[%s190 + $0x30] sm:%s182] %v203
                %v205 = vld [vmem:[%s189 + $0xe0] sm:%s182]
                %206 = vst [vmem:[%s190 + $0x38] sm:%s182] %v205
                %v207 = vld [vmem:[%s189 + $0x100] sm:%s182]
                %208 = vst [vmem:[%s190 + $0x40] sm:%s182] %v207
                %v209 = vld [vmem:[%s189 + $0x120] sm:%s182]
                %210 = vst [vmem:[%s190 + $0x48] sm:%s182] %v209
                %v211 = vld [vmem:[%s189 + $0x140] sm:%s182]
                %212 = vst [vmem:[%s190 + $0x50] sm:%s182] %v211
                %v213 = vld [vmem:[%s189 + $0x160] sm:%s182]
                %214 = vst [vmem:[%s190 + $0x58] sm:%s182] %v213
                %v215 = vld [vmem:[%s189 + $0x180] sm:%s182]
                %216 = vst [vmem:[%s190 + $0x60] sm:%s182] %v215
                %v217 = vld [vmem:[%s189 + $0x1a0] sm:%s182]
                %218 = vst [vmem:[%s190 + $0x68] sm:%s182] %v217
                %v219 = vld [vmem:[%s189 + $0x1c0] sm:%s182]
                %220 = vst [vmem:[%s190 + $0x70] sm:%s182] %v219
                %v221 = vld [vmem:[%s189 + $0x1e0] sm:%s182]
                %222 = vst [vmem:[%s190 + $0x78] sm:%s182] %v221
                %v223 = vld [vmem:[%s189 + $0x200] sm:%s182]
                %224 = vst [vmem:[%s190 + $0x80] sm:%s182] %v223
                %v225 = vld [vmem:[%s189 + $0x220] sm:%s182]
                %226 = vst [vmem:[%s190 + $0x88] sm:%s182] %v225
                %v227 = vld [vmem:[%s189 + $0x240] sm:%s182]
                %228 = vst [vmem:[%s190 + $0x90] sm:%s182] %v227
                %v229 = vld [vmem:[%s189 + $0x260] sm:%s182]
                %230 = vst [vmem:[%s190 + $0x98] sm:%s182] %v229
                %v231 = vld [vmem:[%s189 + $0x280] sm:%s182]
                %232 = vst [vmem:[%s190 + $0xa0] sm:%s182] %v231
                %v233 = vld [vmem:[%s189 + $0x2a0] sm:%s182]
                %234 = vst [vmem:[%s190 + $0xa8] sm:%s182] %v233
                %v235 = vld [vmem:[%s189 + $0x2c0] sm:%s182]
                %236 = vst [vmem:[%s190 + $0xb0] sm:%s182] %v235
                %v237 = vld [vmem:[%s189 + $0x2e0] sm:%s182]
                %238 = vst [vmem:[%s190 + $0xb8] sm:%s182] %v237
                %v239 = vld [vmem:[%s189 + $0x300] sm:%s182]
                %240 = vst [vmem:[%s190 + $0xc0] sm:%s182] %v239
                %v241 = vld [vmem:[%s189 + $0x320] sm:%s182]
                %242 = vst [vmem:[%s190 + $0xc8] sm:%s182] %v241
                %v243 = vld [vmem:[%s189 + $0x340] sm:%s182]
                %244 = vst [vmem:[%s190 + $0xd0] sm:%s182] %v243
                %v245 = vld [vmem:[%s189 + $0x360] sm:%s182]
                %246 = vst [vmem:[%s190 + $0xd8] sm:%s182] %v245
                %v247 = vld [vmem:[%s189 + $0x380] sm:%s182]
                %248 = vst [vmem:[%s190 + $0xe0] sm:%s182] %v247
                %v249 = vld [vmem:[%s189 + $0x3a0] sm:%s182]
                %250 = vst [vmem:[%s190 + $0xe8] sm:%s182] %v249
                %v251 = vld [vmem:[%s189 + $0x3c0] sm:%s182]
                %252 = vst [vmem:[%s190 + $0xf0] sm:%s182] %v251
                %v253 = vld [vmem:[%s189 + $0x3e0] sm:%s182]
                %254 = vst [vmem:[%s190 + $0xf8] sm:%s182] %v253
              $region41: #{generator_forward.37} parent=35 // loop_footer
                %s188 = sadd.s32 1, %s184
              $region42: #{generator_forward.37} parent=35 // loop_footer_branch
                %183 = sbr.rel target = $region38
              $region43: #{generator_forward.37} parent=35 // loop_exit
                _
            $region36: #{generator_forward.37} parent=27 // pred_fallthru
              _
          $region28: #{generator_forward.37} parent=23 // pred_fallthru
            _
          %331 = vnop
        $region24: #{generator_forward.37} parent=19 // pred_fallthru
          _
        // Predicated region
        $region59: #{generator_forward.37} parent=19 // pred_check
          %p332 = pneg %p78
        $region60: #{generator_forward.37} parent=19 // pred_check_branch
          %334 = sbr.rel (%p332) target = $region62
        $region61: #{generator_forward.37} parent=19 // pred_region
          %s335 = smul.u32 16, %s18
          %p336 = scmp.lt.s32.totalorder %s335, 63
          %s337 = scalar_select %p336, %s335, 63
          %p338 = scmp.lt.s32.totalorder %s17, 0
          %s339 = scalar_select %p338, %s17, 0
          %s340 = sadd.s32 %s339, %s337
          %s341 = smul.addr %s340, 8
          %s342 = scalar_lea.vmem %s1, %s341
          %s343 = smul.u32 16, %s18
        $region62: #{generator_forward.37} parent=19 // pred_fallthru
          _
      $region20: #{generator_forward.37} parent=5 // pred_fallthru
        _
      %p344 = scmp.le.s32.totalorder 1, %s9
      %p345 = scmp.lt.s32.totalorder %s9, 9
      %p346 = pnand %p344, %p345
      %p347 = pneg %p346
      // Predicated region
      $region63: #{generator_forward.37} parent=5 // pred_check
        _
      $region64: #{generator_forward.37} parent=5 // pred_check_branch
        %349 = sbr.rel (%p346) target = $region66
      $region65: #{generator_forward.37} parent=5 // pred_region
        %s350 = ssub.s32 %s9, 1
        %s351 = sand.u32 %s43, 1
        %s352 = sand.u32 %s43, 1
        %s353 = smul.addr %s352, 256
        %s354 = scalar_lea.vmem [#allocation3], %s353
        // Predicated region
        $region67: #{generator_forward.37} parent=65 // pred_check
          %p355 = pneg %p56
        $region68: #{generator_forward.37} parent=65 // pred_check_branch
          %357 = sbr.rel (%p355) target = $region70
        $region69: #{generator_forward.37} parent=65 // pred_region
          _
        $region70: #{generator_forward.37} parent=65 // pred_fallthru
          _
        %s358 = sand.u32 %s43, 1
        %s359 = sand.u32 %s43, 1
        %s360 = smul.addr %s359, 256
        %s361 = scalar_lea.vmem [#allocation3], %s360
        %p362 = pneg %p56
        %p363 = pneg %p53
        %s364 = smul.u32 16, %s21
        %p365 = scmp.lt.s32.totalorder %s364, 63
        %s366 = scalar_select %p365, %s364, 63
        %p367 = scmp.lt.s32.totalorder %s20, 0
        %s368 = scalar_select %p367, %s20, 0
        %s369 = sadd.s32 %s368, %s366
        %s370 = smul.addr %s369, 8
        %s371 = scalar_lea.vmem %s1, %s370
        %p372 = pneg %p84
        %p373 = pneg %p81
        %p374 = scmp.lt.s32.totalorder %s20, 0
        %s375 = scalar_select %p374, %s20, 0
        %s376 = scalar_lea.vmem %s2, %s375
        %p377 = pneg %p110
        %p378 = pneg %p107
        %p379 = pneg %p138
        %p380 = pneg %p135
        %s381 = smul.u32 32, %s19
        %p382 = scmp.lt.s32.totalorder %s381, 63
        %s383 = scalar_select %p382, %s381, 63
        %p384 = scmp.lt.s32.totalorder %s20, 0
        %s385 = scalar_select %p384, %s20, 0
        %s386 = sadd.s32 %s385, %s383
        %s387 = smul.addr %s386, 8
        %s388 = scalar_lea.vmem %s3, %s387
        %s389 = smul.u32 32, %s19
        %s390 = smul.u32 16, %s21
        %p391 = scmp.lt.s32.totalorder %s390, 63
        %s392 = scalar_select %p391, %s390, 63
        %p393 = scmp.lt.s32.totalorder %s20, 0
        %s394 = scalar_select %p393, %s20, 0
        %s395 = sadd.s32 %s394, %s392
        %s396 = smul.addr %s395, 8
        %s397 = scalar_lea.vmem %s1, %s396
        %s398 = smul.u32 16, %s21
        %p399 = scmp.lt.s32.totalorder %s20, 0
        %s400 = scalar_select %p399, %s20, 0
        %s401 = scalar_lea.vmem %s2, %s400
        %s402 = smul.u32 32, %s19
        %p403 = scmp.lt.s32.totalorder %s402, 63
        %s404 = scalar_select %p403, %s402, 63
        %p405 = scmp.lt.s32.totalorder %s20, 0
        %s406 = scalar_select %p405, %s20, 0
        %s407 = sadd.s32 %s406, %s404
        %s408 = smul.addr %s407, 8
        %s409 = scalar_lea.vmem %s3, %s408
        %s410 = smul.u32 32, %s19
        %p411 = scmp.eq.s32.totalorder %s21, 0
        // Predicated region
        $region71: #{generator_forward.37} parent=65 // pred_check
          %p412 = pneg %p411
        $region72: #{generator_forward.37} parent=65 // pred_check_branch
          %414 = sbr.rel (%p412) target = $region74
        $region73: #{generator_forward.37} parent=65 // pred_region
          %415 = vst [vmem:[#allocation2] sm:$0xff] 0.0
          %416 = vst [vmem:[#allocation2 + $0x8] sm:$0xff] 0.0
          %417 = vst [vmem:[#allocation2 + $0x10] sm:$0xff] 0.0
          %418 = vst [vmem:[#allocation2 + $0x18] sm:$0xff] 0.0
          %419 = vst [vmem:[#allocation2 + $0x20] sm:$0xff] 0.0
          %420 = vst [vmem:[#allocation2 + $0x28] sm:$0xff] 0.0
          %421 = vst [vmem:[#allocation2 + $0x30] sm:$0xff] 0.0
          %422 = vst [vmem:[#allocation2 + $0x38] sm:$0xff] 0.0
          %423 = vst [vmem:[#allocation2 + $0x40] sm:$0xff] 0.0
          %424 = vst [vmem:[#allocation2 + $0x48] sm:$0xff] 0.0
          %425 = vst [vmem:[#allocation2 + $0x50] sm:$0xff] 0.0
          %426 = vst [vmem:[#allocation2 + $0x58] sm:$0xff] 0.0
          %427 = vst [vmem:[#allocation2 + $0x60] sm:$0xff] 0.0
          %428 = vst [vmem:[#allocation2 + $0x68] sm:$0xff] 0.0
          %429 = vst [vmem:[#allocation2 + $0x70] sm:$0xff] 0.0
          %430 = vst [vmem:[#allocation2 + $0x78] sm:$0xff] 0.0
          %431 = vst [vmem:[#allocation2 + $0x80] sm:$0xff] 0.0
          %432 = vst [vmem:[#allocation2 + $0x88] sm:$0xff] 0.0
          %433 = vst [vmem:[#allocation2 + $0x90] sm:$0xff] 0.0
          %434 = vst [vmem:[#allocation2 + $0x98] sm:$0xff] 0.0
          %435 = vst [vmem:[#allocation2 + $0xa0] sm:$0xff] 0.0
          %436 = vst [vmem:[#allocation2 + $0xa8] sm:$0xff] 0.0
          %437 = vst [vmem:[#allocation2 + $0xb0] sm:$0xff] 0.0
          %438 = vst [vmem:[#allocation2 + $0xb8] sm:$0xff] 0.0
          %439 = vst [vmem:[#allocation2 + $0xc0] sm:$0xff] 0.0
          %440 = vst [vmem:[#allocation2 + $0xc8] sm:$0xff] 0.0
          %441 = vst [vmem:[#allocation2 + $0xd0] sm:$0xff] 0.0
          %442 = vst [vmem:[#allocation2 + $0xd8] sm:$0xff] 0.0
          %443 = vst [vmem:[#allocation2 + $0xe0] sm:$0xff] 0.0
          %444 = vst [vmem:[#allocation2 + $0xe8] sm:$0xff] 0.0
          %445 = vst [vmem:[#allocation2 + $0xf0] sm:$0xff] 0.0
          %446 = vst [vmem:[#allocation2 + $0xf8] sm:$0xff] 0.0
        $region74: #{generator_forward.37} parent=65 // pred_fallthru
          _
        %v447 = vld [vmem:[#allocation2] sm:$0xff]
        %v448 = vld [vmem:[#allocation2 + $0x8] sm:$0xff]
        %v449 = vld [vmem:[#allocation2 + $0x10] sm:$0xff]
        %v450 = vld [vmem:[#allocation2 + $0x18] sm:$0xff]
        %v451 = vld [vmem:[#allocation2 + $0x20] sm:$0xff]
        %v452 = vld [vmem:[#allocation2 + $0x28] sm:$0xff]
        %v453 = vld [vmem:[#allocation2 + $0x30] sm:$0xff]
        %v454 = vld [vmem:[#allocation2 + $0x38] sm:$0xff]
        %v455 = vld [vmem:[#allocation2 + $0x40] sm:$0xff]
        %v456 = vld [vmem:[#allocation2 + $0x48] sm:$0xff]
        %v457 = vld [vmem:[#allocation2 + $0x50] sm:$0xff]
        %v458 = vld [vmem:[#allocation2 + $0x58] sm:$0xff]
        %v459 = vld [vmem:[#allocation2 + $0x60] sm:$0xff]
        %v460 = vld [vmem:[#allocation2 + $0x68] sm:$0xff]
        %v461 = vld [vmem:[#allocation2 + $0x70] sm:$0xff]
        %v462 = vld [vmem:[#allocation2 + $0x78] sm:$0xff]
        %v463 = vld [vmem:[#allocation2 + $0x80] sm:$0xff]
        %v464 = vld [vmem:[#allocation2 + $0x88] sm:$0xff]
        %v465 = vld [vmem:[#allocation2 + $0x90] sm:$0xff]
        %v466 = vld [vmem:[#allocation2 + $0x98] sm:$0xff]
        %v467 = vld [vmem:[#allocation2 + $0xa0] sm:$0xff]
        %v468 = vld [vmem:[#allocation2 + $0xa8] sm:$0xff]
        %v469 = vld [vmem:[#allocation2 + $0xb0] sm:$0xff]
        %v470 = vld [vmem:[#allocation2 + $0xb8] sm:$0xff]
        %v471 = vld [vmem:[#allocation2 + $0xc0] sm:$0xff]
        %v472 = vld [vmem:[#allocation2 + $0xc8] sm:$0xff]
        %v473 = vld [vmem:[#allocation2 + $0xd0] sm:$0xff]
        %v474 = vld [vmem:[#allocation2 + $0xd8] sm:$0xff]
        %v475 = vld [vmem:[#allocation2 + $0xe0] sm:$0xff]
        %v476 = vld [vmem:[#allocation2 + $0xe8] sm:$0xff]
        %v477 = vld [vmem:[#allocation2 + $0xf0] sm:$0xff]
        %v478 = vld [vmem:[#allocation2 + $0xf8] sm:$0xff]
        %v479 = vld [vmem:[%s354] sm:$0xff]
        %v480 = vld [vmem:[%s354 + $0x8] sm:$0xff]
        %v481 = vld [vmem:[%s354 + $0x10] sm:$0xff]
        %v482 = vld [vmem:[%s354 + $0x18] sm:$0xff]
        %v483 = vld [vmem:[%s354 + $0x20] sm:$0xff]
        %v484 = vld [vmem:[%s354 + $0x28] sm:$0xff]
        %v485 = vld [vmem:[%s354 + $0x30] sm:$0xff]
        %v486 = vld [vmem:[%s354 + $0x38] sm:$0xff]
        %v487 = vld [vmem:[%s354 + $0x40] sm:$0xff]
        %v488 = vld [vmem:[%s354 + $0x48] sm:$0xff]
        %v489 = vld [vmem:[%s354 + $0x50] sm:$0xff]
        %v490 = vld [vmem:[%s354 + $0x58] sm:$0xff]
        %v491 = vld [vmem:[%s354 + $0x60] sm:$0xff]
        %v492 = vld [vmem:[%s354 + $0x68] sm:$0xff]
        %v493 = vld [vmem:[%s354 + $0x70] sm:$0xff]
        %v494 = vld [vmem:[%s354 + $0x78] sm:$0xff]
        %v495 = vld [vmem:[%s354 + $0x80] sm:$0xff]
        %v496 = vld [vmem:[%s354 + $0x88] sm:$0xff]
        %v497 = vld [vmem:[%s354 + $0x90] sm:$0xff]
        %v498 = vld [vmem:[%s354 + $0x98] sm:$0xff]
        %v499 = vld [vmem:[%s354 + $0xa0] sm:$0xff]
        %v500 = vld [vmem:[%s354 + $0xa8] sm:$0xff]
        %v501 = vld [vmem:[%s354 + $0xb0] sm:$0xff]
        %v502 = vld [vmem:[%s354 + $0xb8] sm:$0xff]
        %v503 = vld [vmem:[%s354 + $0xc0] sm:$0xff]
        %v504 = vld [vmem:[%s354 + $0xc8] sm:$0xff]
        %v505 = vld [vmem:[%s354 + $0xd0] sm:$0xff]
        %v506 = vld [vmem:[%s354 + $0xd8] sm:$0xff]
        %v507 = vld [vmem:[%s354 + $0xe0] sm:$0xff]
        %v508 = vld [vmem:[%s354 + $0xe8] sm:$0xff]
        %v509 = vld [vmem:[%s354 + $0xf0] sm:$0xff]
        %v510 = vld [vmem:[%s354 + $0xf8] sm:$0xff]
        %v511 = vld [vmem:[%s397] sm:$0xff]
        %v512 = vld [vmem:[%s397 + $0x8] sm:$0xff]
        %v513 = vld [vmem:[%s397 + $0x10] sm:$0xff]
        %v514 = vld [vmem:[%s397 + $0x18] sm:$0xff]
        %v515 = vld [vmem:[%s397 + $0x20] sm:$0xff]
        %v516 = vld [vmem:[%s397 + $0x28] sm:$0xff]
        %v517 = vld [vmem:[%s397 + $0x30] sm:$0xff]
        %v518 = vld [vmem:[%s397 + $0x38] sm:$0xff]
        %v519 = vld [vmem:[%s397 + $0x40] sm:$0xff]
        %v520 = vld [vmem:[%s397 + $0x48] sm:$0xff]
        %v521 = vld [vmem:[%s397 + $0x50] sm:$0xff]
        %v522 = vld [vmem:[%s397 + $0x58] sm:$0xff]
        %v523 = vld [vmem:[%s397 + $0x60] sm:$0xff]
        %v524 = vld [vmem:[%s397 + $0x68] sm:$0xff]
        %v525 = vld [vmem:[%s397 + $0x70] sm:$0xff]
        %v526 = vld [vmem:[%s397 + $0x78] sm:$0xff]
        %527 = vmatpush.msra.mxu0 %v526
        %528 = vmatpush.msra.mxu0 %v525
        %529 = vmatpush.msra.mxu0 %v524
        %530 = vmatpush.msra.mxu0 %v523
        %531 = vmatpush.msra.mxu0 %v522
        %532 = vmatpush.msra.mxu0 %v521
        %533 = vmatpush.msra.mxu0 %v520
        %534 = vmatpush.msra.mxu0 %v519
        %535 = vmatpush.msra.mxu0 %v518
        %536 = vmatpush.msra.mxu0 %v517
        %537 = vmatpush.msra.mxu0 %v516
        %538 = vmatpush.msra.mxu0 %v515
        %539 = vmatpush.msra.mxu0 %v514
        %540 = vmatpush.msra.mxu0 %v513
        %541 = vmatpush.msra.mxu0 %v512
        %542 = vmatpush.msra.mxu0 %v511
        %543 = vmatmul.f32.gmra.mxu0 %v479
        %v544 = vpop.f32.mrf.mxu0
        %v545 = vadd.f32 0.0, %v544
        %546 = vmatmul.f32.gmra.mxu0 %v480
        %v547 = vpop.f32.mrf.mxu0
        %v548 = vadd.f32 0.0, %v547
        %549 = vmatmul.f32.gmra.mxu0 %v481
        %v550 = vpop.f32.mrf.mxu0
        %v551 = vadd.f32 0.0, %v550
        %552 = vmatmul.f32.gmra.mxu0 %v482
        %v553 = vpop.f32.mrf.mxu0
        %v554 = vadd.f32 0.0, %v553
        %555 = vmatmul.f32.gmra.mxu0 %v483
        %v556 = vpop.f32.mrf.mxu0
        %v557 = vadd.f32 0.0, %v556
        %558 = vmatmul.f32.gmra.mxu0 %v484
        %v559 = vpop.f32.mrf.mxu0
        %v560 = vadd.f32 0.0, %v559
        %561 = vmatmul.f32.gmra.mxu0 %v485
        %v562 = vpop.f32.mrf.mxu0
        %v563 = vadd.f32 0.0, %v562
        %564 = vmatmul.f32.gmra.mxu0 %v486
        %v565 = vpop.f32.mrf.mxu0
        %v566 = vadd.f32 0.0, %v565
        %567 = vmatmul.f32.gmra.mxu0 %v487
        %v568 = vpop.f32.mrf.mxu0
        %v569 = vadd.f32 0.0, %v568
        %570 = vmatmul.f32.gmra.mxu0 %v488
        %v571 = vpop.f32.mrf.mxu0
        %v572 = vadd.f32 0.0, %v571
        %573 = vmatmul.f32.gmra.mxu0 %v489
        %v574 = vpop.f32.mrf.mxu0
        %v575 = vadd.f32 0.0, %v574
        %576 = vmatmul.f32.gmra.mxu0 %v490
        %v577 = vpop.f32.mrf.mxu0
        %v578 = vadd.f32 0.0, %v577
        %579 = vmatmul.f32.gmra.mxu0 %v491
        %v580 = vpop.f32.mrf.mxu0
        %v581 = vadd.f32 0.0, %v580
        %582 = vmatmul.f32.gmra.mxu0 %v492
        %v583 = vpop.f32.mrf.mxu0
        %v584 = vadd.f32 0.0, %v583
        %585 = vmatmul.f32.gmra.mxu0 %v493
        %v586 = vpop.f32.mrf.mxu0
        %v587 = vadd.f32 0.0, %v586
        %588 = vmatmul.f32.gmra.mxu0 %v494
        %v589 = vpop.f32.mrf.mxu0
        %v590 = vadd.f32 0.0, %v589
        %591 = vmatmul.f32.gmra.mxu0 %v495
        %v592 = vpop.f32.mrf.mxu0
        %v593 = vadd.f32 0.0, %v592
        %594 = vmatmul.f32.gmra.mxu0 %v496
        %v595 = vpop.f32.mrf.mxu0
        %v596 = vadd.f32 0.0, %v595
        %597 = vmatmul.f32.gmra.mxu0 %v497
        %v598 = vpop.f32.mrf.mxu0
        %v599 = vadd.f32 0.0, %v598
        %600 = vmatmul.f32.gmra.mxu0 %v498
        %v601 = vpop.f32.mrf.mxu0
        %v602 = vadd.f32 0.0, %v601
        %603 = vmatmul.f32.gmra.mxu0 %v499
        %v604 = vpop.f32.mrf.mxu0
        %v605 = vadd.f32 0.0, %v604
        %606 = vmatmul.f32.gmra.mxu0 %v500
        %v607 = vpop.f32.mrf.mxu0
        %v608 = vadd.f32 0.0, %v607
        %609 = vmatmul.f32.gmra.mxu0 %v501
        %v610 = vpop.f32.mrf.mxu0
        %v611 = vadd.f32 0.0, %v610
        %612 = vmatmul.f32.gmra.mxu0 %v502
        %v613 = vpop.f32.mrf.mxu0
        %v614 = vadd.f32 0.0, %v613
        %615 = vmatmul.f32.gmra.mxu0 %v503
        %v616 = vpop.f32.mrf.mxu0
        %v617 = vadd.f32 0.0, %v616
        %618 = vmatmul.f32.gmra.mxu0 %v504
        %v619 = vpop.f32.mrf.mxu0
        %v620 = vadd.f32 0.0, %v619
        %621 = vmatmul.f32.gmra.mxu0 %v505
        %v622 = vpop.f32.mrf.mxu0
        %v623 = vadd.f32 0.0, %v622
        %624 = vmatmul.f32.gmra.mxu0 %v506
        %v625 = vpop.f32.mrf.mxu0
        %v626 = vadd.f32 0.0, %v625
        %627 = vmatmul.f32.gmra.mxu0 %v507
        %v628 = vpop.f32.mrf.mxu0
        %v629 = vadd.f32 0.0, %v628
        %630 = vmatmul.f32.gmra.mxu0 %v508
        %v631 = vpop.f32.mrf.mxu0
        %v632 = vadd.f32 0.0, %v631
        %633 = vmatmul.f32.gmra.mxu0 %v509
        %v634 = vpop.f32.mrf.mxu0
        %v635 = vadd.f32 0.0, %v634
        %636 = vmatmul.f32.gmra.mxu0 %v510
        %v637 = vpop.f32.mrf.mxu0
        %v638 = vadd.f32 0.0, %v637
        %639 = vdwg.mxu0
        %v640 = vadd.f32 %v447, %v545
        %v641 = vadd.f32 %v448, %v548
        %v642 = vadd.f32 %v449, %v551
        %v643 = vadd.f32 %v450, %v554
        %v644 = vadd.f32 %v451, %v557
        %v645 = vadd.f32 %v452, %v560
        %v646 = vadd.f32 %v453, %v563
        %v647 = vadd.f32 %v454, %v566
        %v648 = vadd.f32 %v455, %v569
        %v649 = vadd.f32 %v456, %v572
        %v650 = vadd.f32 %v457, %v575
        %v651 = vadd.f32 %v458, %v578
        %v652 = vadd.f32 %v459, %v581
        %v653 = vadd.f32 %v460, %v584
        %v654 = vadd.f32 %v461, %v587
        %v655 = vadd.f32 %v462, %v590
        %v656 = vadd.f32 %v463, %v593
        %v657 = vadd.f32 %v464, %v596
        %v658 = vadd.f32 %v465, %v599
        %v659 = vadd.f32 %v466, %v602
        %v660 = vadd.f32 %v467, %v605
        %v661 = vadd.f32 %v468, %v608
        %v662 = vadd.f32 %v469, %v611
        %v663 = vadd.f32 %v470, %v614
        %v664 = vadd.f32 %v471, %v617
        %v665 = vadd.f32 %v472, %v620
        %v666 = vadd.f32 %v473, %v623
        %v667 = vadd.f32 %v474, %v626
        %v668 = vadd.f32 %v475, %v629
        %v669 = vadd.f32 %v476, %v632
        %v670 = vadd.f32 %v477, %v635
        %v671 = vadd.f32 %v478, %v638
        %672 = vst [vmem:[#allocation2] sm:$0xff] %v640
        %673 = vst [vmem:[#allocation2 + $0x8] sm:$0xff] %v641
        %674 = vst [vmem:[#allocation2 + $0x10] sm:$0xff] %v642
        %675 = vst [vmem:[#allocation2 + $0x18] sm:$0xff] %v643
        %676 = vst [vmem:[#allocation2 + $0x20] sm:$0xff] %v644
        %677 = vst [vmem:[#allocation2 + $0x28] sm:$0xff] %v645
        %678 = vst [vmem:[#allocation2 + $0x30] sm:$0xff] %v646
        %679 = vst [vmem:[#allocation2 + $0x38] sm:$0xff] %v647
        %680 = vst [vmem:[#allocation2 + $0x40] sm:$0xff] %v648
        %681 = vst [vmem:[#allocation2 + $0x48] sm:$0xff] %v649
        %682 = vst [vmem:[#allocation2 + $0x50] sm:$0xff] %v650
        %683 = vst [vmem:[#allocation2 + $0x58] sm:$0xff] %v651
        %684 = vst [vmem:[#allocation2 + $0x60] sm:$0xff] %v652
        %685 = vst [vmem:[#allocation2 + $0x68] sm:$0xff] %v653
        %686 = vst [vmem:[#allocation2 + $0x70] sm:$0xff] %v654
        %687 = vst [vmem:[#allocation2 + $0x78] sm:$0xff] %v655
        %688 = vst [vmem:[#allocation2 + $0x80] sm:$0xff] %v656
        %689 = vst [vmem:[#allocation2 + $0x88] sm:$0xff] %v657
        %690 = vst [vmem:[#allocation2 + $0x90] sm:$0xff] %v658
        %691 = vst [vmem:[#allocation2 + $0x98] sm:$0xff] %v659
        %692 = vst [vmem:[#allocation2 + $0xa0] sm:$0xff] %v660
        %693 = vst [vmem:[#allocation2 + $0xa8] sm:$0xff] %v661
        %694 = vst [vmem:[#allocation2 + $0xb0] sm:$0xff] %v662
        %695 = vst [vmem:[#allocation2 + $0xb8] sm:$0xff] %v663
        %696 = vst [vmem:[#allocation2 + $0xc0] sm:$0xff] %v664
        %697 = vst [vmem:[#allocation2 + $0xc8] sm:$0xff] %v665
        %698 = vst [vmem:[#allocation2 + $0xd0] sm:$0xff] %v666
        %699 = vst [vmem:[#allocation2 + $0xd8] sm:$0xff] %v667
        %700 = vst [vmem:[#allocation2 + $0xe0] sm:$0xff] %v668
        %701 = vst [vmem:[#allocation2 + $0xe8] sm:$0xff] %v669
        %702 = vst [vmem:[#allocation2 + $0xf0] sm:$0xff] %v670
        %703 = vst [vmem:[#allocation2 + $0xf8] sm:$0xff] %v671
        %p704 = scmp.eq.s32.totalorder %s21, 3
        // Predicated region
        $region75: #{generator_forward.37} parent=65 // pred_check
          %p705 = pneg %p704
        $region76: #{generator_forward.37} parent=65 // pred_check_branch
          %707 = sbr.rel (%p705) target = $region78
        $region77: #{generator_forward.37} parent=65 // pred_region
          %v708 = vld [vmem:[#allocation2] sm:$0xff]
          %v709 = vld [vmem:[#allocation2 + $0x8] sm:$0xff]
          %v710 = vld [vmem:[#allocation2 + $0x10] sm:$0xff]
          %v711 = vld [vmem:[#allocation2 + $0x18] sm:$0xff]
          %v712 = vld [vmem:[#allocation2 + $0x20] sm:$0xff]
          %v713 = vld [vmem:[#allocation2 + $0x28] sm:$0xff]
          %v714 = vld [vmem:[#allocation2 + $0x30] sm:$0xff]
          %v715 = vld [vmem:[#allocation2 + $0x38] sm:$0xff]
          %v716 = vld [vmem:[#allocation2 + $0x40] sm:$0xff]
          %v717 = vld [vmem:[#allocation2 + $0x48] sm:$0xff]
          %v718 = vld [vmem:[#allocation2 + $0x50] sm:$0xff]
          %v719 = vld [vmem:[#allocation2 + $0x58] sm:$0xff]
          %v720 = vld [vmem:[#allocation2 + $0x60] sm:$0xff]
          %v721 = vld [vmem:[#allocation2 + $0x68] sm:$0xff]
          %v722 = vld [vmem:[#allocation2 + $0x70] sm:$0xff]
          %v723 = vld [vmem:[#allocation2 + $0x78] sm:$0xff]
          %v724 = vld [vmem:[#allocation2 + $0x80] sm:$0xff]
          %v725 = vld [vmem:[#allocation2 + $0x88] sm:$0xff]
          %v726 = vld [vmem:[#allocation2 + $0x90] sm:$0xff]
          %v727 = vld [vmem:[#allocation2 + $0x98] sm:$0xff]
          %v728 = vld [vmem:[#allocation2 + $0xa0] sm:$0xff]
          %v729 = vld [vmem:[#allocation2 + $0xa8] sm:$0xff]
          %v730 = vld [vmem:[#allocation2 + $0xb0] sm:$0xff]
          %v731 = vld [vmem:[#allocation2 + $0xb8] sm:$0xff]
          %v732 = vld [vmem:[#allocation2 + $0xc0] sm:$0xff]
          %v733 = vld [vmem:[#allocation2 + $0xc8] sm:$0xff]
          %v734 = vld [vmem:[#allocation2 + $0xd0] sm:$0xff]
          %v735 = vld [vmem:[#allocation2 + $0xd8] sm:$0xff]
          %v736 = vld [vmem:[#allocation2 + $0xe0] sm:$0xff]
          %v737 = vld [vmem:[#allocation2 + $0xe8] sm:$0xff]
          %v738 = vld [vmem:[#allocation2 + $0xf0] sm:$0xff]
          %v739 = vld [vmem:[#allocation2 + $0xf8] sm:$0xff]
          %v740 = vld [vmem:[%s401] sm:$0x1]
          %v742 = vperm.slane %v740, 0
          %v744 = vadd.f32 %v708, %v742
          %v745 = vadd.f32 %v709, %v742
          %v746 = vadd.f32 %v710, %v742
          %v747 = vadd.f32 %v711, %v742
          %v748 = vadd.f32 %v712, %v742
          %v749 = vadd.f32 %v713, %v742
          %v750 = vadd.f32 %v714, %v742
          %v751 = vadd.f32 %v715, %v742
          %v752 = vadd.f32 %v716, %v742
          %v753 = vadd.f32 %v717, %v742
          %v754 = vadd.f32 %v718, %v742
          %v755 = vadd.f32 %v719, %v742
          %v756 = vadd.f32 %v720, %v742
          %v757 = vadd.f32 %v721, %v742
          %v758 = vadd.f32 %v722, %v742
          %v759 = vadd.f32 %v723, %v742
          %v760 = vadd.f32 %v724, %v742
          %v761 = vadd.f32 %v725, %v742
          %v762 = vadd.f32 %v726, %v742
          %v763 = vadd.f32 %v727, %v742
          %v764 = vadd.f32 %v728, %v742
          %v765 = vadd.f32 %v729, %v742
          %v766 = vadd.f32 %v730, %v742
          %v767 = vadd.f32 %v731, %v742
          %v768 = vadd.f32 %v732, %v742
          %v769 = vadd.f32 %v733, %v742
          %v770 = vadd.f32 %v734, %v742
          %v771 = vadd.f32 %v735, %v742
          %v772 = vadd.f32 %v736, %v742
          %v773 = vadd.f32 %v737, %v742
          %v774 = vadd.f32 %v738, %v742
          %v775 = vadd.f32 %v739, %v742
          %v776 = vtanh.pop %v744
          %v777 = vtanh.pop %v745
          %v778 = vtanh.pop %v746
          %v779 = vtanh.pop %v747
          %v780 = vtanh.pop %v748
          %v781 = vtanh.pop %v749
          %v782 = vtanh.pop %v750
          %v783 = vtanh.pop %v751
          %v784 = vtanh.pop %v752
          %v785 = vtanh.pop %v753
          %v786 = vtanh.pop %v754
          %v787 = vtanh.pop %v755
          %v788 = vtanh.pop %v756
          %v789 = vtanh.pop %v757
          %v790 = vtanh.pop %v758
          %v791 = vtanh.pop %v759
          %v792 = vtanh.pop %v760
          %v793 = vtanh.pop %v761
          %v794 = vtanh.pop %v762
          %v795 = vtanh.pop %v763
          %v796 = vtanh.pop %v764
          %v797 = vtanh.pop %v765
          %v798 = vtanh.pop %v766
          %v799 = vtanh.pop %v767
          %v800 = vtanh.pop %v768
          %v801 = vtanh.pop %v769
          %v802 = vtanh.pop %v770
          %v803 = vtanh.pop %v771
          %v804 = vtanh.pop %v772
          %v805 = vtanh.pop %v773
          %v806 = vtanh.pop %v774
          %v807 = vtanh.pop %v775
          %808 = vst [vmem:[%s409] sm:$0xff] %v776
          %809 = vst [vmem:[%s409 + $0x8] sm:$0xff] %v777
          %810 = vst [vmem:[%s409 + $0x10] sm:$0xff] %v778
          %811 = vst [vmem:[%s409 + $0x18] sm:$0xff] %v779
          %812 = vst [vmem:[%s409 + $0x20] sm:$0xff] %v780
          %813 = vst [vmem:[%s409 + $0x28] sm:$0xff] %v781
          %814 = vst [vmem:[%s409 + $0x30] sm:$0xff] %v782
          %815 = vst [vmem:[%s409 + $0x38] sm:$0xff] %v783
          %816 = vst [vmem:[%s409 + $0x40] sm:$0xff] %v784
          %817 = vst [vmem:[%s409 + $0x48] sm:$0xff] %v785
          %818 = vst [vmem:[%s409 + $0x50] sm:$0xff] %v786
          %819 = vst [vmem:[%s409 + $0x58] sm:$0xff] %v787
          %820 = vst [vmem:[%s409 + $0x60] sm:$0xff] %v788
          %821 = vst [vmem:[%s409 + $0x68] sm:$0xff] %v789
          %822 = vst [vmem:[%s409 + $0x70] sm:$0xff] %v790
          %823 = vst [vmem:[%s409 + $0x78] sm:$0xff] %v791
          %824 = vst [vmem:[%s409 + $0x80] sm:$0xff] %v792
          %825 = vst [vmem:[%s409 + $0x88] sm:$0xff] %v793
          %826 = vst [vmem:[%s409 + $0x90] sm:$0xff] %v794
          %827 = vst [vmem:[%s409 + $0x98] sm:$0xff] %v795
          %828 = vst [vmem:[%s409 + $0xa0] sm:$0xff] %v796
          %829 = vst [vmem:[%s409 + $0xa8] sm:$0xff] %v797
          %830 = vst [vmem:[%s409 + $0xb0] sm:$0xff] %v798
          %831 = vst [vmem:[%s409 + $0xb8] sm:$0xff] %v799
          %832 = vst [vmem:[%s409 + $0xc0] sm:$0xff] %v800
          %833 = vst [vmem:[%s409 + $0xc8] sm:$0xff] %v801
          %834 = vst [vmem:[%s409 + $0xd0] sm:$0xff] %v802
          %835 = vst [vmem:[%s409 + $0xd8] sm:$0xff] %v803
          %836 = vst [vmem:[%s409 + $0xe0] sm:$0xff] %v804
          %837 = vst [vmem:[%s409 + $0xe8] sm:$0xff] %v805
          %838 = vst [vmem:[%s409 + $0xf0] sm:$0xff] %v806
          %839 = vst [vmem:[%s409 + $0xf8] sm:$0xff] %v807
        $region78: #{generator_forward.37} parent=65 // pred_fallthru
          _
        %s840 = smul.u32 32, %s19
        %p841 = scmp.lt.s32.totalorder %s840, 63
        %s842 = scalar_select %p841, %s840, 63
        %p843 = scmp.lt.s32.totalorder %s20, 0
        %s844 = scalar_select %p843, %s20, 0
        %s845 = sadd.s32 %s844, %s842
        %s846 = smul.addr %s845, 8
        %s847 = scalar_lea.vmem %s3, %s846
        // Predicated region
        $region79: #{generator_forward.37} parent=65 // pred_check
          %p848 = pneg %p135
        $region80: #{generator_forward.37} parent=65 // pred_check_branch
          %850 = sbr.rel (%p848) target = $region82
        $region81: #{generator_forward.37} parent=65 // pred_region
          %s851 = smul.u32 32, %s19
        $region82: #{generator_forward.37} parent=65 // pred_fallthru
          _
      $region66: #{generator_forward.37} parent=5 // pred_fallthru
        _
      %p852 = scmp.le.s32.totalorder 2, %s9
      // Predicated region
      $region83: #{generator_forward.37} parent=5 // pred_check
        %p853 = pneg %p852
      $region84: #{generator_forward.37} parent=5 // pred_check_branch
        %855 = sbr.rel (%p853) target = $region86
      $region85: #{generator_forward.37} parent=5 // pred_region
        %s856 = ssub.s32 %s9, 2
        // Predicated region
        $region87: #{generator_forward.37} parent=85 // pred_check
          %p857 = pneg %p141
        $region88: #{generator_forward.37} parent=85 // pred_check_branch
          %859 = sbr.rel (%p857) target = $region90
        $region89: #{generator_forward.37} parent=85 // pred_region
          %s860 = smul.u32 32, %s22
          %p861 = scmp.lt.s32.totalorder %s860, 63
          %s862 = scalar_select %p861, %s860, 63
          %p863 = scmp.lt.s32.totalorder %s23, 0
          %s864 = scalar_select %p863, %s23, 0
          %s865 = sadd.s32 %s864, %s862
          %s866 = smul.addr %s865, 8
          %s867 = scalar_lea.vmem %s3, %s866
        $region90: #{generator_forward.37} parent=85 // pred_fallthru
          _
      $region86: #{generator_forward.37} parent=5 // pred_fallthru
        _
    $region6: #{generator_forward.37} parent=1 // loop_footer
      %s13 = sadd.s32 1, %s9
    $region7: #{generator_forward.37} parent=1 // loop_footer_branch
      %8 = sbr.rel target = $region3
    $region8: #{generator_forward.37} parent=1 // loop_exit
      _

</llo_original>
